<compile_context>
chip_gen: v7x
topology: tpu7x:2x2x1
jax: 0.10.0
libtpu: 0.0.40
codegen_flags: <defaults>
</compile_context>

<pallas_src>
import numpy as np
import jax
import jax.numpy as jnp
from jax.experimental import pallas as pl
from jax.experimental.pallas import tpu as pltpu


# ----------------------------------------------------------------------------
# Parameters (deterministic, synthetic -- mirrors PairHead22.__init__ shapes)
# ----------------------------------------------------------------------------
def init_params(key, instance_num):
    def dense(k, fan_in, fan_out):
        kw, kb = jax.random.split(k)
        w = jax.random.normal(kw, (fan_in, fan_out), jnp.float32) * 0.02
        b = jax.random.normal(kb, (fan_out,), jnp.float32) * 0.01
        return w, b

    keys = jax.random.split(key, 12)
    p = {}
    # replaces torch.load('semantic_embedding.pth') with deterministic init
    p["semantic_embed"] = (
        jax.random.normal(keys[0], (instance_num - 1, 300), jnp.float32) * 0.02
    )
    p["language_fc1"] = dense(keys[1], 300, 512)
    p["language_fc2"] = dense(keys[2], 512, 512)
    p["location_fc1"] = dense(keys[3], 8, 64)
    p["location_fc2"] = dense(keys[4], 64, 512)
    p["visual_fc1"] = dense(keys[5], 1024 * 2, 1024)
    p["visual_fc2"] = dense(keys[6], 1024, 512)
    p["pair_fc1"] = dense(keys[7], 512 * 3, 512)
    p["gcn_fc1"] = dense(keys[8], 512, 256)   # OtherGCNLayer(512, 256)
    p["gcn_fc2"] = dense(keys[9], 256, 512)
    p["pair_fc2"] = dense(keys[10], 1024, 512)
    p["pair_fc3"] = dense(keys[11], 512, 1)
    return p


# Kernel argument ordering: main fused head kernel / hoisted GCN MLP kernel.
_MAIN_WEIGHT_KEYS = (
    "wl1", "bl1", "wl2", "bl2",
    "wo1", "bo1", "wo2", "bo2",
    "wv1", "bv1", "wv2", "bv2",
    "wp1_lang", "wp1_loc", "wp1_vis", "bp1",
    "wp2_a", "wp2_b", "bp2",
    "wp3", "bp3",
)
_GCN_WEIGHT_KEYS = ("wg1", "bg1", "wg2", "bg2")


def pack_params(p):
    """Cast weights to bf16 once, biases to f32 [1,N], pre-split the concat
    matmuls (pair_fc1 / pair_fc2) so the kernels never materialize concats."""
    bf = jnp.bfloat16
    f32 = jnp.float32

    def pk(name):
        w, b = p[name]
        return w.astype(bf), b.reshape(1, -1).astype(f32)

    W = {}
    W["wl1"], W["bl1"] = pk("language_fc1")
    W["wl2"], W["bl2"] = pk("language_fc2")
    W["wo1"], W["bo1"] = pk("location_fc1")
    W["wo2"], W["bo2"] = pk("location_fc2")
    W["wv1"], W["bv1"] = pk("visual_fc1")
    W["wv2"], W["bv2"] = pk("visual_fc2")

    wp1, bp1 = p["pair_fc1"]                      # [1536, 512]
    W["wp1_lang"] = wp1[0:512].astype(bf)
    W["wp1_loc"] = wp1[512:1024].astype(bf)
    W["wp1_vis"] = wp1[1024:1536].astype(bf)
    W["bp1"] = bp1.reshape(1, -1).astype(f32)

    W["wg1"], W["bg1"] = pk("gcn_fc1")
    W["wg2"], W["bg2"] = pk("gcn_fc2")

    wp2, bp2 = p["pair_fc2"]                      # [1024, 512]
    W["wp2_a"] = wp2[0:512].astype(bf)
    W["wp2_b"] = wp2[512:1024].astype(bf)
    W["bp2"] = bp2.reshape(1, -1).astype(f32)

    wp3, bp3 = p["pair_fc3"]                      # [512, 1], [1]
    W["wp3"] = wp3.reshape(1, 512).astype(f32)    # VPU reduction row vector
    W["bp3"] = bp3.reshape(1, 1).astype(f32)      # scalar bias, added pre-sigmoid

    W["semantic_embed"] = p["semantic_embed"].astype(f32)
    return W


# ----------------------------------------------------------------------------
# Kernel 1: hoisted GCN instance MLP (512 -> 256 -> 512), runs ONCE over all
# instance features instead of once per row tile of pairs.
# ----------------------------------------------------------------------------
def _gcn_mlp_kernel(instf_ref, wg1, bg1, wg2, bg2, h_ref):
    f32, bf16 = jnp.float32, jnp.bfloat16
    h = jnp.maximum(
        jnp.dot(instf_ref[...], wg1[...], preferred_element_type=f32) + bg1[...], 0.0)
    h = jnp.maximum(
        jnp.dot(h.astype(bf16), wg2[...], preferred_element_type=f32) + bg2[...], 0.0)
    h_ref[...] = h.astype(h_ref.dtype)


# ----------------------------------------------------------------------------
# Kernel 2: fused PairHead22 forward for one row tile of pairs
# ----------------------------------------------------------------------------
def _pair_head_kernel(
    emb_ref, loc_ref, vis_ref, att_ref, h_ref,
    wl1, bl1, wl2, bl2,
    wo1, bo1, wo2, bo2,
    wv1, bv1, wv2, bv2,
    wp1_lang, wp1_loc, wp1_vis, bp1,
    wp2_a, wp2_b, bp2,
    wp3, bp3,
    feat_ref, pred_ref,
):
    f32 = jnp.float32
    bf16 = jnp.bfloat16

    def mm(x, w_ref):
        # bf16 x bf16 matmul, f32 accumulation on the MXU
        return jnp.dot(x, w_ref[...], preferred_element_type=f32)

    def relu(y):
        return jnp.maximum(y, 0.0)

    # --- language branch: 300 -> 512 -> 512 (emb diff gathered in wrapper) --
    lang = relu(mm(emb_ref[...], wl1) + bl1[...])
    lang = relu(mm(lang.astype(bf16), wl2) + bl2[...]).astype(bf16)

    # --- location branch: 8 -> 64 -> 512 ------------------------------------
    loc = relu(mm(loc_ref[...], wo1) + bo1[...])
    loc = relu(mm(loc.astype(bf16), wo2) + bo2[...]).astype(bf16)

    # --- visual branch: 2048 -> 1024 -> 512 ---------------------------------
    vis = relu(mm(vis_ref[...], wv1) + bv1[...])
    vis = relu(mm(vis.astype(bf16), wv2) + bv2[...]).astype(bf16)

    # --- pair_fc1 as K-split partial matmuls (no [P,1536] concat) -----------
    p1 = mm(lang, wp1_lang) + mm(loc, wp1_loc) + mm(vis, wp1_vis)
    p1 = relu(p1 + bp1[...]).astype(bf16)

    # --- GCN attention aggregation against precomputed instance MLP output --
    gcn = jnp.dot(att_ref[...], h_ref[...], preferred_element_type=f32).astype(bf16)

    # --- pair_fc2 as K-split partial matmuls (no [P,1024] concat) -----------
    p2 = mm(p1, wp2_a) + mm(gcn, wp2_b)
    p2 = relu(p2 + bp2[...])                                  # keep f32

    feat_ref[...] = p2.astype(feat_ref.dtype)

    # --- pair_fc3 + sigmoid: VPU dot-product reduction, sigmoid on the
    #     narrow [tm,1] logit (single EUP column), broadcast to a lane-dense
    #     [tm,128] tile for the (bf16) store -------------------------------
    logit = jnp.sum(p2 * wp3[...], axis=-1, keepdims=True)    # [tm, 1]
    pred = jax.nn.sigmoid(logit + bp3[...])                   # [tm, 1]
    pred_ref[...] = jnp.broadcast_to(pred, pred_ref.shape).astype(pred_ref.dtype)


# ----------------------------------------------------------------------------
# Host-side glue
# ----------------------------------------------------------------------------
def _round_up(x, m):
    return ((x + m - 1) // m) * m


def _row_tile(P):
    cap = 128
    try:
        kind = jax.devices()[0].device_kind.lower()
    except Exception:
        kind = ""
    # v6e/v7x have a 256x256 MXU; with single-buffered weights a 256-row tile
    # fits VMEM and roughly doubles MXU occupancy on the dominant matmuls.
    # v5e keeps tm<=128 (128x128 MXU).
    if P >= 256 and ("v6" in kind or "v7" in kind):
        cap = 256
    if P <= cap:
        return max(16, _round_up(P, 16))
    return cap


def _const_spec(shape, single_buffer):
    """Full-array block with a constant index map (weights / shared h).
    single_buffer=True requests Buffered(1): double-buffering a block whose
    index never changes only doubles its VMEM footprint."""
    zero = (0,) * len(shape)
    if single_buffer:
        return pl.BlockSpec(tuple(shape), lambda i: zero,
                            pipeline_mode=pl.Buffered(1))
    return pl.BlockSpec(tuple(shape), lambda i: zero)


def _prepare_inputs(params, pair_features, pair_locations, sub_classes,
                    obj_classes, attentions, inst_feats):
    f32 = jnp.float32
    loc_mix = jnp.concatenate(pair_locations, axis=0).astype(f32)
    vis_mix = jnp.concatenate(pair_features, axis=0).astype(f32)
    sub = jnp.concatenate(sub_classes).astype(jnp.int32) - 1
    obj = jnp.concatenate(obj_classes).astype(jnp.int32) - 1
    emb = params["semantic_embed"]
    emb_diff = jnp.take(emb, sub, axis=0) - jnp.take(emb, obj, axis=0)   # [P,300]

    instf_mix = jnp.concatenate(inst_feats, axis=0).astype(f32)          # [Msum,512]
    msum = instf_mix.shape[0]

    # Block-diagonal attention: turns the ragged per-image (att_i @ h_i)
    # aggregation into a single matmul over concatenated instance features.
    # TODO(synk): for production batch sizes replace this dense [P,Msum]
    # matrix with per-image windows via scalar-prefetched offsets + pl.ds.
    rows, col = [], 0
    for att in attentions:
        m_i = att.shape[1]
        rows.append(jnp.pad(att.astype(f32), ((0, 0), (col, msum - col - m_i))))
        col += m_i
    att_bd = jnp.concatenate(rows, axis=0)                               # [P,Msum]
    return emb_diff, loc_mix, vis_mix, att_bd, instf_mix


def _run_head_kernels(params, emb_p, loc_p, vis_p, att_p, instf_p,
                      tm, M_pad, Msum_pad, single_buffer):
    bf16 = jnp.bfloat16
    grid_m = M_pad // tm

    # ---- hoisted GCN instance MLP: h = relu(relu(instf@wg1+bg1)@wg2+bg2) ---
    gcn_tile = 128
    h = pl.pallas_call(
        _gcn_mlp_kernel,
        out_shape=jax.ShapeDtypeStruct((Msum_pad, 512), bf16),
        grid=(Msum_pad // gcn_tile,),
        in_specs=[pl.BlockSpec((gcn_tile, 512), lambda i: (i, 0))]
                 + [_const_spec(params[k].shape, single_buffer)
                    for k in _GCN_WEIGHT_KEYS],
        out_specs=pl.BlockSpec((gcn_tile, 512), lambda i: (i, 0)),
        compiler_params=pltpu.CompilerParams(
            dimension_semantics=("parallel",)),
    )(instf_p, *[params[k] for k in _GCN_WEIGHT_KEYS])

    # ---- VMEM budget / cost estimate for the main fused kernel -------------
    weight_bytes = sum(int(np.prod(params[k].shape)) * params[k].dtype.itemsize
                       for k in _MAIN_WEIGHT_KEYS)
    h_bytes = Msum_pad * 512 * 2
    tile_in_bytes = tm * (300 + 8 + 2048 + Msum_pad) * 2
    tile_out_bytes = tm * 512 * 4 + tm * 128 * 2
    buf = 1 if single_buffer else 2
    vmem_need = (buf * (weight_bytes + h_bytes)
                 + 2 * (tile_in_bytes + tile_out_bytes) + (12 << 20))
    vmem_limit = int(min(max(vmem_need, 32 << 20), 64 << 20))

    flops = 2 * M_pad * (300 * 512 + 512 * 512 + 8 * 64 + 64 * 512
                         + 2048 * 1024 + 1024 * 512 + 3 * 512 * 512
                         + Msum_pad * 512 + 2 * 512 * 512 + 512)
    flops += 2 * Msum_pad * (512 * 256 + 256 * 512)
    bytes_accessed = (weight_bytes + h_bytes
                      + M_pad * (300 + 8 + 2048 + Msum_pad) * 2
                      + M_pad * 512 * 4 + M_pad * 128 * 2)
    cost = pl.CostEstimate(flops=int(flops), transcendentals=int(M_pad),
                           bytes_accessed=int(bytes_accessed))

    def tile_spec(d):
        return pl.BlockSpec((tm, d), lambda i: (i, 0))

    in_specs = [
        tile_spec(300),               # emb diff
        tile_spec(8),                 # locations
        tile_spec(2048),              # visual pair features
        tile_spec(Msum_pad),          # block-diag attention
        _const_spec((Msum_pad, 512), single_buffer),   # precomputed h (shared)
    ] + [_const_spec(params[k].shape, single_buffer) for k in _MAIN_WEIGHT_KEYS]

    out_specs = [
        pl.BlockSpec((tm, 512), lambda i: (i, 0)),
        pl.BlockSpec((tm, 128), lambda i: (i, 0)),
    ]
    out_shape = [
        jax.ShapeDtypeStruct((M_pad, 512), jnp.float32),   # pair_features_512
        jax.ShapeDtypeStruct((M_pad, 128), bf16),          # sigmoid pred (col 0)
    ]

    # TODO(synk): for tiny P the one-shot ~9 MiB weight DMA dominates latency;
    # a cross-pallas_call weight-prefetch future could hide it behind the
    # XLA-side concat/gather/pad input prep.
    feat_all, pred_all = pl.pallas_call(
        _pair_head_kernel,
        out_shape=out_shape,
        grid=(grid_m,),
        in_specs=in_specs,
        out_specs=out_specs,
        cost_estimate=cost,
        compiler_params=pltpu.CompilerParams(
            dimension_semantics=("parallel",),      # row tiles across v7x cores
            vmem_limit_bytes=vmem_limit,
        ),
    )(emb_p, loc_p, vis_p, att_p, h,
      *[params[k] for k in _MAIN_WEIGHT_KEYS])
    return feat_all, pred_all


def pair_head22_forward(
    params,
    pair_features,                  # list of [P_i, 2048]
    pair_locations,                 # list of [P_i, 8]
    sub_classes,                    # list of [P_i] int (1-based class ids)
    obj_classes,                    # list of [P_i] int (1-based class ids)
    pair_instance_attentions,       # list of [P_i, M_i]
    relation_instance_features,     # list of [M_i, 512]
    training=False,
):
    pair_nums = [int(f.shape[0]) for f in pair_features]
    inst_nums = [int(f.shape[0]) for f in relation_instance_features]
    P = sum(pair_nums)
    Msum = sum(inst_nums)

    emb_diff, loc_mix, vis_mix, att_bd, instf_mix = _prepare_inputs(
        params, pair_features, pair_locations, sub_classes, obj_classes,
        pair_instance_attentions, relation_instance_features)

    # Row tile: device-aware, 16-aligned; rows padded ONCE.  Msum padded to a
    # multiple of 128 (lane-dense att vregs + dense K feed into the MXU).
    tm = _row_tile(P)
    M_pad = _round_up(P, tm)
    Msum_pad = max(128, _round_up(Msum, 128))
    # TODO(synk): bucket (P, Msum) to a small fixed set of padded sizes in a
    # real pipeline to avoid per-shape retrace/recompile.

    bf16 = jnp.bfloat16

    def pad_rows(x, rows):
        return jnp.pad(x, ((0, rows - x.shape[0]), (0, 0)))

    emb_p = pad_rows(emb_diff, M_pad).astype(bf16)
    loc_p = pad_rows(loc_mix, M_pad).astype(bf16)
    vis_p = pad_rows(vis_mix, M_pad).astype(bf16)
    att_p = jnp.pad(att_bd, ((0, M_pad - P), (0, Msum_pad - Msum))).astype(bf16)
    instf_p = pad_rows(instf_mix, Msum_pad).astype(bf16)

    try:
        feat_all, pred_all = _run_head_kernels(
            params, emb_p, loc_p, vis_p, att_p, instf_p,
            tm, M_pad, Msum_pad, single_buffer=True)
    except Exception:
        # pipeline_mode=pl.Buffered(1) unsupported on this build -> fall back
        # to default double-buffered constant blocks (correct, more VMEM).
        feat_all, pred_all = _run_head_kernels(
            params, emb_p, loc_p, vis_p, att_p, instf_p,
            tm, M_pad, Msum_pad, single_buffer=False)

    pair_features_512 = feat_all[:P]
    pair_interest_pred = pred_all[:P, 0].astype(jnp.float32)

    losses, metrics = {}, {}
    # TODO(synk): training-mode BCE loss / top-k precision-recall metrics and
    # prints in compute_pair_result_bce are host-side bookkeeping, not ported;
    # inference path (training=False) is reproduced.
    split_idx = list(np.cumsum(pair_nums)[:-1])
    pair_interest_preds = jnp.split(pair_interest_pred, split_idx)
    pair_features_512s = jnp.split(pair_features_512, split_idx)
    return pair_interest_preds, pair_features_512s, losses, metrics


# ----------------------------------------------------------------------------
# Plain-JAX reference (same bf16 weights / casts) for correctness checking
# ----------------------------------------------------------------------------
def reference_forward(params, pair_features, pair_locations, sub_classes,
                      obj_classes, attentions, inst_feats):
    f32, bf16 = jnp.float32, jnp.bfloat16
    emb_diff, loc_mix, vis_mix, att_bd, instf_mix = _prepare_inputs(
        params, pair_features, pair_locations, sub_classes, obj_classes,
        attentions, inst_feats)
    W = params

    def lin_relu(x, w, b):
        return jnp.maximum(
            jnp.dot(x.astype(bf16), w, preferred_element_type=f32) + b, 0.0)

    lang = lin_relu(lin_relu(emb_diff, W["wl1"], W["bl1"]), W["wl2"], W["bl2"])
    loc = lin_relu(lin_relu(loc_mix, W["wo1"], W["bo1"]), W["wo2"], W["bo2"])
    vis = lin_relu(lin_relu(vis_mix, W["wv1"], W["bv1"]), W["wv2"], W["bv2"])
    p1 = (jnp.dot(lang.astype(bf16), W["wp1_lang"], preferred_element_type=f32)
          + jnp.dot(loc.astype(bf16), W["wp1_loc"], preferred_element_type=f32)
          + jnp.dot(vis.astype(bf16), W["wp1_vis"], preferred_element_type=f32))
    p1 = jnp.maximum(p1 + W["bp1"], 0.0)
    # TODO(synk): OtherGCNLayer source not provided; modeled as a 512->256->512
    # ReLU MLP over instance features followed by attention aggregation.
    h = lin_relu(lin_relu(instf_mix, W["wg1"], W["bg1"]), W["wg2"], W["bg2"])
    gcn = jnp.dot(att_bd.astype(bf16), h.astype(bf16), preferred_element_type=f32)
    p2 = (jnp.dot(p1.astype(bf16), W["wp2_a"], preferred_element_type=f32)
          + jnp.dot(gcn.astype(bf16), W["wp2_b"], preferred_element_type=f32))
    p2 = jnp.maximum(p2 + W["bp2"], 0.0)
    pred = jax.nn.sigmoid(jnp.sum(p2 * W["wp3"], axis=-1) + W["bp3"][0, 0])
    return pred, p2


# ----------------------------------------------------------------------------
# Example run
# ----------------------------------------------------------------------------
if __name__ == "__main__":
    instance_num = 10                    # cfg.MODEL.RELATION_HEADS.INSTANCE_NUM
    pair_nums = [6, 10]                  # pairs per image
    inst_nums = [5, 7]                   # instances per image

    root = jax.random.PRNGKey(0)
    k_params, k_data = jax.random.split(root)
    params = pack_params(init_params(k_params, instance_num))

    ks = jax.random.split(k_data, 6 * len(pair_nums))
    pair_features, pair_locations = [], []
    sub_classes, obj_classes = [], []
    attentions, inst_feats = [], []
    for i, (p_i, m_i) in enumerate(zip(pair_nums, inst_nums)):
        kk = ks[6 * i: 6 * (i + 1)]
        pair_features.append(jax.random.normal(kk[0], (p_i, 2048), jnp.float32))
        pair_locations.append(jax.random.normal(kk[1], (p_i, 8), jnp.float32))
        sub_classes.append(jax.random.randint(kk[2], (p_i,), 1, instance_num))
        obj_classes.append(jax.random.randint(kk[3], (p_i,), 1, instance_num))
        attentions.append(jax.random.uniform(kk[4], (p_i, m_i), jnp.float32))
        inst_feats.append(jax.random.normal(kk[5], (m_i, 512), jnp.float32))

    preds, feats512, losses, metrics = pair_head22_forward(
        params, pair_features, pair_locations, sub_classes, obj_classes,
        attentions, inst_feats, training=False)
    jax.block_until_ready((preds, feats512))

    # correctness check against a plain-JAX reference using the same bf16 weights
    ref_pred, ref_feat = reference_forward(
        params, pair_features, pair_locations, sub_classes, obj_classes,
        attentions, inst_feats)
    got_pred = np.asarray(jnp.concatenate(preds))
    got_feat = np.asarray(jnp.concatenate(feats512))
    np.testing.assert_allclose(got_pred, np.asarray(ref_pred), rtol=2e-2, atol=2e-2)
    np.testing.assert_allclose(got_feat, np.asarray(ref_feat), rtol=2e-2, atol=2e-2)

    assert len(preds) == len(pair_nums)
    for p, f, n in zip(preds, feats512, pair_nums):
        assert p.shape == (n,)
        assert f.shape == (n, 512)
        assert bool(jnp.all((p >= 0.0) & (p <= 1.0)))

    print("KERNEL_OK")
</pallas_src>

<mosaic_0001>
module attributes {stable_mosaic.version = 11 : i64} {
  func.func @_gcn_mlp_kernel(%arg0: i32, %arg1: memref<128x512xbf16, #tpu.memory_space<vmem>>, %arg2: memref<512x256xbf16, #tpu.memory_space<vmem>>, %arg3: memref<1x256xf32, #tpu.memory_space<vmem>>, %arg4: memref<256x512xbf16, #tpu.memory_space<vmem>>, %arg5: memref<1x512xf32, #tpu.memory_space<vmem>>, %arg6: memref<128x512xbf16, #tpu.memory_space<vmem>>) attributes {dimension_semantics = [#tpu.dimension_semantics<parallel>], iteration_bounds = array<i64: 1>, scalar_prefetch = 0 : i64, scratch_operands = 0 : i64, tpu.core_type = #tpu.core_type<tc>, window_params = [{transform_indices = @transform_0, window_bounds = array<i64: 128, 512>}, {pipeline_mode = #tpu.pipeline_mode<synchronous>, transform_indices = @transform_1, window_bounds = array<i64: 512, 256>}, {pipeline_mode = #tpu.pipeline_mode<synchronous>, transform_indices = @transform_2, window_bounds = array<i64: 1, 256>}, {pipeline_mode = #tpu.pipeline_mode<synchronous>, transform_indices = @transform_3, window_bounds = array<i64: 256, 512>}, {pipeline_mode = #tpu.pipeline_mode<synchronous>, transform_indices = @transform_4, window_bounds = array<i64: 1, 512>}, {transform_indices = @transform_5, window_bounds = array<i64: 128, 512>}]} {
    %c0 = arith.constant 0 : index
    %c0_0 = arith.constant 0 : index
    %0 = vector.load %arg1[%c0, %c0_0] : memref<128x512xbf16, #tpu.memory_space<vmem>>, vector<128x512xbf16>
    %c0_1 = arith.constant 0 : index
    %c0_2 = arith.constant 0 : index
    %1 = vector.load %arg2[%c0_1, %c0_2] : memref<512x256xbf16, #tpu.memory_space<vmem>>, vector<512x256xbf16>
    %cst = arith.constant dense<0.000000e+00> : vector<128x256xf32>
    %2 = tpu.matmul %0, %1, %cst {dimension_numbers = #tpu.dot_dimension_numbers<[1], [0], [0], [1], [0, 0, 1, 1], [], []>} : vector<128x512xbf16>, vector<512x256xbf16>, vector<128x256xf32> -> vector<128x256xf32>
    %c0_3 = arith.constant 0 : index
    %c0_4 = arith.constant 0 : index
    %3 = vector.load %arg3[%c0_3, %c0_4] : memref<1x256xf32, #tpu.memory_space<vmem>>, vector<1x256xf32>
    %4 = vector.broadcast %3 : vector<1x256xf32> to vector<128x256xf32>
    %5 = arith.addf %2, %4 : vector<128x256xf32>
    %cst_5 = arith.constant 0.000000e+00 : f32
    %6 = vector.broadcast %cst_5 : f32 to vector<128x256xf32>
    %7 = arith.maximumf %5, %6 : vector<128x256xf32>
    %8 = arith.truncf %7 : vector<128x256xf32> to vector<128x256xbf16>
    %c0_6 = arith.constant 0 : index
    %c0_7 = arith.constant 0 : index
    %9 = vector.load %arg4[%c0_6, %c0_7] : memref<256x512xbf16, #tpu.memory_space<vmem>>, vector<256x512xbf16>
    %cst_8 = arith.constant dense<0.000000e+00> : vector<128x512xf32>
    %10 = tpu.matmul %8, %9, %cst_8 {dimension_numbers = #tpu.dot_dimension_numbers<[1], [0], [0], [1], [0, 0, 1, 1], [], []>} : vector<128x256xbf16>, vector<256x512xbf16>, vector<128x512xf32> -> vector<128x512xf32>
    %c0_9 = arith.constant 0 : index
    %c0_10 = arith.constant 0 : index
    %11 = vector.load %arg5[%c0_9, %c0_10] : memref<1x512xf32, #tpu.memory_space<vmem>>, vector<1x512xf32>
    %12 = vector.broadcast %11 : vector<1x512xf32> to vector<128x512xf32>
    %13 = arith.addf %10, %12 : vector<128x512xf32>
    %cst_11 = arith.constant 0.000000e+00 : f32
    %14 = vector.broadcast %cst_11 : f32 to vector<128x512xf32>
    %15 = arith.maximumf %13, %14 : vector<128x512xf32>
    %16 = arith.truncf %15 : vector<128x512xf32> to vector<128x512xbf16>
    %c0_12 = arith.constant 0 : index
    %c0_13 = arith.constant 0 : index
    %17 = vector.load %arg6[%c0_12, %c0_13] : memref<128x512xbf16, #tpu.memory_space<vmem>>, vector<128x512xbf16>
    tpu.vector_store %arg6[%c0_12, %c0_13], %16 {strides = array<i32>} : memref<128x512xbf16, #tpu.memory_space<vmem>>, vector<128x512xbf16>,
    return
  }
  func.func @transform_0(%arg0: i32) -> (i32, i32) {
    %c0_i32 = arith.constant 0 : i32
    %c0_i32_0 = arith.constant 0 : i32
    return %arg0, %c0_i32 : i32, i32
  }
  func.func @transform_1(%arg0: i32) -> (i32, i32) {
    %c0_i32 = arith.constant 0 : i32
    %c0_i32_0 = arith.constant 0 : i32
    %c0_i32_1 = arith.constant 0 : i32
    return %c0_i32, %c0_i32_0 : i32, i32
  }
  func.func @transform_2(%arg0: i32) -> (i32, i32) {
    %c0_i32 = arith.constant 0 : i32
    %c0_i32_0 = arith.constant 0 : i32
    %c0_i32_1 = arith.constant 0 : i32
    return %c0_i32, %c0_i32_0 : i32, i32
  }
  func.func @transform_3(%arg0: i32) -> (i32, i32) {
    %c0_i32 = arith.constant 0 : i32
    %c0_i32_0 = arith.constant 0 : i32
    %c0_i32_1 = arith.constant 0 : i32
    return %c0_i32, %c0_i32_0 : i32, i32
  }
  func.func @transform_4(%arg0: i32) -> (i32, i32) {
    %c0_i32 = arith.constant 0 : i32
    %c0_i32_0 = arith.constant 0 : i32
    %c0_i32_1 = arith.constant 0 : i32
    return %c0_i32, %c0_i32_0 : i32, i32
  }
  func.func @transform_5(%arg0: i32) -> (i32, i32) {
    %c0_i32 = arith.constant 0 : i32
    %c0_i32_0 = arith.constant 0 : i32
    return %arg0, %c0_i32 : i32, i32
  }
}

module attributes {stable_mosaic.version = 11 : i64} {
  func.func @_gcn_mlp_kernel(%arg0: i32, %arg1: memref<128x512xbf16, #tpu.memory_space<vmem>>, %arg2: memref<512x256xbf16, #tpu.memory_space<vmem>>, %arg3: memref<1x256xf32, #tpu.memory_space<vmem>>, %arg4: memref<256x512xbf16, #tpu.memory_space<vmem>>, %arg5: memref<1x512xf32, #tpu.memory_space<vmem>>, %arg6: memref<128x512xbf16, #tpu.memory_space<vmem>>) attributes {dimension_semantics = [#tpu.dimension_semantics<parallel>], iteration_bounds = array<i64: 1>, scalar_prefetch = 0 : i64, scratch_operands = 0 : i64, tpu.core_type = #tpu.core_type<tc>, window_params = [{transform_indices = @transform_0, window_bounds = array<i64: 128, 512>}, {pipeline_mode = #tpu.pipeline_mode<synchronous>, transform_indices = @transform_1, window_bounds = array<i64: 512, 256>}, {pipeline_mode = #tpu.pipeline_mode<synchronous>, transform_indices = @transform_2, window_bounds = array<i64: 1, 256>}, {pipeline_mode = #tpu.pipeline_mode<synchronous>, transform_indices = @transform_3, window_bounds = array<i64: 256, 512>}, {pipeline_mode = #tpu.pipeline_mode<synchronous>, transform_indices = @transform_4, window_bounds = array<i64: 1, 512>}, {transform_indices = @transform_5, window_bounds = array<i64: 128, 512>}]} {
    %c0 = arith.constant 0 : index
    %c0_0 = arith.constant 0 : index
    %0 = vector.load %arg1[%c0, %c0_0] : memref<128x512xbf16, #tpu.memory_space<vmem>>, vector<128x512xbf16>
    %c0_1 = arith.constant 0 : index
    %c0_2 = arith.constant 0 : index
    %1 = vector.load %arg2[%c0_1, %c0_2] : memref<512x256xbf16, #tpu.memory_space<vmem>>, vector<512x256xbf16>
    %cst = arith.constant dense<0.000000e+00> : vector<128x256xf32>
    %2 = tpu.matmul %0, %1, %cst {dimension_numbers = #tpu.dot_dimension_numbers<[1], [0], [0], [1], [0, 0, 1, 1], [], []>} : vector<128x512xbf16>, vector<512x256xbf16>, vector<128x256xf32> -> vector<128x256xf32>
    %c0_3 = arith.constant 0 : index
    %c0_4 = arith.constant 0 : index
    %3 = vector.load %arg3[%c0_3, %c0_4] : memref<1x256xf32, #tpu.memory_space<vmem>>, vector<1x256xf32>
    %4 = vector.broadcast %3 : vector<1x256xf32> to vector<128x256xf32>
    %5 = arith.addf %2, %4 : vector<128x256xf32>
    %cst_5 = arith.constant 0.000000e+00 : f32
    %6 = vector.broadcast %cst_5 : f32 to vector<128x256xf32>
    %7 = arith.maximumf %5, %6 : vector<128x256xf32>
    %8 = arith.truncf %7 : vector<128x256xf32> to vector<128x256xbf16>
    %c0_6 = arith.constant 0 : index
    %c0_7 = arith.constant 0 : index
    %9 = vector.load %arg4[%c0_6, %c0_7] : memref<256x512xbf16, #tpu.memory_space<vmem>>, vector<256x512xbf16>
    %cst_8 = arith.constant dense<0.000000e+00> : vector<128x512xf32>
    %10 = tpu.matmul %8, %9, %cst_8 {dimension_numbers = #tpu.dot_dimension_numbers<[1], [0], [0], [1], [0, 0, 1, 1], [], []>} : vector<128x256xbf16>, vector<256x512xbf16>, vector<128x512xf32> -> vector<128x512xf32>
    %c0_9 = arith.constant 0 : index
    %c0_10 = arith.constant 0 : index
    %11 = vector.load %arg5[%c0_9, %c0_10] : memref<1x512xf32, #tpu.memory_space<vmem>>, vector<1x512xf32>
    %12 = vector.broadcast %11 : vector<1x512xf32> to vector<128x512xf32>
    %13 = arith.addf %10, %12 : vector<128x512xf32>
    %cst_11 = arith.constant 0.000000e+00 : f32
    %14 = vector.broadcast %cst_11 : f32 to vector<128x512xf32>
    %15 = arith.maximumf %13, %14 : vector<128x512xf32>
    %16 = arith.truncf %15 : vector<128x512xf32> to vector<128x512xbf16>
    %c0_12 = arith.constant 0 : index
    %c0_13 = arith.constant 0 : index
    %17 = vector.load %arg6[%c0_12, %c0_13] : memref<128x512xbf16, #tpu.memory_space<vmem>>, vector<128x512xbf16>
    tpu.vector_store %arg6[%c0_12, %c0_13], %16 {strides = array<i32>} : memref<128x512xbf16, #tpu.memory_space<vmem>>, vector<128x512xbf16>,
    return
  }
  func.func @transform_0(%arg0: i32) -> (i32, i32) {
    %c0_i32 = arith.constant 0 : i32
    %c0_i32_0 = arith.constant 0 : i32
    return %arg0, %c0_i32 : i32, i32
  }
  func.func @transform_1(%arg0: i32) -> (i32, i32) {
    %c0_i32 = arith.constant 0 : i32
    %c0_i32_0 = arith.constant 0 : i32
    %c0_i32_1 = arith.constant 0 : i32
    return %c0_i32, %c0_i32_0 : i32, i32
  }
  func.func @transform_2(%arg0: i32) -> (i32, i32) {
    %c0_i32 = arith.constant 0 : i32
    %c0_i32_0 = arith.constant 0 : i32
    %c0_i32_1 = arith.constant 0 : i32
    return %c0_i32, %c0_i32_0 : i32, i32
  }
  func.func @transform_3(%arg0: i32) -> (i32, i32) {
    %c0_i32 = arith.constant 0 : i32
    %c0_i32_0 = arith.constant 0 : i32
    %c0_i32_1 = arith.constant 0 : i32
    return %c0_i32, %c0_i32_0 : i32, i32
  }
  func.func @transform_4(%arg0: i32) -> (i32, i32) {
    %c0_i32 = arith.constant 0 : i32
    %c0_i32_0 = arith.constant 0 : i32
    %c0_i32_1 = arith.constant 0 : i32
    return %c0_i32, %c0_i32_0 : i32, i32
  }
  func.func @transform_5(%arg0: i32) -> (i32, i32) {
    %c0_i32 = arith.constant 0 : i32
    %c0_i32_0 = arith.constant 0 : i32
    return %arg0, %c0_i32 : i32, i32
  }
}

</mosaic_0001>

<llo_original>
// kernel: tpu_custom_call.1
$region0: #{tpu_custom_call.1}
  #allocation0 [shape = 'u32[]', space=smem, size = 0x4, offset = 0x4, fixed_abs, tag = 'smem constant byte address 0x4 - core index']
  #allocation1 [shape = 'u32[144,128]{1,0:T(1,128)}', space=vmem, size = 0x12000, scoped, tag = 'internal scratch']
  %s0 = inlined_call_operand.hbm [shape: bf16[128,512], index: 0, kind: input, shape index: {}]
  %s1 = inlined_call_operand.hbm [shape: bf16[512,256], index: 1, kind: input, shape index: {}]
  %s2 = inlined_call_operand.vmem [shape: f32[1,256], index: 2, kind: input, shape index: {}]
  %s3 = inlined_call_operand.hbm [shape: bf16[256,512], index: 3, kind: input, shape index: {}]
  %s4 = inlined_call_operand.vmem [shape: f32[1,512], index: 4, kind: input, shape index: {}]
  %s5 = inlined_call_operand.hbm [shape: bf16[128,512], index: 5, kind: output, shape index: {}]
  %s6 = sld [smem:[#allocation0]]
  $region42: #{tpu_custom_call.1} parent=0
    _
  %s8 = ssub.s32 1, %s6
  %s9 = scalar_select 0, %s8, %s6
  $region1: #{tpu_custom_call.1} parent=0
    #allocation2 [shape = 'u8[131072]{0}', space=vmem, size = 0x20000, scoped, tag = 'input window, operand 0, single buffered']
    #allocation3 [shape = 's32[1]{0}', space=sflag, size = 0x4, scoped, tag = 'scoped memory for tpu_custom_call.1']
    #allocation4 [shape = 's32[1]{0}', space=sflag, size = 0x4, scoped, tag = 'scoped memory for tpu_custom_call.1']
    #allocation5 [shape = 'u8[262144]{0}', space=vmem, size = 0x40000, scoped, tag = 'input window, operand 1, single buffered']
    #allocation6 [shape = 's32[1]{0}', space=sflag, size = 0x4, scoped, tag = 'scoped memory for tpu_custom_call.1']
    #allocation7 [shape = 'u8[262144]{0}', space=vmem, size = 0x40000, scoped, tag = 'input window, operand 3, single buffered']
    #allocation8 [shape = 'u8[131072]{0}', space=vmem, size = 0x20000, scoped, tag = 'output window, operand 0, single buffered']
    %10 = vsyncpa [#allocation3], 0
    %11 = vsyncpa [#allocation6], 0
    %12 = vsyncpa [#allocation4], 0
    // Predicated region
    $region2: #{tpu_custom_call.1} parent=1 // pred_check
      _
    $region3: #{tpu_custom_call.1} parent=1 // pred_check_branch
      %14 = sbr.rel (0) target = $region5
    $region4: #{tpu_custom_call.1} parent=1 // pred_region
      %s16 = ssub.s32 4096, 4096
      %17 = vsyncadd [#allocation3], %s16
      %s18 = sshll.u32 [#allocation2], 4
      %s19 = int_to_ptr.vmem [resolvable:$true] %s18
      %24 = dma.hbm_to_vmem [thread:$0]  %s0, 4096, %s19, [#allocation3], 256, 256, 16
    $region5: #{tpu_custom_call.1} parent=1 // pred_fallthru
      _
    // Predicated region
    $region6: #{tpu_custom_call.1} parent=1 // pred_check
      _
    $region7: #{tpu_custom_call.1} parent=1 // pred_check_branch
      %26 = sbr.rel (0) target = $region9
    $region8: #{tpu_custom_call.1} parent=1 // pred_region
      %s28 = ssub.s32 8192, 8192
      %29 = vsyncadd [#allocation6], %s28
      %s30 = sshll.u32 [#allocation5], 4
      %s31 = int_to_ptr.vmem [resolvable:$true] %s30
      %36 = dma.hbm_to_vmem [thread:$0]  %s1, 8192, %s31, [#allocation6], 128, 128, 8
    $region9: #{tpu_custom_call.1} parent=1 // pred_fallthru
      _
    // Predicated region
    $region10: #{tpu_custom_call.1} parent=1 // pred_check
      _
    $region11: #{tpu_custom_call.1} parent=1 // pred_check_branch
      %38 = sbr.rel (0) target = $region13
    $region12: #{tpu_custom_call.1} parent=1 // pred_region
      _
    $region13: #{tpu_custom_call.1} parent=1 // pred_fallthru
      _
    // Predicated region
    $region14: #{tpu_custom_call.1} parent=1 // pred_check
      _
    $region15: #{tpu_custom_call.1} parent=1 // pred_check_branch
      %40 = sbr.rel (0) target = $region17
    $region16: #{tpu_custom_call.1} parent=1 // pred_region
      %s42 = ssub.s32 8192, 8192
      %43 = vsyncadd [#allocation6], %s42
      %s44 = sshll.u32 [#allocation7], 4
      %s45 = int_to_ptr.vmem [resolvable:$true] %s44
      %50 = dma.hbm_to_vmem [thread:$0]  %s3, 8192, %s45, [#allocation6], 256, 256, 16
    $region17: #{tpu_custom_call.1} parent=1 // pred_fallthru
      _
    // Predicated region
    $region18: #{tpu_custom_call.1} parent=1 // pred_check
      _
    $region19: #{tpu_custom_call.1} parent=1 // pred_check_branch
      %52 = sbr.rel (0) target = $region21
    $region20: #{tpu_custom_call.1} parent=1 // pred_region
      _
    $region21: #{tpu_custom_call.1} parent=1 // pred_fallthru
      _
    // Predicated region
    $region22: #{tpu_custom_call.1} parent=1 // pred_check
      _
    $region23: #{tpu_custom_call.1} parent=1 // pred_check_branch
      %54 = sbr.rel (0) target = $region25
    $region24: #{tpu_custom_call.1} parent=1 // pred_region
      %55 = dma.done [#allocation3], 4096
    $region25: #{tpu_custom_call.1} parent=1 // pred_fallthru
      _
    // Predicated region
    $region26: #{tpu_custom_call.1} parent=1 // pred_check
      _
    $region27: #{tpu_custom_call.1} parent=1 // pred_check_branch
      %57 = sbr.rel (0) target = $region29
    $region28: #{tpu_custom_call.1} parent=1 // pred_region
      %58 = dma.done [#allocation6], 8192
    $region29: #{tpu_custom_call.1} parent=1 // pred_fallthru
      _
    // Predicated region
    $region30: #{tpu_custom_call.1} parent=1 // pred_check
      _
    $region31: #{tpu_custom_call.1} parent=1 // pred_check_branch
      %60 = sbr.rel (0) target = $region33
    $region32: #{tpu_custom_call.1} parent=1 // pred_region
      %61 = dma.done [#allocation6], 8192
    $region33: #{tpu_custom_call.1} parent=1 // pred_fallthru
      _
    %v62 = vld [vmem:[#allocation2] sm:$0xff]
    %v63 = vld [vmem:[#allocation2 + $0x8] sm:$0xff]
    %v64 = vld [vmem:[#allocation2 + $0x10] sm:$0xff]
    %v65 = vld [vmem:[#allocation2 + $0x18] sm:$0xff]
    %v66 = vld [vmem:[#allocation2 + $0x20] sm:$0xff]
    %v67 = vld [vmem:[#allocation2 + $0x28] sm:$0xff]
    %v68 = vld [vmem:[#allocation2 + $0x30] sm:$0xff]
    %v69 = vld [vmem:[#allocation2 + $0x38] sm:$0xff]
    %v70 = vld [vmem:[#allocation2 + $0x40] sm:$0xff]
    %v71 = vld [vmem:[#allocation2 + $0x48] sm:$0xff]
    %v72 = vld [vmem:[#allocation2 + $0x50] sm:$0xff]
    %v73 = vld [vmem:[#allocation2 + $0x58] sm:$0xff]
    %v74 = vld [vmem:[#allocation2 + $0x60] sm:$0xff]
    %v75 = vld [vmem:[#allocation2 + $0x68] sm:$0xff]
    %v76 = vld [vmem:[#allocation2 + $0x70] sm:$0xff]
    %v77 = vld [vmem:[#allocation2 + $0x78] sm:$0xff]
    %v78 = vld [vmem:[#allocation2 + $0x80] sm:$0xff]
    %v79 = vld [vmem:[#allocation2 + $0x88] sm:$0xff]
    %v80 = vld [vmem:[#allocation2 + $0x90] sm:$0xff]
    %v81 = vld [vmem:[#allocation2 + $0x98] sm:$0xff]
    %v82 = vld [vmem:[#allocation2 + $0xa0] sm:$0xff]
    %v83 = vld [vmem:[#allocation2 + $0xa8] sm:$0xff]
    %v84 = vld [vmem:[#allocation2 + $0xb0] sm:$0xff]
    %v85 = vld [vmem:[#allocation2 + $0xb8] sm:$0xff]
    %v86 = vld [vmem:[#allocation2 + $0xc0] sm:$0xff]
    %v87 = vld [vmem:[#allocation2 + $0xc8] sm:$0xff]
    %v88 = vld [vmem:[#allocation2 + $0xd0] sm:$0xff]
    %v89 = vld [vmem:[#allocation2 + $0xd8] sm:$0xff]
    %v90 = vld [vmem:[#allocation2 + $0xe0] sm:$0xff]
    %v91 = vld [vmem:[#allocation2 + $0xe8] sm:$0xff]
    %v92 = vld [vmem:[#allocation2 + $0xf0] sm:$0xff]
    %v93 = vld [vmem:[#allocation2 + $0xf8] sm:$0xff]
    %v94 = vld [vmem:[#allocation5] sm:$0xff]
    %v95 = vld [vmem:[#allocation5 + $0x8] sm:$0xff]
    %v96 = vld [vmem:[#allocation5 + $0x10] sm:$0xff]
    %v97 = vld [vmem:[#allocation5 + $0x18] sm:$0xff]
    %v98 = vld [vmem:[#allocation5 + $0x20] sm:$0xff]
    %v99 = vld [vmem:[#allocation5 + $0x28] sm:$0xff]
    %v100 = vld [vmem:[#allocation5 + $0x30] sm:$0xff]
    %v101 = vld [vmem:[#allocation5 + $0x38] sm:$0xff]
    %v102 = vld [vmem:[#allocation5 + $0x40] sm:$0xff]
    %v103 = vld [vmem:[#allocation5 + $0x48] sm:$0xff]
    %v104 = vld [vmem:[#allocation5 + $0x50] sm:$0xff]
    %v105 = vld [vmem:[#allocation5 + $0x58] sm:$0xff]
    %v106 = vld [vmem:[#allocation5 + $0x60] sm:$0xff]
    %v107 = vld [vmem:[#allocation5 + $0x68] sm:$0xff]
    %v108 = vld [vmem:[#allocation5 + $0x70] sm:$0xff]
    %v109 = vld [vmem:[#allocation5 + $0x78] sm:$0xff]
    %v110 = vld [vmem:[#allocation5 + $0x80] sm:$0xff]
    %v111 = vld [vmem:[#allocation5 + $0x88] sm:$0xff]
    %v112 = vld [vmem:[#allocation5 + $0x90] sm:$0xff]
    %v113 = vld [vmem:[#allocation5 + $0x98] sm:$0xff]
    %v114 = vld [vmem:[#allocation5 + $0xa0] sm:$0xff]
    %v115 = vld [vmem:[#allocation5 + $0xa8] sm:$0xff]
    %v116 = vld [vmem:[#allocation5 + $0xb0] sm:$0xff]
    %v117 = vld [vmem:[#allocation5 + $0xb8] sm:$0xff]
    %v118 = vld [vmem:[#allocation5 + $0xc0] sm:$0xff]
    %v119 = vld [vmem:[#allocation5 + $0xc8] sm:$0xff]
    %v120 = vld [vmem:[#allocation5 + $0xd0] sm:$0xff]
    %v121 = vld [vmem:[#allocation5 + $0xd8] sm:$0xff]
    %v122 = vld [vmem:[#allocation5 + $0xe0] sm:$0xff]
    %v123 = vld [vmem:[#allocation5 + $0xe8] sm:$0xff]
    %v124 = vld [vmem:[#allocation5 + $0xf0] sm:$0xff]
    %v125 = vld [vmem:[#allocation5 + $0xf8] sm:$0xff]
    %v126 = vld [vmem:[#allocation5 + $0x100] sm:$0xff]
    %v127 = vld [vmem:[#allocation5 + $0x108] sm:$0xff]
    %v128 = vld [vmem:[#allocation5 + $0x110] sm:$0xff]
    %v129 = vld [vmem:[#allocation5 + $0x118] sm:$0xff]
    %v130 = vld [vmem:[#allocation5 + $0x120] sm:$0xff]
    %v131 = vld [vmem:[#allocation5 + $0x128] sm:$0xff]
    %v132 = vld [vmem:[#allocation5 + $0x130] sm:$0xff]
    %v133 = vld [vmem:[#allocation5 + $0x138] sm:$0xff]
    %v134 = vld [vmem:[#allocation5 + $0x140] sm:$0xff]
    %v135 = vld [vmem:[#allocation5 + $0x148] sm:$0xff]
    %v136 = vld [vmem:[#allocation5 + $0x150] sm:$0xff]
    %v137 = vld [vmem:[#allocation5 + $0x158] sm:$0xff]
    %v138 = vld [vmem:[#allocation5 + $0x160] sm:$0xff]
    %v139 = vld [vmem:[#allocation5 + $0x168] sm:$0xff]
    %v140 = vld [vmem:[#allocation5 + $0x170] sm:$0xff]
    %v141 = vld [vmem:[#allocation5 + $0x178] sm:$0xff]
    %v142 = vld [vmem:[#allocation5 + $0x180] sm:$0xff]
    %v143 = vld [vmem:[#allocation5 + $0x188] sm:$0xff]
    %v144 = vld [vmem:[#allocation5 + $0x190] sm:$0xff]
    %v145 = vld [vmem:[#allocation5 + $0x198] sm:$0xff]
    %v146 = vld [vmem:[#allocation5 + $0x1a0] sm:$0xff]
    %v147 = vld [vmem:[#allocation5 + $0x1a8] sm:$0xff]
    %v148 = vld [vmem:[#allocation5 + $0x1b0] sm:$0xff]
    %v149 = vld [vmem:[#allocation5 + $0x1b8] sm:$0xff]
    %v150 = vld [vmem:[#allocation5 + $0x1c0] sm:$0xff]
    %v151 = vld [vmem:[#allocation5 + $0x1c8] sm:$0xff]
    %v152 = vld [vmem:[#allocation5 + $0x1d0] sm:$0xff]
    %v153 = vld [vmem:[#allocation5 + $0x1d8] sm:$0xff]
    %v154 = vld [vmem:[#allocation5 + $0x1e0] sm:$0xff]
    %v155 = vld [vmem:[#allocation5 + $0x1e8] sm:$0xff]
    %v156 = vld [vmem:[#allocation5 + $0x1f0] sm:$0xff]
    %v157 = vld [vmem:[#allocation5 + $0x1f8] sm:$0xff]
    %v158 = vld [vmem:[%s2] sm:$0x3]
    %v160 = vlaneseq
    %v161 = vshrl.u32 %v160, 7
    %v162 = vsub.s32 0, %v161
    %v163 = vrot.slane %v158, %v162
    %v164 = vlaneseq
    %v165 = vshrl.u32 %v164, 7
    %v166 = vsub.s32 1, %v165
    %v167 = vrot.slane %v158, %v166
    %v202 = vunpack.c.l.b16 %v62
    %v203 = vunpack.c.h.b16 %v62
    %v204 = vunpack.c.l.b16 %v63
    %v205 = vunpack.c.h.b16 %v63
    %v206 = vunpack.c.l.b16 %v64
    %v207 = vunpack.c.h.b16 %v64
    %v208 = vunpack.c.l.b16 %v65
    %v209 = vunpack.c.h.b16 %v65
    %v210 = vunpack.c.l.b16 %v66
    %v211 = vunpack.c.h.b16 %v66
    %v212 = vunpack.c.l.b16 %v67
    %v213 = vunpack.c.h.b16 %v67
    %v214 = vunpack.c.l.b16 %v68
    %v215 = vunpack.c.h.b16 %v68
    %v216 = vunpack.c.l.b16 %v69
    %v217 = vunpack.c.h.b16 %v69
    %v218 = vunpack.c.l.b16 %v70
    %v219 = vunpack.c.h.b16 %v70
    %v220 = vunpack.c.l.b16 %v71
    %v221 = vunpack.c.h.b16 %v71
    %v222 = vunpack.c.l.b16 %v72
    %v223 = vunpack.c.h.b16 %v72
    %v224 = vunpack.c.l.b16 %v73
    %v225 = vunpack.c.h.b16 %v73
    %v226 = vunpack.c.l.b16 %v74
    %v227 = vunpack.c.h.b16 %v74
    %v228 = vunpack.c.l.b16 %v75
    %v229 = vunpack.c.h.b16 %v75
    %v230 = vunpack.c.l.b16 %v76
    %v231 = vunpack.c.h.b16 %v76
    %v232 = vunpack.c.l.b16 %v77
    %v233 = vunpack.c.h.b16 %v77
    %v234 = vunpack.c.l.b16 %v78
    %v235 = vunpack.c.h.b16 %v78
    %v236 = vunpack.c.l.b16 %v79
    %v237 = vunpack.c.h.b16 %v79
    %v238 = vunpack.c.l.b16 %v80
    %v239 = vunpack.c.h.b16 %v80
    %v240 = vunpack.c.l.b16 %v81
    %v241 = vunpack.c.h.b16 %v81
    %v242 = vunpack.c.l.b16 %v82
    %v243 = vunpack.c.h.b16 %v82
    %v244 = vunpack.c.l.b16 %v83
    %v245 = vunpack.c.h.b16 %v83
    %v246 = vunpack.c.l.b16 %v84
    %v247 = vunpack.c.h.b16 %v84
    %v248 = vunpack.c.l.b16 %v85
    %v249 = vunpack.c.h.b16 %v85
    %v250 = vunpack.c.l.b16 %v86
    %v251 = vunpack.c.h.b16 %v86
    %v252 = vunpack.c.l.b16 %v87
    %v253 = vunpack.c.h.b16 %v87
    %v254 = vunpack.c.l.b16 %v88
    %v255 = vunpack.c.h.b16 %v88
    %v256 = vunpack.c.l.b16 %v89
    %v257 = vunpack.c.h.b16 %v89
    %v258 = vunpack.c.l.b16 %v90
    %v259 = vunpack.c.h.b16 %v90
    %v260 = vunpack.c.l.b16 %v91
    %v261 = vunpack.c.h.b16 %v91
    %v262 = vunpack.c.l.b16 %v92
    %v263 = vunpack.c.h.b16 %v92
    %v264 = vunpack.c.l.b16 %v93
    %v265 = vunpack.c.h.b16 %v93
    %v266 = vpack.c.b16 %v206, %v202
    %v267 = vpack.c.b16 %v207, %v203
    %v268 = vpack.c.b16 %v208, %v204
    %v269 = vpack.c.b16 %v209, %v205
    %v270 = vpack.c.b16 %v214, %v210
    %v271 = vpack.c.b16 %v215, %v211
    %v272 = vpack.c.b16 %v216, %v212
    %v273 = vpack.c.b16 %v217, %v213
    %v274 = vpack.c.b16 %v222, %v218
    %v275 = vpack.c.b16 %v223, %v219
    %v276 = vpack.c.b16 %v224, %v220
    %v277 = vpack.c.b16 %v225, %v221
    %v278 = vpack.c.b16 %v230, %v226
    %v279 = vpack.c.b16 %v231, %v227
    %v280 = vpack.c.b16 %v232, %v228
    %v281 = vpack.c.b16 %v233, %v229
    %v282 = vpack.c.b16 %v238, %v234
    %v283 = vpack.c.b16 %v239, %v235
    %v284 = vpack.c.b16 %v240, %v236
    %v285 = vpack.c.b16 %v241, %v237
    %v286 = vpack.c.b16 %v246, %v242
    %v287 = vpack.c.b16 %v247, %v243
    %v288 = vpack.c.b16 %v248, %v244
    %v289 = vpack.c.b16 %v249, %v245
    %v290 = vpack.c.b16 %v254, %v250
    %v291 = vpack.c.b16 %v255, %v251
    %v292 = vpack.c.b16 %v256, %v252
    %v293 = vpack.c.b16 %v257, %v253
    %v294 = vpack.c.b16 %v262, %v258
    %v295 = vpack.c.b16 %v263, %v259
    %v296 = vpack.c.b16 %v264, %v260
    %v297 = vpack.c.b16 %v265, %v261
    %v394 = vunpack.c.l.b16 %v94
    %v395 = vunpack.c.h.b16 %v94
    %v396 = vunpack.c.l.b16 %v95
    %v397 = vunpack.c.h.b16 %v95
    %v398 = vunpack.c.l.b16 %v96
    %v399 = vunpack.c.h.b16 %v96
    %v400 = vunpack.c.l.b16 %v97
    %v401 = vunpack.c.h.b16 %v97
    %v402 = vunpack.c.l.b16 %v98
    %v403 = vunpack.c.h.b16 %v98
    %v404 = vunpack.c.l.b16 %v99
    %v405 = vunpack.c.h.b16 %v99
    %v406 = vunpack.c.l.b16 %v100
    %v407 = vunpack.c.h.b16 %v100
    %v408 = vunpack.c.l.b16 %v101
    %v409 = vunpack.c.h.b16 %v101
    %v410 = vunpack.c.l.b16 %v102
    %v411 = vunpack.c.h.b16 %v102
    %v412 = vunpack.c.l.b16 %v103
    %v413 = vunpack.c.h.b16 %v103
    %v414 = vunpack.c.l.b16 %v104
    %v415 = vunpack.c.h.b16 %v104
    %v416 = vunpack.c.l.b16 %v105
    %v417 = vunpack.c.h.b16 %v105
    %v418 = vunpack.c.l.b16 %v106
    %v419 = vunpack.c.h.b16 %v106
    %v420 = vunpack.c.l.b16 %v107
    %v421 = vunpack.c.h.b16 %v107
    %v422 = vunpack.c.l.b16 %v108
    %v423 = vunpack.c.h.b16 %v108
    %v424 = vunpack.c.l.b16 %v109
    %v425 = vunpack.c.h.b16 %v109
    %v426 = vunpack.c.l.b16 %v110
    %v427 = vunpack.c.h.b16 %v110
    %v428 = vunpack.c.l.b16 %v111
    %v429 = vunpack.c.h.b16 %v111
    %v430 = vunpack.c.l.b16 %v112
    %v431 = vunpack.c.h.b16 %v112
    %v432 = vunpack.c.l.b16 %v113
    %v433 = vunpack.c.h.b16 %v113
    %v434 = vunpack.c.l.b16 %v114
    %v435 = vunpack.c.h.b16 %v114
    %v436 = vunpack.c.l.b16 %v115
    %v437 = vunpack.c.h.b16 %v115
    %v438 = vunpack.c.l.b16 %v116
    %v439 = vunpack.c.h.b16 %v116
    %v440 = vunpack.c.l.b16 %v117
    %v441 = vunpack.c.h.b16 %v117
    %v442 = vunpack.c.l.b16 %v118
    %v443 = vunpack.c.h.b16 %v118
    %v444 = vunpack.c.l.b16 %v119
    %v445 = vunpack.c.h.b16 %v119
    %v446 = vunpack.c.l.b16 %v120
    %v447 = vunpack.c.h.b16 %v120
    %v448 = vunpack.c.l.b16 %v121
    %v449 = vunpack.c.h.b16 %v121
    %v450 = vunpack.c.l.b16 %v122
    %v451 = vunpack.c.h.b16 %v122
    %v452 = vunpack.c.l.b16 %v123
    %v453 = vunpack.c.h.b16 %v123
    %v454 = vunpack.c.l.b16 %v124
    %v455 = vunpack.c.h.b16 %v124
    %v456 = vunpack.c.l.b16 %v125
    %v457 = vunpack.c.h.b16 %v125
    %v458 = vunpack.c.l.b16 %v126
    %v459 = vunpack.c.h.b16 %v126
    %v460 = vunpack.c.l.b16 %v127
    %v461 = vunpack.c.h.b16 %v127
    %v462 = vunpack.c.l.b16 %v128
    %v463 = vunpack.c.h.b16 %v128
    %v464 = vunpack.c.l.b16 %v129
    %v465 = vunpack.c.h.b16 %v129
    %v466 = vunpack.c.l.b16 %v130
    %v467 = vunpack.c.h.b16 %v130
    %v468 = vunpack.c.l.b16 %v131
    %v469 = vunpack.c.h.b16 %v131
    %v470 = vunpack.c.l.b16 %v132
    %v471 = vunpack.c.h.b16 %v132
    %v472 = vunpack.c.l.b16 %v133
    %v473 = vunpack.c.h.b16 %v133
    %v474 = vunpack.c.l.b16 %v134
    %v475 = vunpack.c.h.b16 %v134
    %v476 = vunpack.c.l.b16 %v135
    %v477 = vunpack.c.h.b16 %v135
    %v478 = vunpack.c.l.b16 %v136
    %v479 = vunpack.c.h.b16 %v136
    %v480 = vunpack.c.l.b16 %v137
    %v481 = vunpack.c.h.b16 %v137
    %v482 = vunpack.c.l.b16 %v138
    %v483 = vunpack.c.h.b16 %v138
    %v484 = vunpack.c.l.b16 %v139
    %v485 = vunpack.c.h.b16 %v139
    %v486 = vunpack.c.l.b16 %v140
    %v487 = vunpack.c.h.b16 %v140
    %v488 = vunpack.c.l.b16 %v141
    %v489 = vunpack.c.h.b16 %v141
    %v490 = vunpack.c.l.b16 %v142
    %v491 = vunpack.c.h.b16 %v142
    %v492 = vunpack.c.l.b16 %v143
    %v493 = vunpack.c.h.b16 %v143
    %v494 = vunpack.c.l.b16 %v144
    %v495 = vunpack.c.h.b16 %v144
    %v496 = vunpack.c.l.b16 %v145
    %v497 = vunpack.c.h.b16 %v145
    %v498 = vunpack.c.l.b16 %v146
    %v499 = vunpack.c.h.b16 %v146
    %v500 = vunpack.c.l.b16 %v147
    %v501 = vunpack.c.h.b16 %v147
    %v502 = vunpack.c.l.b16 %v148
    %v503 = vunpack.c.h.b16 %v148
    %v504 = vunpack.c.l.b16 %v149
    %v505 = vunpack.c.h.b16 %v149
    %v506 = vunpack.c.l.b16 %v150
    %v507 = vunpack.c.h.b16 %v150
    %v508 = vunpack.c.l.b16 %v151
    %v509 = vunpack.c.h.b16 %v151
    %v510 = vunpack.c.l.b16 %v152
    %v511 = vunpack.c.h.b16 %v152
    %v512 = vunpack.c.l.b16 %v153
    %v513 = vunpack.c.h.b16 %v153
    %v514 = vunpack.c.l.b16 %v154
    %v515 = vunpack.c.h.b16 %v154
    %v516 = vunpack.c.l.b16 %v155
    %v517 = vunpack.c.h.b16 %v155
    %v518 = vunpack.c.l.b16 %v156
    %v519 = vunpack.c.h.b16 %v156
    %v520 = vunpack.c.l.b16 %v157
    %v521 = vunpack.c.h.b16 %v157
    %v522 = vpack.c.b16 %v396, %v394
    %v523 = vpack.c.b16 %v397, %v395
    %v524 = vpack.c.b16 %v400, %v398
    %v525 = vpack.c.b16 %v401, %v399
    %v526 = vpack.c.b16 %v404, %v402
    %v527 = vpack.c.b16 %v405, %v403
    %v528 = vpack.c.b16 %v408, %v406
    %v529 = vpack.c.b16 %v409, %v407
    %v530 = vpack.c.b16 %v412, %v410
    %v531 = vpack.c.b16 %v413, %v411
    %v532 = vpack.c.b16 %v416, %v414
    %v533 = vpack.c.b16 %v417, %v415
    %v534 = vpack.c.b16 %v420, %v418
    %v535 = vpack.c.b16 %v421, %v419
    %v536 = vpack.c.b16 %v424, %v422
    %v537 = vpack.c.b16 %v425, %v423
    %v538 = vpack.c.b16 %v428, %v426
    %v539 = vpack.c.b16 %v429, %v427
    %v540 = vpack.c.b16 %v432, %v430
    %v541 = vpack.c.b16 %v433, %v431
    %v542 = vpack.c.b16 %v436, %v434
    %v543 = vpack.c.b16 %v437, %v435
    %v544 = vpack.c.b16 %v440, %v438
    %v545 = vpack.c.b16 %v441, %v439
    %v546 = vpack.c.b16 %v444, %v442
    %v547 = vpack.c.b16 %v445, %v443
    %v548 = vpack.c.b16 %v448, %v446
    %v549 = vpack.c.b16 %v449, %v447
    %v550 = vpack.c.b16 %v452, %v450
    %v551 = vpack.c.b16 %v453, %v451
    %v552 = vpack.c.b16 %v456, %v454
    %v553 = vpack.c.b16 %v457, %v455
    %v554 = vpack.c.b16 %v460, %v458
    %v555 = vpack.c.b16 %v461, %v459
    %v556 = vpack.c.b16 %v464, %v462
    %v557 = vpack.c.b16 %v465, %v463
    %v558 = vpack.c.b16 %v468, %v466
    %v559 = vpack.c.b16 %v469, %v467
    %v560 = vpack.c.b16 %v472, %v470
    %v561 = vpack.c.b16 %v473, %v471
    %v562 = vpack.c.b16 %v476, %v474
    %v563 = vpack.c.b16 %v477, %v475
    %v564 = vpack.c.b16 %v480, %v478
    %v565 = vpack.c.b16 %v481, %v479
    %v566 = vpack.c.b16 %v484, %v482
    %v567 = vpack.c.b16 %v485, %v483
    %v568 = vpack.c.b16 %v488, %v486
    %v569 = vpack.c.b16 %v489, %v487
    %v570 = vpack.c.b16 %v492, %v490
    %v571 = vpack.c.b16 %v493, %v491
    %v572 = vpack.c.b16 %v496, %v494
    %v573 = vpack.c.b16 %v497, %v495
    %v574 = vpack.c.b16 %v500, %v498
    %v575 = vpack.c.b16 %v501, %v499
    %v576 = vpack.c.b16 %v504, %v502
    %v577 = vpack.c.b16 %v505, %v503
    %v578 = vpack.c.b16 %v508, %v506
    %v579 = vpack.c.b16 %v509, %v507
    %v580 = vpack.c.b16 %v512, %v510
    %v581 = vpack.c.b16 %v513, %v511
    %v582 = vpack.c.b16 %v516, %v514
    %v583 = vpack.c.b16 %v517, %v515
    %v584 = vpack.c.b16 %v520, %v518
    %v585 = vpack.c.b16 %v521, %v519
    %650 = vmatprep.subr.bf16.mxu0 %v523
    %651 = vmatpush1.bf16.msra.mxu0 %v522
    %652 = vmatprep.subr.bf16.mxu0 %v525
    %653 = vmatpush1.bf16.msra.mxu0 %v524
    %654 = vmatprep.subr.bf16.mxu0 %v527
    %655 = vmatpush1.bf16.msra.mxu0 %v526
    %656 = vmatprep.subr.bf16.mxu0 %v529
    %657 = vmatpush1.bf16.msra.mxu0 %v528
    %658 = vmatprep.subr.bf16.mxu0 %v531
    %659 = vmatpush1.bf16.msra.mxu0 %v530
    %660 = vmatprep.subr.bf16.mxu0 %v533
    %661 = vmatpush1.bf16.msra.mxu0 %v532
    %662 = vmatprep.subr.bf16.mxu0 %v535
    %663 = vmatpush1.bf16.msra.mxu0 %v534
    %664 = vmatprep.subr.bf16.mxu0 %v537
    %665 = vmatpush1.bf16.msra.mxu0 %v536
    %666 = vmatprep.subr.bf16.mxu0 %v539
    %667 = vmatpush1.bf16.msra.mxu0 %v538
    %668 = vmatprep.subr.bf16.mxu0 %v541
    %669 = vmatpush1.bf16.msra.mxu0 %v540
    %670 = vmatprep.subr.bf16.mxu0 %v543
    %671 = vmatpush1.bf16.msra.mxu0 %v542
    %672 = vmatprep.subr.bf16.mxu0 %v545
    %673 = vmatpush1.bf16.msra.mxu0 %v544
    %674 = vmatprep.subr.bf16.mxu0 %v547
    %675 = vmatpush1.bf16.msra.mxu0 %v546
    %676 = vmatprep.subr.bf16.mxu0 %v549
    %677 = vmatpush1.bf16.msra.mxu0 %v548
    %678 = vmatprep.subr.bf16.mxu0 %v551
    %679 = vmatpush1.bf16.msra.mxu0 %v550
    %680 = vmatprep.subr.bf16.mxu0 %v553
    %681 = vmatpush1.bf16.msra.mxu0 %v552
    %682 = vmatprep.mubr.bf16.mxu0 %v267
    %683 = vmatmul.mubr.bf16.gmra.mrb[0].mxu0 %v266
    %v684 = vpop.f32.mrb[0].mxu0
    %v685 = vadd.f32 %v163, %v684
    %v686 = vpop.f32.mrb[0].mxu0
    %v687 = vadd.f32 %v167, %v686
    %v688 = vpop.f32.mrb[0].mxu0
    %v689 = vadd.f32 %v163, %v688
    %v690 = vpop.f32.mrb[0].mxu0
    %v691 = vadd.f32 %v167, %v690
    %692 = vmatprep.mubr.bf16.mxu0 %v271
    %693 = vmatmul.mubr.bf16.gmra.mrb[0].mxu0 %v270
    %v694 = vpop.f32.mrb[0].mxu0
    %v695 = vadd.f32 %v163, %v694
    %v696 = vpop.f32.mrb[0].mxu0
    %v697 = vadd.f32 %v167, %v696
    %v698 = vpop.f32.mrb[0].mxu0
    %v699 = vadd.f32 %v163, %v698
    %v700 = vpop.f32.mrb[0].mxu0
    %v701 = vadd.f32 %v167, %v700
    %702 = vmatprep.mubr.bf16.mxu0 %v275
    %703 = vmatmul.mubr.bf16.gmra.mrb[0].mxu0 %v274
    %v704 = vpop.f32.mrb[0].mxu0
    %v705 = vadd.f32 %v163, %v704
    %v706 = vpop.f32.mrb[0].mxu0
    %v707 = vadd.f32 %v167, %v706
    %v708 = vpop.f32.mrb[0].mxu0
    %v709 = vadd.f32 %v163, %v708
    %v710 = vpop.f32.mrb[0].mxu0
    %v711 = vadd.f32 %v167, %v710
    %712 = vmatprep.mubr.bf16.mxu0 %v279
    %713 = vmatmul.mubr.bf16.gmra.mrb[0].mxu0 %v278
    %v714 = vpop.f32.mrb[0].mxu0
    %v715 = vadd.f32 %v163, %v714
    %v716 = vpop.f32.mrb[0].mxu0
    %v717 = vadd.f32 %v167, %v716
    %v718 = vpop.f32.mrb[0].mxu0
    %v719 = vadd.f32 %v163, %v718
    %v720 = vpop.f32.mrb[0].mxu0
    %v721 = vadd.f32 %v167, %v720
    %722 = vmatprep.mubr.bf16.mxu0 %v283
    %723 = vmatmul.mubr.bf16.gmra.mrb[0].mxu0 %v282
    %v724 = vpop.f32.mrb[0].mxu0
    %v725 = vadd.f32 %v163, %v724
    %v726 = vpop.f32.mrb[0].mxu0
    %v727 = vadd.f32 %v167, %v726
    %v728 = vpop.f32.mrb[0].mxu0
    %v729 = vadd.f32 %v163, %v728
    %v730 = vpop.f32.mrb[0].mxu0
    %v731 = vadd.f32 %v167, %v730
    %732 = vmatprep.mubr.bf16.mxu0 %v287
    %733 = vmatmul.mubr.bf16.gmra.mrb[0].mxu0 %v286
    %v734 = vpop.f32.mrb[0].mxu0
    %v735 = vadd.f32 %v163, %v734
    %v736 = vpop.f32.mrb[0].mxu0
    %v737 = vadd.f32 %v167, %v736
    %v738 = vpop.f32.mrb[0].mxu0
    %v739 = vadd.f32 %v163, %v738
    %v740 = vpop.f32.mrb[0].mxu0
    %v741 = vadd.f32 %v167, %v740
    %742 = vmatprep.mubr.bf16.mxu0 %v291
    %743 = vmatmul.mubr.bf16.gmra.mrb[0].mxu0 %v290
    %v744 = vpop.f32.mrb[0].mxu0
    %v745 = vadd.f32 %v163, %v744
    %v746 = vpop.f32.mrb[0].mxu0
    %v747 = vadd.f32 %v167, %v746
    %v748 = vpop.f32.mrb[0].mxu0
    %v749 = vadd.f32 %v163, %v748
    %v750 = vpop.f32.mrb[0].mxu0
    %v751 = vadd.f32 %v167, %v750
    %752 = vmatprep.mubr.bf16.mxu0 %v295
    %753 = vmatmul.mubr.bf16.gmra.mrb[0].mxu0 %v294
    %v754 = vpop.f32.mrb[0].mxu0
    %v755 = vadd.f32 %v163, %v754
    %v756 = vpop.f32.mrb[0].mxu0
    %v757 = vadd.f32 %v167, %v756
    %v758 = vpop.f32.mrb[0].mxu0
    %v759 = vadd.f32 %v163, %v758
    %v760 = vpop.f32.mrb[0].mxu0
    %v761 = vadd.f32 %v167, %v760
    %762 = vdwg.mxu0
    %763 = vmatprep.subr.bf16.mxu0 %v555
    %764 = vmatpush1.bf16.msra.mxu0 %v554
    %765 = vmatprep.subr.bf16.mxu0 %v557
    %766 = vmatpush1.bf16.msra.mxu0 %v556
    %767 = vmatprep.subr.bf16.mxu0 %v559
    %768 = vmatpush1.bf16.msra.mxu0 %v558
    %769 = vmatprep.subr.bf16.mxu0 %v561
    %770 = vmatpush1.bf16.msra.mxu0 %v560
    %771 = vmatprep.subr.bf16.mxu0 %v563
    %772 = vmatpush1.bf16.msra.mxu0 %v562
    %773 = vmatprep.subr.bf16.mxu0 %v565
    %774 = vmatpush1.bf16.msra.mxu0 %v564
    %775 = vmatprep.subr.bf16.mxu0 %v567
    %776 = vmatpush1.bf16.msra.mxu0 %v566
    %777 = vmatprep.subr.bf16.mxu0 %v569
    %778 = vmatpush1.bf16.msra.mxu0 %v568
    %779 = vmatprep.subr.bf16.mxu0 %v571
    %780 = vmatpush1.bf16.msra.mxu0 %v570
    %781 = vmatprep.subr.bf16.mxu0 %v573
    %782 = vmatpush1.bf16.msra.mxu0 %v572
    %783 = vmatprep.subr.bf16.mxu0 %v575
    %784 = vmatpush1.bf16.msra.mxu0 %v574
    %785 = vmatprep.subr.bf16.mxu0 %v577
    %786 = vmatpush1.bf16.msra.mxu0 %v576
    %787 = vmatprep.subr.bf16.mxu0 %v579
    %788 = vmatpush1.bf16.msra.mxu0 %v578
    %789 = vmatprep.subr.bf16.mxu0 %v581
    %790 = vmatpush1.bf16.msra.mxu0 %v580
    %791 = vmatprep.subr.bf16.mxu0 %v583
    %792 = vmatpush1.bf16.msra.mxu0 %v582
    %793 = vmatprep.subr.bf16.mxu0 %v585
    %794 = vmatpush1.bf16.msra.mxu0 %v584
    %795 = vmatprep.mubr.bf16.mxu0 %v269
    %796 = vmatmul.mubr.bf16.gmra.mrb[0].mxu0 %v268
    %v797 = vpop.f32.mrb[0].mxu0
    %v798 = vadd.f32 %v685, %v797
    %v799 = vpop.f32.mrb[0].mxu0
    %v800 = vadd.f32 %v687, %v799
    %v801 = vpop.f32.mrb[0].mxu0
    %v802 = vadd.f32 %v689, %v801
    %v803 = vpop.f32.mrb[0].mxu0
    %v804 = vadd.f32 %v691, %v803
    %805 = vmatprep.mubr.bf16.mxu0 %v273
    %806 = vmatmul.mubr.bf16.gmra.mrb[0].mxu0 %v272
    %v807 = vpop.f32.mrb[0].mxu0
    %v808 = vadd.f32 %v695, %v807
    %v809 = vpop.f32.mrb[0].mxu0
    %v810 = vadd.f32 %v697, %v809
    %v811 = vpop.f32.mrb[0].mxu0
    %v812 = vadd.f32 %v699, %v811
    %v813 = vpop.f32.mrb[0].mxu0
    %v814 = vadd.f32 %v701, %v813
    %815 = vmatprep.mubr.bf16.mxu0 %v277
    %816 = vmatmul.mubr.bf16.gmra.mrb[0].mxu0 %v276
    %v817 = vpop.f32.mrb[0].mxu0
    %v818 = vadd.f32 %v705, %v817
    %v819 = vpop.f32.mrb[0].mxu0
    %v820 = vadd.f32 %v707, %v819
    %v821 = vpop.f32.mrb[0].mxu0
    %v822 = vadd.f32 %v709, %v821
    %v823 = vpop.f32.mrb[0].mxu0
    %v824 = vadd.f32 %v711, %v823
    %825 = vmatprep.mubr.bf16.mxu0 %v281
    %826 = vmatmul.mubr.bf16.gmra.mrb[0].mxu0 %v280
    %v827 = vpop.f32.mrb[0].mxu0
    %v828 = vadd.f32 %v715, %v827
    %v829 = vpop.f32.mrb[0].mxu0
    %v830 = vadd.f32 %v717, %v829
    %v831 = vpop.f32.mrb[0].mxu0
    %v832 = vadd.f32 %v719, %v831
    %v833 = vpop.f32.mrb[0].mxu0
    %v834 = vadd.f32 %v721, %v833
    %835 = vmatprep.mubr.bf16.mxu0 %v285
    %836 = vmatmul.mubr.bf16.gmra.mrb[0].mxu0 %v284
    %v837 = vpop.f32.mrb[0].mxu0
    %v838 = vadd.f32 %v725, %v837
    %v839 = vpop.f32.mrb[0].mxu0
    %v840 = vadd.f32 %v727, %v839
    %v841 = vpop.f32.mrb[0].mxu0
    %v842 = vadd.f32 %v729, %v841
    %v843 = vpop.f32.mrb[0].mxu0
    %v844 = vadd.f32 %v731, %v843
    %845 = vmatprep.mubr.bf16.mxu0 %v289
    %846 = vmatmul.mubr.bf16.gmra.mrb[0].mxu0 %v288
    %v847 = vpop.f32.mrb[0].mxu0
    %v848 = vadd.f32 %v735, %v847
    %v849 = vpop.f32.mrb[0].mxu0
    %v850 = vadd.f32 %v737, %v849
    %v851 = vpop.f32.mrb[0].mxu0
    %v852 = vadd.f32 %v739, %v851
    %v853 = vpop.f32.mrb[0].mxu0
    %v854 = vadd.f32 %v741, %v853
    %855 = vmatprep.mubr.bf16.mxu0 %v293
    %856 = vmatmul.mubr.bf16.gmra.mrb[0].mxu0 %v292
    %v857 = vpop.f32.mrb[0].mxu0
    %v858 = vadd.f32 %v745, %v857
    %v859 = vpop.f32.mrb[0].mxu0
    %v860 = vadd.f32 %v747, %v859
    %v861 = vpop.f32.mrb[0].mxu0
    %v862 = vadd.f32 %v749, %v861
    %v863 = vpop.f32.mrb[0].mxu0
    %v864 = vadd.f32 %v751, %v863
    %865 = vmatprep.mubr.bf16.mxu0 %v297
    %866 = vmatmul.mubr.bf16.gmra.mrb[0].mxu0 %v296
    %v867 = vpop.f32.mrb[0].mxu0
    %v868 = vadd.f32 %v755, %v867
    %v869 = vpop.f32.mrb[0].mxu0
    %v870 = vadd.f32 %v757, %v869
    %v871 = vpop.f32.mrb[0].mxu0
    %v872 = vadd.f32 %v759, %v871
    %v873 = vpop.f32.mrb[0].mxu0
    %v874 = vadd.f32 %v761, %v873
    %875 = vdwg.mxu0
    %v876 = vmax.f32 %v798, 0.0
    %v877 = vmax.f32 %v800, 0.0
    %v878 = vmax.f32 %v802, 0.0
    %v879 = vmax.f32 %v804, 0.0
    %v880 = vmax.f32 %v808, 0.0
    %v881 = vmax.f32 %v810, 0.0
    %v882 = vmax.f32 %v812, 0.0
    %v883 = vmax.f32 %v814, 0.0
    %v884 = vmax.f32 %v818, 0.0
    %v885 = vmax.f32 %v820, 0.0
    %v886 = vmax.f32 %v822, 0.0
    %v887 = vmax.f32 %v824, 0.0
    %v888 = vmax.f32 %v828, 0.0
    %v889 = vmax.f32 %v830, 0.0
    %v890 = vmax.f32 %v832, 0.0
    %v891 = vmax.f32 %v834, 0.0
    %v892 = vmax.f32 %v838, 0.0
    %v893 = vmax.f32 %v840, 0.0
    %v894 = vmax.f32 %v842, 0.0
    %v895 = vmax.f32 %v844, 0.0
    %v896 = vmax.f32 %v848, 0.0
    %v897 = vmax.f32 %v850, 0.0
    %v898 = vmax.f32 %v852, 0.0
    %v899 = vmax.f32 %v854, 0.0
    %v900 = vmax.f32 %v858, 0.0
    %v901 = vmax.f32 %v860, 0.0
    %v902 = vmax.f32 %v862, 0.0
    %v903 = vmax.f32 %v864, 0.0
    %v904 = vmax.f32 %v868, 0.0
    %v905 = vmax.f32 %v870, 0.0
    %v906 = vmax.f32 %v872, 0.0
    %v907 = vmax.f32 %v874, 0.0
    %v908 = vpack.c.bf16 %v878, %v876
    %v909 = vpack.c.bf16 %v879, %v877
    %v910 = vpack.c.bf16 %v882, %v880
    %v911 = vpack.c.bf16 %v883, %v881
    %v912 = vpack.c.bf16 %v886, %v884
    %v913 = vpack.c.bf16 %v887, %v885
    %v914 = vpack.c.bf16 %v890, %v888
    %v915 = vpack.c.bf16 %v891, %v889
    %v916 = vpack.c.bf16 %v894, %v892
    %v917 = vpack.c.bf16 %v895, %v893
    %v918 = vpack.c.bf16 %v898, %v896
    %v919 = vpack.c.bf16 %v899, %v897
    %v920 = vpack.c.bf16 %v902, %v900
    %v921 = vpack.c.bf16 %v903, %v901
    %v922 = vpack.c.bf16 %v906, %v904
    %v923 = vpack.c.bf16 %v907, %v905
    %v924 = vld [vmem:[#allocation7] sm:$0xff]
    %v925 = vld [vmem:[#allocation7 + $0x8] sm:$0xff]
    %v926 = vld [vmem:[#allocation7 + $0x10] sm:$0xff]
    %v927 = vld [vmem:[#allocation7 + $0x18] sm:$0xff]
    %v928 = vld [vmem:[#allocation7 + $0x20] sm:$0xff]
    %v929 = vld [vmem:[#allocation7 + $0x28] sm:$0xff]
    %v930 = vld [vmem:[#allocation7 + $0x30] sm:$0xff]
    %v931 = vld [vmem:[#allocation7 + $0x38] sm:$0xff]
    %v932 = vld [vmem:[#allocation7 + $0x40] sm:$0xff]
    %v933 = vld [vmem:[#allocation7 + $0x48] sm:$0xff]
    %v934 = vld [vmem:[#allocation7 + $0x50] sm:$0xff]
    %v935 = vld [vmem:[#allocation7 + $0x58] sm:$0xff]
    %v936 = vld [vmem:[#allocation7 + $0x60] sm:$0xff]
    %v937 = vld [vmem:[#allocation7 + $0x68] sm:$0xff]
    %v938 = vld [vmem:[#allocation7 + $0x70] sm:$0xff]
    %v939 = vld [vmem:[#allocation7 + $0x78] sm:$0xff]
    %v940 = vld [vmem:[#allocation7 + $0x80] sm:$0xff]
    %v941 = vld [vmem:[#allocation7 + $0x88] sm:$0xff]
    %v942 = vld [vmem:[#allocation7 + $0x90] sm:$0xff]
    %v943 = vld [vmem:[#allocation7 + $0x98] sm:$0xff]
    %v944 = vld [vmem:[#allocation7 + $0xa0] sm:$0xff]
    %v945 = vld [vmem:[#allocation7 + $0xa8] sm:$0xff]
    %v946 = vld [vmem:[#allocation7 + $0xb0] sm:$0xff]
    %v947 = vld [vmem:[#allocation7 + $0xb8] sm:$0xff]
    %v948 = vld [vmem:[#allocation7 + $0xc0] sm:$0xff]
    %v949 = vld [vmem:[#allocation7 + $0xc8] sm:$0xff]
    %v950 = vld [vmem:[#allocation7 + $0xd0] sm:$0xff]
    %v951 = vld [vmem:[#allocation7 + $0xd8] sm:$0xff]
    %v952 = vld [vmem:[#allocation7 + $0xe0] sm:$0xff]
    %v953 = vld [vmem:[#allocation7 + $0xe8] sm:$0xff]
    %v954 = vld [vmem:[#allocation7 + $0xf0] sm:$0xff]
    %v955 = vld [vmem:[#allocation7 + $0xf8] sm:$0xff]
    %v956 = vld [vmem:[#allocation7 + $0x100] sm:$0xff]
    %v957 = vld [vmem:[#allocation7 + $0x108] sm:$0xff]
    %v958 = vld [vmem:[#allocation7 + $0x110] sm:$0xff]
    %v959 = vld [vmem:[#allocation7 + $0x118] sm:$0xff]
    %v960 = vld [vmem:[#allocation7 + $0x120] sm:$0xff]
    %v961 = vld [vmem:[#allocation7 + $0x128] sm:$0xff]
    %v962 = vld [vmem:[#allocation7 + $0x130] sm:$0xff]
    %v963 = vld [vmem:[#allocation7 + $0x138] sm:$0xff]
    %v964 = vld [vmem:[#allocation7 + $0x140] sm:$0xff]
    %v965 = vld [vmem:[#allocation7 + $0x148] sm:$0xff]
    %v966 = vld [vmem:[#allocation7 + $0x150] sm:$0xff]
    %v967 = vld [vmem:[#allocation7 + $0x158] sm:$0xff]
    %v968 = vld [vmem:[#allocation7 + $0x160] sm:$0xff]
    %v969 = vld [vmem:[#allocation7 + $0x168] sm:$0xff]
    %v970 = vld [vmem:[#allocation7 + $0x170] sm:$0xff]
    %v971 = vld [vmem:[#allocation7 + $0x178] sm:$0xff]
    %v972 = vld [vmem:[#allocation7 + $0x180] sm:$0xff]
    %v973 = vld [vmem:[#allocation7 + $0x188] sm:$0xff]
    %v974 = vld [vmem:[#allocation7 + $0x190] sm:$0xff]
    %v975 = vld [vmem:[#allocation7 + $0x198] sm:$0xff]
    %v976 = vld [vmem:[#allocation7 + $0x1a0] sm:$0xff]
    %v977 = vld [vmem:[#allocation7 + $0x1a8] sm:$0xff]
    %v978 = vld [vmem:[#allocation7 + $0x1b0] sm:$0xff]
    %v979 = vld [vmem:[#allocation7 + $0x1b8] sm:$0xff]
    %v980 = vld [vmem:[#allocation7 + $0x1c0] sm:$0xff]
    %v981 = vld [vmem:[#allocation7 + $0x1c8] sm:$0xff]
    %v982 = vld [vmem:[#allocation7 + $0x1d0] sm:$0xff]
    %v983 = vld [vmem:[#allocation7 + $0x1d8] sm:$0xff]
    %v984 = vld [vmem:[#allocation7 + $0x1e0] sm:$0xff]
    %v985 = vld [vmem:[#allocation7 + $0x1e8] sm:$0xff]
    %v986 = vld [vmem:[#allocation7 + $0x1f0] sm:$0xff]
    %v987 = vld [vmem:[#allocation7 + $0x1f8] sm:$0xff]
    %v988 = vld [vmem:[%s4] sm:$0xf]
    %v990 = vlaneseq
    %v991 = vshrl.u32 %v990, 7
    %v992 = vsub.s32 0, %v991
    %v993 = vrot.slane %v988, %v992
    %v994 = vlaneseq
    %v995 = vshrl.u32 %v994, 7
    %v996 = vsub.s32 1, %v995
    %v997 = vrot.slane %v988, %v996
    %v998 = vlaneseq
    %v999 = vshrl.u32 %v998, 7
    %v1000 = vsub.s32 2, %v999
    %v1001 = vrot.slane %v988, %v1000
    %v1002 = vlaneseq
    %v1003 = vshrl.u32 %v1002, 7
    %v1004 = vsub.s32 3, %v1003
    %v1005 = vrot.slane %v988, %v1004
    %v1074 = vunpack.c.l.b16 %v924
    %v1075 = vunpack.c.h.b16 %v924
    %v1076 = vunpack.c.l.b16 %v925
    %v1077 = vunpack.c.h.b16 %v925
    %v1078 = vunpack.c.l.b16 %v926
    %v1079 = vunpack.c.h.b16 %v926
    %v1080 = vunpack.c.l.b16 %v927
    %v1081 = vunpack.c.h.b16 %v927
    %v1082 = vunpack.c.l.b16 %v928
    %v1083 = vunpack.c.h.b16 %v928
    %v1084 = vunpack.c.l.b16 %v929
    %v1085 = vunpack.c.h.b16 %v929
    %v1086 = vunpack.c.l.b16 %v930
    %v1087 = vunpack.c.h.b16 %v930
    %v1088 = vunpack.c.l.b16 %v931
    %v1089 = vunpack.c.h.b16 %v931
    %v1090 = vunpack.c.l.b16 %v932
    %v1091 = vunpack.c.h.b16 %v932
    %v1092 = vunpack.c.l.b16 %v933
    %v1093 = vunpack.c.h.b16 %v933
    %v1094 = vunpack.c.l.b16 %v934
    %v1095 = vunpack.c.h.b16 %v934
    %v1096 = vunpack.c.l.b16 %v935
    %v1097 = vunpack.c.h.b16 %v935
    %v1098 = vunpack.c.l.b16 %v936
    %v1099 = vunpack.c.h.b16 %v936
    %v1100 = vunpack.c.l.b16 %v937
    %v1101 = vunpack.c.h.b16 %v937
    %v1102 = vunpack.c.l.b16 %v938
    %v1103 = vunpack.c.h.b16 %v938
    %v1104 = vunpack.c.l.b16 %v939
    %v1105 = vunpack.c.h.b16 %v939
    %v1106 = vunpack.c.l.b16 %v940
    %v1107 = vunpack.c.h.b16 %v940
    %v1108 = vunpack.c.l.b16 %v941
    %v1109 = vunpack.c.h.b16 %v941
    %v1110 = vunpack.c.l.b16 %v942
    %v1111 = vunpack.c.h.b16 %v942
    %v1112 = vunpack.c.l.b16 %v943
    %v1113 = vunpack.c.h.b16 %v943
    %v1114 = vunpack.c.l.b16 %v944
    %v1115 = vunpack.c.h.b16 %v944
    %v1116 = vunpack.c.l.b16 %v945
    %v1117 = vunpack.c.h.b16 %v945
    %v1118 = vunpack.c.l.b16 %v946
    %v1119 = vunpack.c.h.b16 %v946
    %v1120 = vunpack.c.l.b16 %v947
    %v1121 = vunpack.c.h.b16 %v947
    %v1122 = vunpack.c.l.b16 %v948
    %v1123 = vunpack.c.h.b16 %v948
    %v1124 = vunpack.c.l.b16 %v949
    %v1125 = vunpack.c.h.b16 %v949
    %v1126 = vunpack.c.l.b16 %v950
    %v1127 = vunpack.c.h.b16 %v950
    %v1128 = vunpack.c.l.b16 %v951
    %v1129 = vunpack.c.h.b16 %v951
    %v1130 = vunpack.c.l.b16 %v952
    %v1131 = vunpack.c.h.b16 %v952
    %v1132 = vunpack.c.l.b16 %v953
    %v1133 = vunpack.c.h.b16 %v953
    %v1134 = vunpack.c.l.b16 %v954
    %v1135 = vunpack.c.h.b16 %v954
    %v1136 = vunpack.c.l.b16 %v955
    %v1137 = vunpack.c.h.b16 %v955
    %v1138 = vunpack.c.l.b16 %v956
    %v1139 = vunpack.c.h.b16 %v956
    %v1140 = vunpack.c.l.b16 %v957
    %v1141 = vunpack.c.h.b16 %v957
    %v1142 = vunpack.c.l.b16 %v958
    %v1143 = vunpack.c.h.b16 %v958
    %v1144 = vunpack.c.l.b16 %v959
    %v1145 = vunpack.c.h.b16 %v959
    %v1146 = vunpack.c.l.b16 %v960
    %v1147 = vunpack.c.h.b16 %v960
    %v1148 = vunpack.c.l.b16 %v961
    %v1149 = vunpack.c.h.b16 %v961
    %v1150 = vunpack.c.l.b16 %v962
    %v1151 = vunpack.c.h.b16 %v962
    %v1152 = vunpack.c.l.b16 %v963
    %v1153 = vunpack.c.h.b16 %v963
    %v1154 = vunpack.c.l.b16 %v964
    %v1155 = vunpack.c.h.b16 %v964
    %v1156 = vunpack.c.l.b16 %v965
    %v1157 = vunpack.c.h.b16 %v965
    %v1158 = vunpack.c.l.b16 %v966
    %v1159 = vunpack.c.h.b16 %v966
    %v1160 = vunpack.c.l.b16 %v967
    %v1161 = vunpack.c.h.b16 %v967
    %v1162 = vunpack.c.l.b16 %v968
    %v1163 = vunpack.c.h.b16 %v968
    %v1164 = vunpack.c.l.b16 %v969
    %v1165 = vunpack.c.h.b16 %v969
    %v1166 = vunpack.c.l.b16 %v970
    %v1167 = vunpack.c.h.b16 %v970
    %v1168 = vunpack.c.l.b16 %v971
    %v1169 = vunpack.c.h.b16 %v971
    %v1170 = vunpack.c.l.b16 %v972
    %v1171 = vunpack.c.h.b16 %v972
    %v1172 = vunpack.c.l.b16 %v973
    %v1173 = vunpack.c.h.b16 %v973
    %v1174 = vunpack.c.l.b16 %v974
    %v1175 = vunpack.c.h.b16 %v974
    %v1176 = vunpack.c.l.b16 %v975
    %v1177 = vunpack.c.h.b16 %v975
    %v1178 = vunpack.c.l.b16 %v976
    %v1179 = vunpack.c.h.b16 %v976
    %v1180 = vunpack.c.l.b16 %v977
    %v1181 = vunpack.c.h.b16 %v977
    %v1182 = vunpack.c.l.b16 %v978
    %v1183 = vunpack.c.h.b16 %v978
    %v1184 = vunpack.c.l.b16 %v979
    %v1185 = vunpack.c.h.b16 %v979
    %v1186 = vunpack.c.l.b16 %v980
    %v1187 = vunpack.c.h.b16 %v980
    %v1188 = vunpack.c.l.b16 %v981
    %v1189 = vunpack.c.h.b16 %v981
    %v1190 = vunpack.c.l.b16 %v982
    %v1191 = vunpack.c.h.b16 %v982
    %v1192 = vunpack.c.l.b16 %v983
    %v1193 = vunpack.c.h.b16 %v983
    %v1194 = vunpack.c.l.b16 %v984
    %v1195 = vunpack.c.h.b16 %v984
    %v1196 = vunpack.c.l.b16 %v985
    %v1197 = vunpack.c.h.b16 %v985
    %v1198 = vunpack.c.l.b16 %v986
    %v1199 = vunpack.c.h.b16 %v986
    %v1200 = vunpack.c.l.b16 %v987
    %v1201 = vunpack.c.h.b16 %v987
    %v1202 = vpack.c.b16 %v1078, %v1074
    %v1203 = vpack.c.b16 %v1079, %v1075
    %v1204 = vpack.c.b16 %v1080, %v1076
    %v1205 = vpack.c.b16 %v1081, %v1077
    %v1206 = vpack.c.b16 %v1086, %v1082
    %v1207 = vpack.c.b16 %v1087, %v1083
    %v1208 = vpack.c.b16 %v1088, %v1084
    %v1209 = vpack.c.b16 %v1089, %v1085
    %v1210 = vpack.c.b16 %v1094, %v1090
    %v1211 = vpack.c.b16 %v1095, %v1091
    %v1212 = vpack.c.b16 %v1096, %v1092
    %v1213 = vpack.c.b16 %v1097, %v1093
    %v1214 = vpack.c.b16 %v1102, %v1098
    %v1215 = vpack.c.b16 %v1103, %v1099
    %v1216 = vpack.c.b16 %v1104, %v1100
    %v1217 = vpack.c.b16 %v1105, %v1101
    %v1218 = vpack.c.b16 %v1110, %v1106
    %v1219 = vpack.c.b16 %v1111, %v1107
    %v1220 = vpack.c.b16 %v1112, %v1108
    %v1221 = vpack.c.b16 %v1113, %v1109
    %v1222 = vpack.c.b16 %v1118, %v1114
    %v1223 = vpack.c.b16 %v1119, %v1115
    %v1224 = vpack.c.b16 %v1120, %v1116
    %v1225 = vpack.c.b16 %v1121, %v1117
    %v1226 = vpack.c.b16 %v1126, %v1122
    %v1227 = vpack.c.b16 %v1127, %v1123
    %v1228 = vpack.c.b16 %v1128, %v1124
    %v1229 = vpack.c.b16 %v1129, %v1125
    %v1230 = vpack.c.b16 %v1134, %v1130
    %v1231 = vpack.c.b16 %v1135, %v1131
    %v1232 = vpack.c.b16 %v1136, %v1132
    %v1233 = vpack.c.b16 %v1137, %v1133
    %v1234 = vpack.c.b16 %v1142, %v1138
    %v1235 = vpack.c.b16 %v1143, %v1139
    %v1236 = vpack.c.b16 %v1144, %v1140
    %v1237 = vpack.c.b16 %v1145, %v1141
    %v1238 = vpack.c.b16 %v1150, %v1146
    %v1239 = vpack.c.b16 %v1151, %v1147
    %v1240 = vpack.c.b16 %v1152, %v1148
    %v1241 = vpack.c.b16 %v1153, %v1149
    %v1242 = vpack.c.b16 %v1158, %v1154
    %v1243 = vpack.c.b16 %v1159, %v1155
    %v1244 = vpack.c.b16 %v1160, %v1156
    %v1245 = vpack.c.b16 %v1161, %v1157
    %v1246 = vpack.c.b16 %v1166, %v1162
    %v1247 = vpack.c.b16 %v1167, %v1163
    %v1248 = vpack.c.b16 %v1168, %v1164
    %v1249 = vpack.c.b16 %v1169, %v1165
    %v1250 = vpack.c.b16 %v1174, %v1170
    %v1251 = vpack.c.b16 %v1175, %v1171
    %v1252 = vpack.c.b16 %v1176, %v1172
    %v1253 = vpack.c.b16 %v1177, %v1173
    %v1254 = vpack.c.b16 %v1182, %v1178
    %v1255 = vpack.c.b16 %v1183, %v1179
    %v1256 = vpack.c.b16 %v1184, %v1180
    %v1257 = vpack.c.b16 %v1185, %v1181
    %v1258 = vpack.c.b16 %v1190, %v1186
    %v1259 = vpack.c.b16 %v1191, %v1187
    %v1260 = vpack.c.b16 %v1192, %v1188
    %v1261 = vpack.c.b16 %v1193, %v1189
    %v1262 = vpack.c.b16 %v1198, %v1194
    %v1263 = vpack.c.b16 %v1199, %v1195
    %v1264 = vpack.c.b16 %v1200, %v1196
    %v1265 = vpack.c.b16 %v1201, %v1197
    %1330 = vmatprep.subr.bf16.mxu0 %v1203
    %1331 = vmatpush1.bf16.msra.mxu0 %v1202
    %1332 = vmatprep.subr.bf16.mxu0 %v1207
    %1333 = vmatpush1.bf16.msra.mxu0 %v1206
    %1334 = vmatprep.subr.bf16.mxu0 %v1211
    %1335 = vmatpush1.bf16.msra.mxu0 %v1210
    %1336 = vmatprep.subr.bf16.mxu0 %v1215
    %1337 = vmatpush1.bf16.msra.mxu0 %v1214
    %1338 = vmatprep.subr.bf16.mxu0 %v1219
    %1339 = vmatpush1.bf16.msra.mxu0 %v1218
    %1340 = vmatprep.subr.bf16.mxu0 %v1223
    %1341 = vmatpush1.bf16.msra.mxu0 %v1222
    %1342 = vmatprep.subr.bf16.mxu0 %v1227
    %1343 = vmatpush1.bf16.msra.mxu0 %v1226
    %1344 = vmatprep.subr.bf16.mxu0 %v1231
    %1345 = vmatpush1.bf16.msra.mxu0 %v1230
    %1346 = vmatprep.subr.bf16.mxu0 %v1235
    %1347 = vmatpush1.bf16.msra.mxu0 %v1234
    %1348 = vmatprep.subr.bf16.mxu0 %v1239
    %1349 = vmatpush1.bf16.msra.mxu0 %v1238
    %1350 = vmatprep.subr.bf16.mxu0 %v1243
    %1351 = vmatpush1.bf16.msra.mxu0 %v1242
    %1352 = vmatprep.subr.bf16.mxu0 %v1247
    %1353 = vmatpush1.bf16.msra.mxu0 %v1246
    %1354 = vmatprep.subr.bf16.mxu0 %v1251
    %1355 = vmatpush1.bf16.msra.mxu0 %v1250
    %1356 = vmatprep.subr.bf16.mxu0 %v1255
    %1357 = vmatpush1.bf16.msra.mxu0 %v1254
    %1358 = vmatprep.subr.bf16.mxu0 %v1259
    %1359 = vmatpush1.bf16.msra.mxu0 %v1258
    %1360 = vmatprep.subr.bf16.mxu0 %v1263
    %1361 = vmatpush1.bf16.msra.mxu0 %v1262
    %1362 = vmatprep.mubr.bf16.mxu0 %v909
    %1363 = vmatmul.mubr.bf16.gmra.mrb[0].mxu0 %v908
    %v1364 = vpop.f32.mrb[0].mxu0
    %v1365 = vadd.f32 %v993, %v1364
    %v1366 = vpop.f32.mrb[0].mxu0
    %v1367 = vadd.f32 %v997, %v1366
    %v1368 = vpop.f32.mrb[0].mxu0
    %v1369 = vadd.f32 %v993, %v1368
    %v1370 = vpop.f32.mrb[0].mxu0
    %v1371 = vadd.f32 %v997, %v1370
    %1372 = vmatprep.mubr.bf16.mxu0 %v911
    %1373 = vmatmul.mubr.bf16.gmra.mrb[0].mxu0 %v910
    %v1374 = vpop.f32.mrb[0].mxu0
    %v1375 = vadd.f32 %v993, %v1374
    %v1376 = vpop.f32.mrb[0].mxu0
    %v1377 = vadd.f32 %v997, %v1376
    %v1378 = vpop.f32.mrb[0].mxu0
    %v1379 = vadd.f32 %v993, %v1378
    %v1380 = vpop.f32.mrb[0].mxu0
    %v1381 = vadd.f32 %v997, %v1380
    %1382 = vmatprep.mubr.bf16.mxu0 %v913
    %1383 = vmatmul.mubr.bf16.gmra.mrb[0].mxu0 %v912
    %v1384 = vpop.f32.mrb[0].mxu0
    %v1385 = vadd.f32 %v993, %v1384
    %v1386 = vpop.f32.mrb[0].mxu0
    %v1387 = vadd.f32 %v997, %v1386
    %v1388 = vpop.f32.mrb[0].mxu0
    %v1389 = vadd.f32 %v993, %v1388
    %v1390 = vpop.f32.mrb[0].mxu0
    %v1391 = vadd.f32 %v997, %v1390
    %1392 = vmatprep.mubr.bf16.mxu0 %v915
    %1393 = vmatmul.mubr.bf16.gmra.mrb[0].mxu0 %v914
    %v1394 = vpop.f32.mrb[0].mxu0
    %v1395 = vadd.f32 %v993, %v1394
    %v1396 = vpop.f32.mrb[0].mxu0
    %v1397 = vadd.f32 %v997, %v1396
    %v1398 = vpop.f32.mrb[0].mxu0
    %v1399 = vadd.f32 %v993, %v1398
    %v1400 = vpop.f32.mrb[0].mxu0
    %v1401 = vadd.f32 %v997, %v1400
    %1402 = vmatprep.mubr.bf16.mxu0 %v917
    %1403 = vmatmul.mubr.bf16.gmra.mrb[0].mxu0 %v916
    %v1404 = vpop.f32.mrb[0].mxu0
    %v1405 = vadd.f32 %v993, %v1404
    %v1406 = vpop.f32.mrb[0].mxu0
    %v1407 = vadd.f32 %v997, %v1406
    %v1408 = vpop.f32.mrb[0].mxu0
    %v1409 = vadd.f32 %v993, %v1408
    %v1410 = vpop.f32.mrb[0].mxu0
    %v1411 = vadd.f32 %v997, %v1410
    %1412 = vmatprep.mubr.bf16.mxu0 %v919
    %1413 = vmatmul.mubr.bf16.gmra.mrb[0].mxu0 %v918
    %v1414 = vpop.f32.mrb[0].mxu0
    %v1415 = vadd.f32 %v993, %v1414
    %v1416 = vpop.f32.mrb[0].mxu0
    %v1417 = vadd.f32 %v997, %v1416
    %v1418 = vpop.f32.mrb[0].mxu0
    %v1419 = vadd.f32 %v993, %v1418
    %v1420 = vpop.f32.mrb[0].mxu0
    %v1421 = vadd.f32 %v997, %v1420
    %1422 = vmatprep.mubr.bf16.mxu0 %v921
    %1423 = vmatmul.mubr.bf16.gmra.mrb[0].mxu0 %v920
    %v1424 = vpop.f32.mrb[0].mxu0
    %v1425 = vadd.f32 %v993, %v1424
    %v1426 = vpop.f32.mrb[0].mxu0
    %v1427 = vadd.f32 %v997, %v1426
    %v1428 = vpop.f32.mrb[0].mxu0
    %v1429 = vadd.f32 %v993, %v1428
    %v1430 = vpop.f32.mrb[0].mxu0
    %v1431 = vadd.f32 %v997, %v1430
    %1432 = vmatprep.mubr.bf16.mxu0 %v923
    %1433 = vmatmul.mubr.bf16.gmra.mrb[0].mxu0 %v922
    %v1434 = vpop.f32.mrb[0].mxu0
    %v1435 = vadd.f32 %v993, %v1434
    %v1436 = vpop.f32.mrb[0].mxu0
    %v1437 = vadd.f32 %v997, %v1436
    %v1438 = vpop.f32.mrb[0].mxu0
    %v1439 = vadd.f32 %v993, %v1438
    %v1440 = vpop.f32.mrb[0].mxu0
    %v1441 = vadd.f32 %v997, %v1440
    %1442 = vdwg.mxu0
    %1443 = vmatprep.subr.bf16.mxu0 %v1205
    %1444 = vmatpush1.bf16.msra.mxu0 %v1204
    %1445 = vmatprep.subr.bf16.mxu0 %v1209
    %1446 = vmatpush1.bf16.msra.mxu0 %v1208
    %1447 = vmatprep.subr.bf16.mxu0 %v1213
    %1448 = vmatpush1.bf16.msra.mxu0 %v1212
    %1449 = vmatprep.subr.bf16.mxu0 %v1217
    %1450 = vmatpush1.bf16.msra.mxu0 %v1216
    %1451 = vmatprep.subr.bf16.mxu0 %v1221
    %1452 = vmatpush1.bf16.msra.mxu0 %v1220
    %1453 = vmatprep.subr.bf16.mxu0 %v1225
    %1454 = vmatpush1.bf16.msra.mxu0 %v1224
    %1455 = vmatprep.subr.bf16.mxu0 %v1229
    %1456 = vmatpush1.bf16.msra.mxu0 %v1228
    %1457 = vmatprep.subr.bf16.mxu0 %v1233
    %1458 = vmatpush1.bf16.msra.mxu0 %v1232
    %1459 = vmatprep.subr.bf16.mxu0 %v1237
    %1460 = vmatpush1.bf16.msra.mxu0 %v1236
    %1461 = vmatprep.subr.bf16.mxu0 %v1241
    %1462 = vmatpush1.bf16.msra.mxu0 %v1240
    %1463 = vmatprep.subr.bf16.mxu0 %v1245
    %1464 = vmatpush1.bf16.msra.mxu0 %v1244
    %1465 = vmatprep.subr.bf16.mxu0 %v1249
    %1466 = vmatpush1.bf16.msra.mxu0 %v1248
    %1467 = vmatprep.subr.bf16.mxu0 %v1253
    %1468 = vmatpush1.bf16.msra.mxu0 %v1252
    %1469 = vmatprep.subr.bf16.mxu0 %v1257
    %1470 = vmatpush1.bf16.msra.mxu0 %v1256
    %1471 = vmatprep.subr.bf16.mxu0 %v1261
    %1472 = vmatpush1.bf16.msra.mxu0 %v1260
    %1473 = vmatprep.subr.bf16.mxu0 %v1265
    %1474 = vmatpush1.bf16.msra.mxu0 %v1264
    %1475 = vmatprep.mubr.bf16.mxu0 %v909
    %1476 = vmatmul.mubr.bf16.gmra.mrb[0].mxu0 %v908
    %v1477 = vpop.f32.mrb[0].mxu0
    %v1478 = vadd.f32 %v1001, %v1477
    %v1479 = vpop.f32.mrb[0].mxu0
    %v1480 = vadd.f32 %v1005, %v1479
    %v1481 = vpop.f32.mrb[0].mxu0
    %v1482 = vadd.f32 %v1001, %v1481
    %v1483 = vpop.f32.mrb[0].mxu0
    %v1484 = vadd.f32 %v1005, %v1483
    %1485 = vmatprep.mubr.bf16.mxu0 %v911
    %1486 = vmatmul.mubr.bf16.gmra.mrb[0].mxu0 %v910
    %v1487 = vpop.f32.mrb[0].mxu0
    %v1488 = vadd.f32 %v1001, %v1487
    %v1489 = vpop.f32.mrb[0].mxu0
    %v1490 = vadd.f32 %v1005, %v1489
    %v1491 = vpop.f32.mrb[0].mxu0
    %v1492 = vadd.f32 %v1001, %v1491
    %v1493 = vpop.f32.mrb[0].mxu0
    %v1494 = vadd.f32 %v1005, %v1493
    %1495 = vmatprep.mubr.bf16.mxu0 %v913
    %1496 = vmatmul.mubr.bf16.gmra.mrb[0].mxu0 %v912
    %v1497 = vpop.f32.mrb[0].mxu0
    %v1498 = vadd.f32 %v1001, %v1497
    %v1499 = vpop.f32.mrb[0].mxu0
    %v1500 = vadd.f32 %v1005, %v1499
    %v1501 = vpop.f32.mrb[0].mxu0
    %v1502 = vadd.f32 %v1001, %v1501
    %v1503 = vpop.f32.mrb[0].mxu0
    %v1504 = vadd.f32 %v1005, %v1503
    %1505 = vmatprep.mubr.bf16.mxu0 %v915
    %1506 = vmatmul.mubr.bf16.gmra.mrb[0].mxu0 %v914
    %v1507 = vpop.f32.mrb[0].mxu0
    %v1508 = vadd.f32 %v1001, %v1507
    %v1509 = vpop.f32.mrb[0].mxu0
    %v1510 = vadd.f32 %v1005, %v1509
    %v1511 = vpop.f32.mrb[0].mxu0
    %v1512 = vadd.f32 %v1001, %v1511
    %v1513 = vpop.f32.mrb[0].mxu0
    %v1514 = vadd.f32 %v1005, %v1513
    %1515 = vmatprep.mubr.bf16.mxu0 %v917
    %1516 = vmatmul.mubr.bf16.gmra.mrb[0].mxu0 %v916
    %v1517 = vpop.f32.mrb[0].mxu0
    %v1518 = vadd.f32 %v1001, %v1517
    %v1519 = vpop.f32.mrb[0].mxu0
    %v1520 = vadd.f32 %v1005, %v1519
    %v1521 = vpop.f32.mrb[0].mxu0
    %v1522 = vadd.f32 %v1001, %v1521
    %v1523 = vpop.f32.mrb[0].mxu0
    %v1524 = vadd.f32 %v1005, %v1523
    %1525 = vmatprep.mubr.bf16.mxu0 %v919
    %1526 = vmatmul.mubr.bf16.gmra.mrb[0].mxu0 %v918
    %v1527 = vpop.f32.mrb[0].mxu0
    %v1528 = vadd.f32 %v1001, %v1527
    %v1529 = vpop.f32.mrb[0].mxu0
    %v1530 = vadd.f32 %v1005, %v1529
    %v1531 = vpop.f32.mrb[0].mxu0
    %v1532 = vadd.f32 %v1001, %v1531
    %v1533 = vpop.f32.mrb[0].mxu0
    %v1534 = vadd.f32 %v1005, %v1533
    %1535 = vmatprep.mubr.bf16.mxu0 %v921
    %1536 = vmatmul.mubr.bf16.gmra.mrb[0].mxu0 %v920
    %v1537 = vpop.f32.mrb[0].mxu0
    %v1538 = vadd.f32 %v1001, %v1537
    %v1539 = vpop.f32.mrb[0].mxu0
    %v1540 = vadd.f32 %v1005, %v1539
    %v1541 = vpop.f32.mrb[0].mxu0
    %v1542 = vadd.f32 %v1001, %v1541
    %v1543 = vpop.f32.mrb[0].mxu0
    %v1544 = vadd.f32 %v1005, %v1543
    %1545 = vmatprep.mubr.bf16.mxu0 %v923
    %1546 = vmatmul.mubr.bf16.gmra.mrb[0].mxu0 %v922
    %v1547 = vpop.f32.mrb[0].mxu0
    %v1548 = vadd.f32 %v1001, %v1547
    %v1549 = vpop.f32.mrb[0].mxu0
    %v1550 = vadd.f32 %v1005, %v1549
    %v1551 = vpop.f32.mrb[0].mxu0
    %v1552 = vadd.f32 %v1001, %v1551
    %v1553 = vpop.f32.mrb[0].mxu0
    %v1554 = vadd.f32 %v1005, %v1553
    %1555 = vdwg.mxu0
    %v1556 = vmax.f32 %v1365, 0.0
    %v1557 = vmax.f32 %v1367, 0.0
    %v1558 = vmax.f32 %v1478, 0.0
    %v1559 = vmax.f32 %v1480, 0.0
    %v1560 = vmax.f32 %v1369, 0.0
    %v1561 = vmax.f32 %v1371, 0.0
    %v1562 = vmax.f32 %v1482, 0.0
    %v1563 = vmax.f32 %v1484, 0.0
    %v1564 = vmax.f32 %v1375, 0.0
    %v1565 = vmax.f32 %v1377, 0.0
    %v1566 = vmax.f32 %v1488, 0.0
    %v1567 = vmax.f32 %v1490, 0.0
    %v1568 = vmax.f32 %v1379, 0.0
    %v1569 = vmax.f32 %v1381, 0.0
    %v1570 = vmax.f32 %v1492, 0.0
    %v1571 = vmax.f32 %v1494, 0.0
    %v1572 = vmax.f32 %v1385, 0.0
    %v1573 = vmax.f32 %v1387, 0.0
    %v1574 = vmax.f32 %v1498, 0.0
    %v1575 = vmax.f32 %v1500, 0.0
    %v1576 = vmax.f32 %v1389, 0.0
    %v1577 = vmax.f32 %v1391, 0.0
    %v1578 = vmax.f32 %v1502, 0.0
    %v1579 = vmax.f32 %v1504, 0.0
    %v1580 = vmax.f32 %v1395, 0.0
    %v1581 = vmax.f32 %v1397, 0.0
    %v1582 = vmax.f32 %v1508, 0.0
    %v1583 = vmax.f32 %v1510, 0.0
    %v1584 = vmax.f32 %v1399, 0.0
    %v1585 = vmax.f32 %v1401, 0.0
    %v1586 = vmax.f32 %v1512, 0.0
    %v1587 = vmax.f32 %v1514, 0.0
    %v1588 = vmax.f32 %v1405, 0.0
    %v1589 = vmax.f32 %v1407, 0.0
    %v1590 = vmax.f32 %v1518, 0.0
    %v1591 = vmax.f32 %v1520, 0.0
    %v1592 = vmax.f32 %v1409, 0.0
    %v1593 = vmax.f32 %v1411, 0.0
    %v1594 = vmax.f32 %v1522, 0.0
    %v1595 = vmax.f32 %v1524, 0.0
    %v1596 = vmax.f32 %v1415, 0.0
    %v1597 = vmax.f32 %v1417, 0.0
    %v1598 = vmax.f32 %v1528, 0.0
    %v1599 = vmax.f32 %v1530, 0.0
    %v1600 = vmax.f32 %v1419, 0.0
    %v1601 = vmax.f32 %v1421, 0.0
    %v1602 = vmax.f32 %v1532, 0.0
    %v1603 = vmax.f32 %v1534, 0.0
    %v1604 = vmax.f32 %v1425, 0.0
    %v1605 = vmax.f32 %v1427, 0.0
    %v1606 = vmax.f32 %v1538, 0.0
    %v1607 = vmax.f32 %v1540, 0.0
    %v1608 = vmax.f32 %v1429, 0.0
    %v1609 = vmax.f32 %v1431, 0.0
    %v1610 = vmax.f32 %v1542, 0.0
    %v1611 = vmax.f32 %v1544, 0.0
    %v1612 = vmax.f32 %v1435, 0.0
    %v1613 = vmax.f32 %v1437, 0.0
    %v1614 = vmax.f32 %v1548, 0.0
    %v1615 = vmax.f32 %v1550, 0.0
    %v1616 = vmax.f32 %v1439, 0.0
    %v1617 = vmax.f32 %v1441, 0.0
    %v1618 = vmax.f32 %v1552, 0.0
    %v1619 = vmax.f32 %v1554, 0.0
    %v1620 = vpack.c.bf16 %v1560, %v1556
    %v1621 = vpack.c.bf16 %v1561, %v1557
    %v1622 = vpack.c.bf16 %v1562, %v1558
    %v1623 = vpack.c.bf16 %v1563, %v1559
    %v1624 = vpack.c.bf16 %v1568, %v1564
    %v1625 = vpack.c.bf16 %v1569, %v1565
    %v1626 = vpack.c.bf16 %v1570, %v1566
    %v1627 = vpack.c.bf16 %v1571, %v1567
    %v1628 = vpack.c.bf16 %v1576, %v1572
    %v1629 = vpack.c.bf16 %v1577, %v1573
    %v1630 = vpack.c.bf16 %v1578, %v1574
    %v1631 = vpack.c.bf16 %v1579, %v1575
    %v1632 = vpack.c.bf16 %v1584, %v1580
    %v1633 = vpack.c.bf16 %v1585, %v1581
    %v1634 = vpack.c.bf16 %v1586, %v1582
    %v1635 = vpack.c.bf16 %v1587, %v1583
    %v1636 = vpack.c.bf16 %v1592, %v1588
    %v1637 = vpack.c.bf16 %v1593, %v1589
    %v1638 = vpack.c.bf16 %v1594, %v1590
    %v1639 = vpack.c.bf16 %v1595, %v1591
    %v1640 = vpack.c.bf16 %v1600, %v1596
    %v1641 = vpack.c.bf16 %v1601, %v1597
    %v1642 = vpack.c.bf16 %v1602, %v1598
    %v1643 = vpack.c.bf16 %v1603, %v1599
    %v1644 = vpack.c.bf16 %v1608, %v1604
    %v1645 = vpack.c.bf16 %v1609, %v1605
    %v1646 = vpack.c.bf16 %v1610, %v1606
    %v1647 = vpack.c.bf16 %v1611, %v1607
    %v1648 = vpack.c.bf16 %v1616, %v1612
    %v1649 = vpack.c.bf16 %v1617, %v1613
    %v1650 = vpack.c.bf16 %v1618, %v1614
    %v1651 = vpack.c.bf16 %v1619, %v1615
    %v1684 = vunpack.c.l.b16 %v1620
    %v1685 = vunpack.c.l.b16 %v1621
    %v1686 = vunpack.c.l.b16 %v1622
    %v1687 = vunpack.c.l.b16 %v1623
    %v1688 = vunpack.c.h.b16 %v1620
    %v1689 = vunpack.c.h.b16 %v1621
    %v1690 = vunpack.c.h.b16 %v1622
    %v1691 = vunpack.c.h.b16 %v1623
    %v1692 = vunpack.c.l.b16 %v1624
    %v1693 = vunpack.c.l.b16 %v1625
    %v1694 = vunpack.c.l.b16 %v1626
    %v1695 = vunpack.c.l.b16 %v1627
    %v1696 = vunpack.c.h.b16 %v1624
    %v1697 = vunpack.c.h.b16 %v1625
    %v1698 = vunpack.c.h.b16 %v1626
    %v1699 = vunpack.c.h.b16 %v1627
    %v1700 = vunpack.c.l.b16 %v1628
    %v1701 = vunpack.c.l.b16 %v1629
    %v1702 = vunpack.c.l.b16 %v1630
    %v1703 = vunpack.c.l.b16 %v1631
    %v1704 = vunpack.c.h.b16 %v1628
    %v1705 = vunpack.c.h.b16 %v1629
    %v1706 = vunpack.c.h.b16 %v1630
    %v1707 = vunpack.c.h.b16 %v1631
    %v1708 = vunpack.c.l.b16 %v1632
    %v1709 = vunpack.c.l.b16 %v1633
    %v1710 = vunpack.c.l.b16 %v1634
    %v1711 = vunpack.c.l.b16 %v1635
    %v1712 = vunpack.c.h.b16 %v1632
    %v1713 = vunpack.c.h.b16 %v1633
    %v1714 = vunpack.c.h.b16 %v1634
    %v1715 = vunpack.c.h.b16 %v1635
    %v1716 = vunpack.c.l.b16 %v1636
    %v1717 = vunpack.c.l.b16 %v1637
    %v1718 = vunpack.c.l.b16 %v1638
    %v1719 = vunpack.c.l.b16 %v1639
    %v1720 = vunpack.c.h.b16 %v1636
    %v1721 = vunpack.c.h.b16 %v1637
    %v1722 = vunpack.c.h.b16 %v1638
    %v1723 = vunpack.c.h.b16 %v1639
    %v1724 = vunpack.c.l.b16 %v1640
    %v1725 = vunpack.c.l.b16 %v1641
    %v1726 = vunpack.c.l.b16 %v1642
    %v1727 = vunpack.c.l.b16 %v1643
    %v1728 = vunpack.c.h.b16 %v1640
    %v1729 = vunpack.c.h.b16 %v1641
    %v1730 = vunpack.c.h.b16 %v1642
    %v1731 = vunpack.c.h.b16 %v1643
    %v1732 = vunpack.c.l.b16 %v1644
    %v1733 = vunpack.c.l.b16 %v1645
    %v1734 = vunpack.c.l.b16 %v1646
    %v1735 = vunpack.c.l.b16 %v1647
    %v1736 = vunpack.c.h.b16 %v1644
    %v1737 = vunpack.c.h.b16 %v1645
    %v1738 = vunpack.c.h.b16 %v1646
    %v1739 = vunpack.c.h.b16 %v1647
    %v1740 = vunpack.c.l.b16 %v1648
    %v1741 = vunpack.c.l.b16 %v1649
    %v1742 = vunpack.c.l.b16 %v1650
    %v1743 = vunpack.c.l.b16 %v1651
    %v1744 = vunpack.c.h.b16 %v1648
    %v1745 = vunpack.c.h.b16 %v1649
    %v1746 = vunpack.c.h.b16 %v1650
    %v1747 = vunpack.c.h.b16 %v1651
    %v1748 = vpack.c.b16 %v1685, %v1684
    %v1749 = vpack.c.b16 %v1687, %v1686
    %v1750 = vpack.c.b16 %v1689, %v1688
    %v1751 = vpack.c.b16 %v1691, %v1690
    %v1752 = vpack.c.b16 %v1693, %v1692
    %v1753 = vpack.c.b16 %v1695, %v1694
    %v1754 = vpack.c.b16 %v1697, %v1696
    %v1755 = vpack.c.b16 %v1699, %v1698
    %v1756 = vpack.c.b16 %v1701, %v1700
    %v1757 = vpack.c.b16 %v1703, %v1702
    %v1758 = vpack.c.b16 %v1705, %v1704
    %v1759 = vpack.c.b16 %v1707, %v1706
    %v1760 = vpack.c.b16 %v1709, %v1708
    %v1761 = vpack.c.b16 %v1711, %v1710
    %v1762 = vpack.c.b16 %v1713, %v1712
    %v1763 = vpack.c.b16 %v1715, %v1714
    %v1764 = vpack.c.b16 %v1717, %v1716
    %v1765 = vpack.c.b16 %v1719, %v1718
    %v1766 = vpack.c.b16 %v1721, %v1720
    %v1767 = vpack.c.b16 %v1723, %v1722
    %v1768 = vpack.c.b16 %v1725, %v1724
    %v1769 = vpack.c.b16 %v1727, %v1726
    %v1770 = vpack.c.b16 %v1729, %v1728
    %v1771 = vpack.c.b16 %v1731, %v1730
    %v1772 = vpack.c.b16 %v1733, %v1732
    %v1773 = vpack.c.b16 %v1735, %v1734
    %v1774 = vpack.c.b16 %v1737, %v1736
    %v1775 = vpack.c.b16 %v1739, %v1738
    %v1776 = vpack.c.b16 %v1741, %v1740
    %v1777 = vpack.c.b16 %v1743, %v1742
    %v1778 = vpack.c.b16 %v1745, %v1744
    %v1779 = vpack.c.b16 %v1747, %v1746
    %1812 = vst [vmem:[#allocation8] sm:$0xff] %v1748
    %1813 = vst [vmem:[#allocation8 + $0x8] sm:$0xff] %v1749
    %1814 = vst [vmem:[#allocation8 + $0x10] sm:$0xff] %v1750
    %1815 = vst [vmem:[#allocation8 + $0x18] sm:$0xff] %v1751
    %1816 = vst [vmem:[#allocation8 + $0x20] sm:$0xff] %v1752
    %1817 = vst [vmem:[#allocation8 + $0x28] sm:$0xff] %v1753
    %1818 = vst [vmem:[#allocation8 + $0x30] sm:$0xff] %v1754
    %1819 = vst [vmem:[#allocation8 + $0x38] sm:$0xff] %v1755
    %1820 = vst [vmem:[#allocation8 + $0x40] sm:$0xff] %v1756
    %1821 = vst [vmem:[#allocation8 + $0x48] sm:$0xff] %v1757
    %1822 = vst [vmem:[#allocation8 + $0x50] sm:$0xff] %v1758
    %1823 = vst [vmem:[#allocation8 + $0x58] sm:$0xff] %v1759
    %1824 = vst [vmem:[#allocation8 + $0x60] sm:$0xff] %v1760
    %1825 = vst [vmem:[#allocation8 + $0x68] sm:$0xff] %v1761
    %1826 = vst [vmem:[#allocation8 + $0x70] sm:$0xff] %v1762
    %1827 = vst [vmem:[#allocation8 + $0x78] sm:$0xff] %v1763
    %1828 = vst [vmem:[#allocation8 + $0x80] sm:$0xff] %v1764
    %1829 = vst [vmem:[#allocation8 + $0x88] sm:$0xff] %v1765
    %1830 = vst [vmem:[#allocation8 + $0x90] sm:$0xff] %v1766
    %1831 = vst [vmem:[#allocation8 + $0x98] sm:$0xff] %v1767
    %1832 = vst [vmem:[#allocation8 + $0xa0] sm:$0xff] %v1768
    %1833 = vst [vmem:[#allocation8 + $0xa8] sm:$0xff] %v1769
    %1834 = vst [vmem:[#allocation8 + $0xb0] sm:$0xff] %v1770
    %1835 = vst [vmem:[#allocation8 + $0xb8] sm:$0xff] %v1771
    %1836 = vst [vmem:[#allocation8 + $0xc0] sm:$0xff] %v1772
    %1837 = vst [vmem:[#allocation8 + $0xc8] sm:$0xff] %v1773
    %1838 = vst [vmem:[#allocation8 + $0xd0] sm:$0xff] %v1774
    %1839 = vst [vmem:[#allocation8 + $0xd8] sm:$0xff] %v1775
    %1840 = vst [vmem:[#allocation8 + $0xe0] sm:$0xff] %v1776
    %1841 = vst [vmem:[#allocation8 + $0xe8] sm:$0xff] %v1777
    %1842 = vst [vmem:[#allocation8 + $0xf0] sm:$0xff] %v1778
    %1843 = vst [vmem:[#allocation8 + $0xf8] sm:$0xff] %v1779
    // Predicated region
    $region34: #{tpu_custom_call.1} parent=1 // pred_check
      _
    $region35: #{tpu_custom_call.1} parent=1 // pred_check_branch
      %1845 = sbr.rel (0) target = $region37
    $region36: #{tpu_custom_call.1} parent=1 // pred_region
      %s1847 = ssub.s32 4096, 4096
      %1848 = vsyncadd [#allocation4], %s1847
      %s1849 = sshll.u32 [#allocation8], 4
      %s1850 = int_to_ptr.vmem [resolvable:$true] %s1849
      %1855 = dma.vmem_to_hbm [thread:$0]  %s1850, 4096, %s5, [#allocation4], 256, 256, 16
    $region37: #{tpu_custom_call.1} parent=1 // pred_fallthru
      _
    // Predicated region
    $region38: #{tpu_custom_call.1} parent=1 // pred_check
      _
    $region39: #{tpu_custom_call.1} parent=1 // pred_check_branch
      %1857 = sbr.rel (0) target = $region41
    $region40: #{tpu_custom_call.1} parent=1 // pred_region
      %1858 = dma.done [#allocation4], 4096
    $region41: #{tpu_custom_call.1} parent=1 // pred_fallthru
      _
    %1859 = vsyncpa [#allocation3], 1
    %1860 = vsyncpa [#allocation6], 1
    %1861 = vsyncpa [#allocation4], 1

// kernel: tpu_custom_call.1
$region0: #{tpu_custom_call.1}
  #allocation0 [shape = 'u32[]', space=smem, size = 0x4, offset = 0x4, fixed_abs, tag = 'smem constant byte address 0x4 - core index']
  #allocation1 [shape = 'u32[144,128]{1,0:T(1,128)}', space=vmem, size = 0x12000, scoped, tag = 'internal scratch']
  %s0 = inlined_call_operand.hbm [shape: bf16[128,512], index: 0, kind: input, shape index: {}]
  %s1 = inlined_call_operand.hbm [shape: bf16[512,256], index: 1, kind: input, shape index: {}]
  %s2 = inlined_call_operand.vmem [shape: f32[1,256], index: 2, kind: input, shape index: {}]
  %s3 = inlined_call_operand.hbm [shape: bf16[256,512], index: 3, kind: input, shape index: {}]
  %s4 = inlined_call_operand.vmem [shape: f32[1,512], index: 4, kind: input, shape index: {}]
  %s5 = inlined_call_operand.hbm [shape: bf16[128,512], index: 5, kind: output, shape index: {}]
  %s6 = sld [smem:[#allocation0]]
  $region42: #{tpu_custom_call.1} parent=0
    _
  %s8 = ssub.s32 1, %s6
  %s9 = scalar_select 0, %s8, %s6
  $region1: #{tpu_custom_call.1} parent=0
    #allocation2 [shape = 'u8[131072]{0}', space=vmem, size = 0x20000, scoped, tag = 'input window, operand 0, single buffered']
    #allocation3 [shape = 's32[1]{0}', space=sflag, size = 0x4, scoped, tag = 'scoped memory for tpu_custom_call.1']
    #allocation4 [shape = 's32[1]{0}', space=sflag, size = 0x4, scoped, tag = 'scoped memory for tpu_custom_call.1']
    #allocation5 [shape = 'u8[262144]{0}', space=vmem, size = 0x40000, scoped, tag = 'input window, operand 1, single buffered']
    #allocation6 [shape = 's32[1]{0}', space=sflag, size = 0x4, scoped, tag = 'scoped memory for tpu_custom_call.1']
    #allocation7 [shape = 'u8[262144]{0}', space=vmem, size = 0x40000, scoped, tag = 'input window, operand 3, single buffered']
    #allocation8 [shape = 'u8[131072]{0}', space=vmem, size = 0x20000, scoped, tag = 'output window, operand 0, single buffered']
    %10 = vsyncpa [#allocation3], 0
    %11 = vsyncpa [#allocation6], 0
    %12 = vsyncpa [#allocation4], 0
    // Predicated region
    $region2: #{tpu_custom_call.1} parent=1 // pred_check
      _
    $region3: #{tpu_custom_call.1} parent=1 // pred_check_branch
      %14 = sbr.rel (0) target = $region5
    $region4: #{tpu_custom_call.1} parent=1 // pred_region
      %s16 = ssub.s32 4096, 4096
      %17 = vsyncadd [#allocation3], %s16
      %s18 = sshll.u32 [#allocation2], 4
      %s19 = int_to_ptr.vmem [resolvable:$true] %s18
      %24 = dma.hbm_to_vmem [thread:$0]  %s0, 4096, %s19, [#allocation3], 256, 256, 16
    $region5: #{tpu_custom_call.1} parent=1 // pred_fallthru
      _
    // Predicated region
    $region6: #{tpu_custom_call.1} parent=1 // pred_check
      _
    $region7: #{tpu_custom_call.1} parent=1 // pred_check_branch
      %26 = sbr.rel (0) target = $region9
    $region8: #{tpu_custom_call.1} parent=1 // pred_region
      %s28 = ssub.s32 8192, 8192
      %29 = vsyncadd [#allocation6], %s28
      %s30 = sshll.u32 [#allocation5], 4
      %s31 = int_to_ptr.vmem [resolvable:$true] %s30
      %36 = dma.hbm_to_vmem [thread:$0]  %s1, 8192, %s31, [#allocation6], 128, 128, 8
    $region9: #{tpu_custom_call.1} parent=1 // pred_fallthru
      _
    // Predicated region
    $region10: #{tpu_custom_call.1} parent=1 // pred_check
      _
    $region11: #{tpu_custom_call.1} parent=1 // pred_check_branch
      %38 = sbr.rel (0) target = $region13
    $region12: #{tpu_custom_call.1} parent=1 // pred_region
      _
    $region13: #{tpu_custom_call.1} parent=1 // pred_fallthru
      _
    // Predicated region
    $region14: #{tpu_custom_call.1} parent=1 // pred_check
      _
    $region15: #{tpu_custom_call.1} parent=1 // pred_check_branch
      %40 = sbr.rel (0) target = $region17
    $region16: #{tpu_custom_call.1} parent=1 // pred_region
      %s42 = ssub.s32 8192, 8192
      %43 = vsyncadd [#allocation6], %s42
      %s44 = sshll.u32 [#allocation7], 4
      %s45 = int_to_ptr.vmem [resolvable:$true] %s44
      %50 = dma.hbm_to_vmem [thread:$0]  %s3, 8192, %s45, [#allocation6], 256, 256, 16
    $region17: #{tpu_custom_call.1} parent=1 // pred_fallthru
      _
    // Predicated region
    $region18: #{tpu_custom_call.1} parent=1 // pred_check
      _
    $region19: #{tpu_custom_call.1} parent=1 // pred_check_branch
      %52 = sbr.rel (0) target = $region21
    $region20: #{tpu_custom_call.1} parent=1 // pred_region
      _
    $region21: #{tpu_custom_call.1} parent=1 // pred_fallthru
      _
    // Predicated region
    $region22: #{tpu_custom_call.1} parent=1 // pred_check
      _
    $region23: #{tpu_custom_call.1} parent=1 // pred_check_branch
      %54 = sbr.rel (0) target = $region25
    $region24: #{tpu_custom_call.1} parent=1 // pred_region
      %55 = dma.done [#allocation3], 4096
    $region25: #{tpu_custom_call.1} parent=1 // pred_fallthru
      _
    // Predicated region
    $region26: #{tpu_custom_call.1} parent=1 // pred_check
      _
    $region27: #{tpu_custom_call.1} parent=1 // pred_check_branch
      %57 = sbr.rel (0) target = $region29
    $region28: #{tpu_custom_call.1} parent=1 // pred_region
      %58 = dma.done [#allocation6], 8192
    $region29: #{tpu_custom_call.1} parent=1 // pred_fallthru
      _
    // Predicated region
    $region30: #{tpu_custom_call.1} parent=1 // pred_check
      _
    $region31: #{tpu_custom_call.1} parent=1 // pred_check_branch
      %60 = sbr.rel (0) target = $region33
    $region32: #{tpu_custom_call.1} parent=1 // pred_region
      %61 = dma.done [#allocation6], 8192
    $region33: #{tpu_custom_call.1} parent=1 // pred_fallthru
      _
    %v62 = vld [vmem:[#allocation2] sm:$0xff]
    %v63 = vld [vmem:[#allocation2 + $0x8] sm:$0xff]
    %v64 = vld [vmem:[#allocation2 + $0x10] sm:$0xff]
    %v65 = vld [vmem:[#allocation2 + $0x18] sm:$0xff]
    %v66 = vld [vmem:[#allocation2 + $0x20] sm:$0xff]
    %v67 = vld [vmem:[#allocation2 + $0x28] sm:$0xff]
    %v68 = vld [vmem:[#allocation2 + $0x30] sm:$0xff]
    %v69 = vld [vmem:[#allocation2 + $0x38] sm:$0xff]
    %v70 = vld [vmem:[#allocation2 + $0x40] sm:$0xff]
    %v71 = vld [vmem:[#allocation2 + $0x48] sm:$0xff]
    %v72 = vld [vmem:[#allocation2 + $0x50] sm:$0xff]
    %v73 = vld [vmem:[#allocation2 + $0x58] sm:$0xff]
    %v74 = vld [vmem:[#allocation2 + $0x60] sm:$0xff]
    %v75 = vld [vmem:[#allocation2 + $0x68] sm:$0xff]
    %v76 = vld [vmem:[#allocation2 + $0x70] sm:$0xff]
    %v77 = vld [vmem:[#allocation2 + $0x78] sm:$0xff]
    %v78 = vld [vmem:[#allocation2 + $0x80] sm:$0xff]
    %v79 = vld [vmem:[#allocation2 + $0x88] sm:$0xff]
    %v80 = vld [vmem:[#allocation2 + $0x90] sm:$0xff]
    %v81 = vld [vmem:[#allocation2 + $0x98] sm:$0xff]
    %v82 = vld [vmem:[#allocation2 + $0xa0] sm:$0xff]
    %v83 = vld [vmem:[#allocation2 + $0xa8] sm:$0xff]
    %v84 = vld [vmem:[#allocation2 + $0xb0] sm:$0xff]
    %v85 = vld [vmem:[#allocation2 + $0xb8] sm:$0xff]
    %v86 = vld [vmem:[#allocation2 + $0xc0] sm:$0xff]
    %v87 = vld [vmem:[#allocation2 + $0xc8] sm:$0xff]
    %v88 = vld [vmem:[#allocation2 + $0xd0] sm:$0xff]
    %v89 = vld [vmem:[#allocation2 + $0xd8] sm:$0xff]
    %v90 = vld [vmem:[#allocation2 + $0xe0] sm:$0xff]
    %v91 = vld [vmem:[#allocation2 + $0xe8] sm:$0xff]
    %v92 = vld [vmem:[#allocation2 + $0xf0] sm:$0xff]
    %v93 = vld [vmem:[#allocation2 + $0xf8] sm:$0xff]
    %v94 = vld [vmem:[#allocation5] sm:$0xff]
    %v95 = vld [vmem:[#allocation5 + $0x8] sm:$0xff]
    %v96 = vld [vmem:[#allocation5 + $0x10] sm:$0xff]
    %v97 = vld [vmem:[#allocation5 + $0x18] sm:$0xff]
    %v98 = vld [vmem:[#allocation5 + $0x20] sm:$0xff]
    %v99 = vld [vmem:[#allocation5 + $0x28] sm:$0xff]
    %v100 = vld [vmem:[#allocation5 + $0x30] sm:$0xff]
    %v101 = vld [vmem:[#allocation5 + $0x38] sm:$0xff]
    %v102 = vld [vmem:[#allocation5 + $0x40] sm:$0xff]
    %v103 = vld [vmem:[#allocation5 + $0x48] sm:$0xff]
    %v104 = vld [vmem:[#allocation5 + $0x50] sm:$0xff]
    %v105 = vld [vmem:[#allocation5 + $0x58] sm:$0xff]
    %v106 = vld [vmem:[#allocation5 + $0x60] sm:$0xff]
    %v107 = vld [vmem:[#allocation5 + $0x68] sm:$0xff]
    %v108 = vld [vmem:[#allocation5 + $0x70] sm:$0xff]
    %v109 = vld [vmem:[#allocation5 + $0x78] sm:$0xff]
    %v110 = vld [vmem:[#allocation5 + $0x80] sm:$0xff]
    %v111 = vld [vmem:[#allocation5 + $0x88] sm:$0xff]
    %v112 = vld [vmem:[#allocation5 + $0x90] sm:$0xff]
    %v113 = vld [vmem:[#allocation5 + $0x98] sm:$0xff]
    %v114 = vld [vmem:[#allocation5 + $0xa0] sm:$0xff]
    %v115 = vld [vmem:[#allocation5 + $0xa8] sm:$0xff]
    %v116 = vld [vmem:[#allocation5 + $0xb0] sm:$0xff]
    %v117 = vld [vmem:[#allocation5 + $0xb8] sm:$0xff]
    %v118 = vld [vmem:[#allocation5 + $0xc0] sm:$0xff]
    %v119 = vld [vmem:[#allocation5 + $0xc8] sm:$0xff]
    %v120 = vld [vmem:[#allocation5 + $0xd0] sm:$0xff]
    %v121 = vld [vmem:[#allocation5 + $0xd8] sm:$0xff]
    %v122 = vld [vmem:[#allocation5 + $0xe0] sm:$0xff]
    %v123 = vld [vmem:[#allocation5 + $0xe8] sm:$0xff]
    %v124 = vld [vmem:[#allocation5 + $0xf0] sm:$0xff]
    %v125 = vld [vmem:[#allocation5 + $0xf8] sm:$0xff]
    %v126 = vld [vmem:[#allocation5 + $0x100] sm:$0xff]
    %v127 = vld [vmem:[#allocation5 + $0x108] sm:$0xff]
    %v128 = vld [vmem:[#allocation5 + $0x110] sm:$0xff]
    %v129 = vld [vmem:[#allocation5 + $0x118] sm:$0xff]
    %v130 = vld [vmem:[#allocation5 + $0x120] sm:$0xff]
    %v131 = vld [vmem:[#allocation5 + $0x128] sm:$0xff]
    %v132 = vld [vmem:[#allocation5 + $0x130] sm:$0xff]
    %v133 = vld [vmem:[#allocation5 + $0x138] sm:$0xff]
    %v134 = vld [vmem:[#allocation5 + $0x140] sm:$0xff]
    %v135 = vld [vmem:[#allocation5 + $0x148] sm:$0xff]
    %v136 = vld [vmem:[#allocation5 + $0x150] sm:$0xff]
    %v137 = vld [vmem:[#allocation5 + $0x158] sm:$0xff]
    %v138 = vld [vmem:[#allocation5 + $0x160] sm:$0xff]
    %v139 = vld [vmem:[#allocation5 + $0x168] sm:$0xff]
    %v140 = vld [vmem:[#allocation5 + $0x170] sm:$0xff]
    %v141 = vld [vmem:[#allocation5 + $0x178] sm:$0xff]
    %v142 = vld [vmem:[#allocation5 + $0x180] sm:$0xff]
    %v143 = vld [vmem:[#allocation5 + $0x188] sm:$0xff]
    %v144 = vld [vmem:[#allocation5 + $0x190] sm:$0xff]
    %v145 = vld [vmem:[#allocation5 + $0x198] sm:$0xff]
    %v146 = vld [vmem:[#allocation5 + $0x1a0] sm:$0xff]
    %v147 = vld [vmem:[#allocation5 + $0x1a8] sm:$0xff]
    %v148 = vld [vmem:[#allocation5 + $0x1b0] sm:$0xff]
    %v149 = vld [vmem:[#allocation5 + $0x1b8] sm:$0xff]
    %v150 = vld [vmem:[#allocation5 + $0x1c0] sm:$0xff]
    %v151 = vld [vmem:[#allocation5 + $0x1c8] sm:$0xff]
    %v152 = vld [vmem:[#allocation5 + $0x1d0] sm:$0xff]
    %v153 = vld [vmem:[#allocation5 + $0x1d8] sm:$0xff]
    %v154 = vld [vmem:[#allocation5 + $0x1e0] sm:$0xff]
    %v155 = vld [vmem:[#allocation5 + $0x1e8] sm:$0xff]
    %v156 = vld [vmem:[#allocation5 + $0x1f0] sm:$0xff]
    %v157 = vld [vmem:[#allocation5 + $0x1f8] sm:$0xff]
    %v158 = vld [vmem:[%s2] sm:$0x3]
    %v160 = vlaneseq
    %v161 = vshrl.u32 %v160, 7
    %v162 = vsub.s32 0, %v161
    %v163 = vrot.slane %v158, %v162
    %v164 = vlaneseq
    %v165 = vshrl.u32 %v164, 7
    %v166 = vsub.s32 1, %v165
    %v167 = vrot.slane %v158, %v166
    %v202 = vunpack.c.l.b16 %v62
    %v203 = vunpack.c.h.b16 %v62
    %v204 = vunpack.c.l.b16 %v63
    %v205 = vunpack.c.h.b16 %v63
    %v206 = vunpack.c.l.b16 %v64
    %v207 = vunpack.c.h.b16 %v64
    %v208 = vunpack.c.l.b16 %v65
    %v209 = vunpack.c.h.b16 %v65
    %v210 = vunpack.c.l.b16 %v66
    %v211 = vunpack.c.h.b16 %v66
    %v212 = vunpack.c.l.b16 %v67
    %v213 = vunpack.c.h.b16 %v67
    %v214 = vunpack.c.l.b16 %v68
    %v215 = vunpack.c.h.b16 %v68
    %v216 = vunpack.c.l.b16 %v69
    %v217 = vunpack.c.h.b16 %v69
    %v218 = vunpack.c.l.b16 %v70
    %v219 = vunpack.c.h.b16 %v70
    %v220 = vunpack.c.l.b16 %v71
    %v221 = vunpack.c.h.b16 %v71
    %v222 = vunpack.c.l.b16 %v72
    %v223 = vunpack.c.h.b16 %v72
    %v224 = vunpack.c.l.b16 %v73
    %v225 = vunpack.c.h.b16 %v73
    %v226 = vunpack.c.l.b16 %v74
    %v227 = vunpack.c.h.b16 %v74
    %v228 = vunpack.c.l.b16 %v75
    %v229 = vunpack.c.h.b16 %v75
    %v230 = vunpack.c.l.b16 %v76
    %v231 = vunpack.c.h.b16 %v76
    %v232 = vunpack.c.l.b16 %v77
    %v233 = vunpack.c.h.b16 %v77
    %v234 = vunpack.c.l.b16 %v78
    %v235 = vunpack.c.h.b16 %v78
    %v236 = vunpack.c.l.b16 %v79
    %v237 = vunpack.c.h.b16 %v79
    %v238 = vunpack.c.l.b16 %v80
    %v239 = vunpack.c.h.b16 %v80
    %v240 = vunpack.c.l.b16 %v81
    %v241 = vunpack.c.h.b16 %v81
    %v242 = vunpack.c.l.b16 %v82
    %v243 = vunpack.c.h.b16 %v82
    %v244 = vunpack.c.l.b16 %v83
    %v245 = vunpack.c.h.b16 %v83
    %v246 = vunpack.c.l.b16 %v84
    %v247 = vunpack.c.h.b16 %v84
    %v248 = vunpack.c.l.b16 %v85
    %v249 = vunpack.c.h.b16 %v85
    %v250 = vunpack.c.l.b16 %v86
    %v251 = vunpack.c.h.b16 %v86
    %v252 = vunpack.c.l.b16 %v87
    %v253 = vunpack.c.h.b16 %v87
    %v254 = vunpack.c.l.b16 %v88
    %v255 = vunpack.c.h.b16 %v88
    %v256 = vunpack.c.l.b16 %v89
    %v257 = vunpack.c.h.b16 %v89
    %v258 = vunpack.c.l.b16 %v90
    %v259 = vunpack.c.h.b16 %v90
    %v260 = vunpack.c.l.b16 %v91
    %v261 = vunpack.c.h.b16 %v91
    %v262 = vunpack.c.l.b16 %v92
    %v263 = vunpack.c.h.b16 %v92
    %v264 = vunpack.c.l.b16 %v93
    %v265 = vunpack.c.h.b16 %v93
    %v266 = vpack.c.b16 %v206, %v202
    %v267 = vpack.c.b16 %v207, %v203
    %v268 = vpack.c.b16 %v208, %v204
    %v269 = vpack.c.b16 %v209, %v205
    %v270 = vpack.c.b16 %v214, %v210
    %v271 = vpack.c.b16 %v215, %v211
    %v272 = vpack.c.b16 %v216, %v212
    %v273 = vpack.c.b16 %v217, %v213
    %v274 = vpack.c.b16 %v222, %v218
    %v275 = vpack.c.b16 %v223, %v219
    %v276 = vpack.c.b16 %v224, %v220
    %v277 = vpack.c.b16 %v225, %v221
    %v278 = vpack.c.b16 %v230, %v226
    %v279 = vpack.c.b16 %v231, %v227
    %v280 = vpack.c.b16 %v232, %v228
    %v281 = vpack.c.b16 %v233, %v229
    %v282 = vpack.c.b16 %v238, %v234
    %v283 = vpack.c.b16 %v239, %v235
    %v284 = vpack.c.b16 %v240, %v236
    %v285 = vpack.c.b16 %v241, %v237
    %v286 = vpack.c.b16 %v246, %v242
    %v287 = vpack.c.b16 %v247, %v243
    %v288 = vpack.c.b16 %v248, %v244
    %v289 = vpack.c.b16 %v249, %v245
    %v290 = vpack.c.b16 %v254, %v250
    %v291 = vpack.c.b16 %v255, %v251
    %v292 = vpack.c.b16 %v256, %v252
    %v293 = vpack.c.b16 %v257, %v253
    %v294 = vpack.c.b16 %v262, %v258
    %v295 = vpack.c.b16 %v263, %v259
    %v296 = vpack.c.b16 %v264, %v260
    %v297 = vpack.c.b16 %v265, %v261
    %v394 = vunpack.c.l.b16 %v94
    %v395 = vunpack.c.h.b16 %v94
    %v396 = vunpack.c.l.b16 %v95
    %v397 = vunpack.c.h.b16 %v95
    %v398 = vunpack.c.l.b16 %v96
    %v399 = vunpack.c.h.b16 %v96
    %v400 = vunpack.c.l.b16 %v97
    %v401 = vunpack.c.h.b16 %v97
    %v402 = vunpack.c.l.b16 %v98
    %v403 = vunpack.c.h.b16 %v98
    %v404 = vunpack.c.l.b16 %v99
    %v405 = vunpack.c.h.b16 %v99
    %v406 = vunpack.c.l.b16 %v100
    %v407 = vunpack.c.h.b16 %v100
    %v408 = vunpack.c.l.b16 %v101
    %v409 = vunpack.c.h.b16 %v101
    %v410 = vunpack.c.l.b16 %v102
    %v411 = vunpack.c.h.b16 %v102
    %v412 = vunpack.c.l.b16 %v103
    %v413 = vunpack.c.h.b16 %v103
    %v414 = vunpack.c.l.b16 %v104
    %v415 = vunpack.c.h.b16 %v104
    %v416 = vunpack.c.l.b16 %v105
    %v417 = vunpack.c.h.b16 %v105
    %v418 = vunpack.c.l.b16 %v106
    %v419 = vunpack.c.h.b16 %v106
    %v420 = vunpack.c.l.b16 %v107
    %v421 = vunpack.c.h.b16 %v107
    %v422 = vunpack.c.l.b16 %v108
    %v423 = vunpack.c.h.b16 %v108
    %v424 = vunpack.c.l.b16 %v109
    %v425 = vunpack.c.h.b16 %v109
    %v426 = vunpack.c.l.b16 %v110
    %v427 = vunpack.c.h.b16 %v110
    %v428 = vunpack.c.l.b16 %v111
    %v429 = vunpack.c.h.b16 %v111
    %v430 = vunpack.c.l.b16 %v112
    %v431 = vunpack.c.h.b16 %v112
    %v432 = vunpack.c.l.b16 %v113
    %v433 = vunpack.c.h.b16 %v113
    %v434 = vunpack.c.l.b16 %v114
    %v435 = vunpack.c.h.b16 %v114
    %v436 = vunpack.c.l.b16 %v115
    %v437 = vunpack.c.h.b16 %v115
    %v438 = vunpack.c.l.b16 %v116
    %v439 = vunpack.c.h.b16 %v116
    %v440 = vunpack.c.l.b16 %v117
    %v441 = vunpack.c.h.b16 %v117
    %v442 = vunpack.c.l.b16 %v118
    %v443 = vunpack.c.h.b16 %v118
    %v444 = vunpack.c.l.b16 %v119
    %v445 = vunpack.c.h.b16 %v119
    %v446 = vunpack.c.l.b16 %v120
    %v447 = vunpack.c.h.b16 %v120
    %v448 = vunpack.c.l.b16 %v121
    %v449 = vunpack.c.h.b16 %v121
    %v450 = vunpack.c.l.b16 %v122
    %v451 = vunpack.c.h.b16 %v122
    %v452 = vunpack.c.l.b16 %v123
    %v453 = vunpack.c.h.b16 %v123
    %v454 = vunpack.c.l.b16 %v124
    %v455 = vunpack.c.h.b16 %v124
    %v456 = vunpack.c.l.b16 %v125
    %v457 = vunpack.c.h.b16 %v125
    %v458 = vunpack.c.l.b16 %v126
    %v459 = vunpack.c.h.b16 %v126
    %v460 = vunpack.c.l.b16 %v127
    %v461 = vunpack.c.h.b16 %v127
    %v462 = vunpack.c.l.b16 %v128
    %v463 = vunpack.c.h.b16 %v128
    %v464 = vunpack.c.l.b16 %v129
    %v465 = vunpack.c.h.b16 %v129
    %v466 = vunpack.c.l.b16 %v130
    %v467 = vunpack.c.h.b16 %v130
    %v468 = vunpack.c.l.b16 %v131
    %v469 = vunpack.c.h.b16 %v131
    %v470 = vunpack.c.l.b16 %v132
    %v471 = vunpack.c.h.b16 %v132
    %v472 = vunpack.c.l.b16 %v133
    %v473 = vunpack.c.h.b16 %v133
    %v474 = vunpack.c.l.b16 %v134
    %v475 = vunpack.c.h.b16 %v134
    %v476 = vunpack.c.l.b16 %v135
    %v477 = vunpack.c.h.b16 %v135
    %v478 = vunpack.c.l.b16 %v136
    %v479 = vunpack.c.h.b16 %v136
    %v480 = vunpack.c.l.b16 %v137
    %v481 = vunpack.c.h.b16 %v137
    %v482 = vunpack.c.l.b16 %v138
    %v483 = vunpack.c.h.b16 %v138
    %v484 = vunpack.c.l.b16 %v139
    %v485 = vunpack.c.h.b16 %v139
    %v486 = vunpack.c.l.b16 %v140
    %v487 = vunpack.c.h.b16 %v140
    %v488 = vunpack.c.l.b16 %v141
    %v489 = vunpack.c.h.b16 %v141
    %v490 = vunpack.c.l.b16 %v142
    %v491 = vunpack.c.h.b16 %v142
    %v492 = vunpack.c.l.b16 %v143
    %v493 = vunpack.c.h.b16 %v143
    %v494 = vunpack.c.l.b16 %v144
    %v495 = vunpack.c.h.b16 %v144
    %v496 = vunpack.c.l.b16 %v145
    %v497 = vunpack.c.h.b16 %v145
    %v498 = vunpack.c.l.b16 %v146
    %v499 = vunpack.c.h.b16 %v146
    %v500 = vunpack.c.l.b16 %v147
    %v501 = vunpack.c.h.b16 %v147
    %v502 = vunpack.c.l.b16 %v148
    %v503 = vunpack.c.h.b16 %v148
    %v504 = vunpack.c.l.b16 %v149
    %v505 = vunpack.c.h.b16 %v149
    %v506 = vunpack.c.l.b16 %v150
    %v507 = vunpack.c.h.b16 %v150
    %v508 = vunpack.c.l.b16 %v151
    %v509 = vunpack.c.h.b16 %v151
    %v510 = vunpack.c.l.b16 %v152
    %v511 = vunpack.c.h.b16 %v152
    %v512 = vunpack.c.l.b16 %v153
    %v513 = vunpack.c.h.b16 %v153
    %v514 = vunpack.c.l.b16 %v154
    %v515 = vunpack.c.h.b16 %v154
    %v516 = vunpack.c.l.b16 %v155
    %v517 = vunpack.c.h.b16 %v155
    %v518 = vunpack.c.l.b16 %v156
    %v519 = vunpack.c.h.b16 %v156
    %v520 = vunpack.c.l.b16 %v157
    %v521 = vunpack.c.h.b16 %v157
    %v522 = vpack.c.b16 %v396, %v394
    %v523 = vpack.c.b16 %v397, %v395
    %v524 = vpack.c.b16 %v400, %v398
    %v525 = vpack.c.b16 %v401, %v399
    %v526 = vpack.c.b16 %v404, %v402
    %v527 = vpack.c.b16 %v405, %v403
    %v528 = vpack.c.b16 %v408, %v406
    %v529 = vpack.c.b16 %v409, %v407
    %v530 = vpack.c.b16 %v412, %v410
    %v531 = vpack.c.b16 %v413, %v411
    %v532 = vpack.c.b16 %v416, %v414
    %v533 = vpack.c.b16 %v417, %v415
    %v534 = vpack.c.b16 %v420, %v418
    %v535 = vpack.c.b16 %v421, %v419
    %v536 = vpack.c.b16 %v424, %v422
    %v537 = vpack.c.b16 %v425, %v423
    %v538 = vpack.c.b16 %v428, %v426
    %v539 = vpack.c.b16 %v429, %v427
    %v540 = vpack.c.b16 %v432, %v430
    %v541 = vpack.c.b16 %v433, %v431
    %v542 = vpack.c.b16 %v436, %v434
    %v543 = vpack.c.b16 %v437, %v435
    %v544 = vpack.c.b16 %v440, %v438
    %v545 = vpack.c.b16 %v441, %v439
    %v546 = vpack.c.b16 %v444, %v442
    %v547 = vpack.c.b16 %v445, %v443
    %v548 = vpack.c.b16 %v448, %v446
    %v549 = vpack.c.b16 %v449, %v447
    %v550 = vpack.c.b16 %v452, %v450
    %v551 = vpack.c.b16 %v453, %v451
    %v552 = vpack.c.b16 %v456, %v454
    %v553 = vpack.c.b16 %v457, %v455
    %v554 = vpack.c.b16 %v460, %v458
    %v555 = vpack.c.b16 %v461, %v459
    %v556 = vpack.c.b16 %v464, %v462
    %v557 = vpack.c.b16 %v465, %v463
    %v558 = vpack.c.b16 %v468, %v466
    %v559 = vpack.c.b16 %v469, %v467
    %v560 = vpack.c.b16 %v472, %v470
    %v561 = vpack.c.b16 %v473, %v471
    %v562 = vpack.c.b16 %v476, %v474
    %v563 = vpack.c.b16 %v477, %v475
    %v564 = vpack.c.b16 %v480, %v478
    %v565 = vpack.c.b16 %v481, %v479
    %v566 = vpack.c.b16 %v484, %v482
    %v567 = vpack.c.b16 %v485, %v483
    %v568 = vpack.c.b16 %v488, %v486
    %v569 = vpack.c.b16 %v489, %v487
    %v570 = vpack.c.b16 %v492, %v490
    %v571 = vpack.c.b16 %v493, %v491
    %v572 = vpack.c.b16 %v496, %v494
    %v573 = vpack.c.b16 %v497, %v495
    %v574 = vpack.c.b16 %v500, %v498
    %v575 = vpack.c.b16 %v501, %v499
    %v576 = vpack.c.b16 %v504, %v502
    %v577 = vpack.c.b16 %v505, %v503
    %v578 = vpack.c.b16 %v508, %v506
    %v579 = vpack.c.b16 %v509, %v507
    %v580 = vpack.c.b16 %v512, %v510
    %v581 = vpack.c.b16 %v513, %v511
    %v582 = vpack.c.b16 %v516, %v514
    %v583 = vpack.c.b16 %v517, %v515
    %v584 = vpack.c.b16 %v520, %v518
    %v585 = vpack.c.b16 %v521, %v519
    %650 = vmatprep.subr.bf16.mxu0 %v523
    %651 = vmatpush1.bf16.msra.mxu0 %v522
    %652 = vmatprep.subr.bf16.mxu0 %v525
    %653 = vmatpush1.bf16.msra.mxu0 %v524
    %654 = vmatprep.subr.bf16.mxu0 %v527
    %655 = vmatpush1.bf16.msra.mxu0 %v526
    %656 = vmatprep.subr.bf16.mxu0 %v529
    %657 = vmatpush1.bf16.msra.mxu0 %v528
    %658 = vmatprep.subr.bf16.mxu0 %v531
    %659 = vmatpush1.bf16.msra.mxu0 %v530
    %660 = vmatprep.subr.bf16.mxu0 %v533
    %661 = vmatpush1.bf16.msra.mxu0 %v532
    %662 = vmatprep.subr.bf16.mxu0 %v535
    %663 = vmatpush1.bf16.msra.mxu0 %v534
    %664 = vmatprep.subr.bf16.mxu0 %v537
    %665 = vmatpush1.bf16.msra.mxu0 %v536
    %666 = vmatprep.subr.bf16.mxu0 %v539
    %667 = vmatpush1.bf16.msra.mxu0 %v538
    %668 = vmatprep.subr.bf16.mxu0 %v541
    %669 = vmatpush1.bf16.msra.mxu0 %v540
    %670 = vmatprep.subr.bf16.mxu0 %v543
    %671 = vmatpush1.bf16.msra.mxu0 %v542
    %672 = vmatprep.subr.bf16.mxu0 %v545
    %673 = vmatpush1.bf16.msra.mxu0 %v544
    %674 = vmatprep.subr.bf16.mxu0 %v547
    %675 = vmatpush1.bf16.msra.mxu0 %v546
    %676 = vmatprep.subr.bf16.mxu0 %v549
    %677 = vmatpush1.bf16.msra.mxu0 %v548
    %678 = vmatprep.subr.bf16.mxu0 %v551
    %679 = vmatpush1.bf16.msra.mxu0 %v550
    %680 = vmatprep.subr.bf16.mxu0 %v553
    %681 = vmatpush1.bf16.msra.mxu0 %v552
    %682 = vmatprep.mubr.bf16.mxu0 %v267
    %683 = vmatmul.mubr.bf16.gmra.mrb[0].mxu0 %v266
    %v684 = vpop.f32.mrb[0].mxu0
    %v685 = vadd.f32 %v163, %v684
    %v686 = vpop.f32.mrb[0].mxu0
    %v687 = vadd.f32 %v167, %v686
    %v688 = vpop.f32.mrb[0].mxu0
    %v689 = vadd.f32 %v163, %v688
    %v690 = vpop.f32.mrb[0].mxu0
    %v691 = vadd.f32 %v167, %v690
    %692 = vmatprep.mubr.bf16.mxu0 %v271
    %693 = vmatmul.mubr.bf16.gmra.mrb[0].mxu0 %v270
    %v694 = vpop.f32.mrb[0].mxu0
    %v695 = vadd.f32 %v163, %v694
    %v696 = vpop.f32.mrb[0].mxu0
    %v697 = vadd.f32 %v167, %v696
    %v698 = vpop.f32.mrb[0].mxu0
    %v699 = vadd.f32 %v163, %v698
    %v700 = vpop.f32.mrb[0].mxu0
    %v701 = vadd.f32 %v167, %v700
    %702 = vmatprep.mubr.bf16.mxu0 %v275
    %703 = vmatmul.mubr.bf16.gmra.mrb[0].mxu0 %v274
    %v704 = vpop.f32.mrb[0].mxu0
    %v705 = vadd.f32 %v163, %v704
    %v706 = vpop.f32.mrb[0].mxu0
    %v707 = vadd.f32 %v167, %v706
    %v708 = vpop.f32.mrb[0].mxu0
    %v709 = vadd.f32 %v163, %v708
    %v710 = vpop.f32.mrb[0].mxu0
    %v711 = vadd.f32 %v167, %v710
    %712 = vmatprep.mubr.bf16.mxu0 %v279
    %713 = vmatmul.mubr.bf16.gmra.mrb[0].mxu0 %v278
    %v714 = vpop.f32.mrb[0].mxu0
    %v715 = vadd.f32 %v163, %v714
    %v716 = vpop.f32.mrb[0].mxu0
    %v717 = vadd.f32 %v167, %v716
    %v718 = vpop.f32.mrb[0].mxu0
    %v719 = vadd.f32 %v163, %v718
    %v720 = vpop.f32.mrb[0].mxu0
    %v721 = vadd.f32 %v167, %v720
    %722 = vmatprep.mubr.bf16.mxu0 %v283
    %723 = vmatmul.mubr.bf16.gmra.mrb[0].mxu0 %v282
    %v724 = vpop.f32.mrb[0].mxu0
    %v725 = vadd.f32 %v163, %v724
    %v726 = vpop.f32.mrb[0].mxu0
    %v727 = vadd.f32 %v167, %v726
    %v728 = vpop.f32.mrb[0].mxu0
    %v729 = vadd.f32 %v163, %v728
    %v730 = vpop.f32.mrb[0].mxu0
    %v731 = vadd.f32 %v167, %v730
    %732 = vmatprep.mubr.bf16.mxu0 %v287
    %733 = vmatmul.mubr.bf16.gmra.mrb[0].mxu0 %v286
    %v734 = vpop.f32.mrb[0].mxu0
    %v735 = vadd.f32 %v163, %v734
    %v736 = vpop.f32.mrb[0].mxu0
    %v737 = vadd.f32 %v167, %v736
    %v738 = vpop.f32.mrb[0].mxu0
    %v739 = vadd.f32 %v163, %v738
    %v740 = vpop.f32.mrb[0].mxu0
    %v741 = vadd.f32 %v167, %v740
    %742 = vmatprep.mubr.bf16.mxu0 %v291
    %743 = vmatmul.mubr.bf16.gmra.mrb[0].mxu0 %v290
    %v744 = vpop.f32.mrb[0].mxu0
    %v745 = vadd.f32 %v163, %v744
    %v746 = vpop.f32.mrb[0].mxu0
    %v747 = vadd.f32 %v167, %v746
    %v748 = vpop.f32.mrb[0].mxu0
    %v749 = vadd.f32 %v163, %v748
    %v750 = vpop.f32.mrb[0].mxu0
    %v751 = vadd.f32 %v167, %v750
    %752 = vmatprep.mubr.bf16.mxu0 %v295
    %753 = vmatmul.mubr.bf16.gmra.mrb[0].mxu0 %v294
    %v754 = vpop.f32.mrb[0].mxu0
    %v755 = vadd.f32 %v163, %v754
    %v756 = vpop.f32.mrb[0].mxu0
    %v757 = vadd.f32 %v167, %v756
    %v758 = vpop.f32.mrb[0].mxu0
    %v759 = vadd.f32 %v163, %v758
    %v760 = vpop.f32.mrb[0].mxu0
    %v761 = vadd.f32 %v167, %v760
    %762 = vdwg.mxu0
    %763 = vmatprep.subr.bf16.mxu0 %v555
    %764 = vmatpush1.bf16.msra.mxu0 %v554
    %765 = vmatprep.subr.bf16.mxu0 %v557
    %766 = vmatpush1.bf16.msra.mxu0 %v556
    %767 = vmatprep.subr.bf16.mxu0 %v559
    %768 = vmatpush1.bf16.msra.mxu0 %v558
    %769 = vmatprep.subr.bf16.mxu0 %v561
    %770 = vmatpush1.bf16.msra.mxu0 %v560
    %771 = vmatprep.subr.bf16.mxu0 %v563
    %772 = vmatpush1.bf16.msra.mxu0 %v562
    %773 = vmatprep.subr.bf16.mxu0 %v565
    %774 = vmatpush1.bf16.msra.mxu0 %v564
    %775 = vmatprep.subr.bf16.mxu0 %v567
    %776 = vmatpush1.bf16.msra.mxu0 %v566
    %777 = vmatprep.subr.bf16.mxu0 %v569
    %778 = vmatpush1.bf16.msra.mxu0 %v568
    %779 = vmatprep.subr.bf16.mxu0 %v571
    %780 = vmatpush1.bf16.msra.mxu0 %v570
    %781 = vmatprep.subr.bf16.mxu0 %v573
    %782 = vmatpush1.bf16.msra.mxu0 %v572
    %783 = vmatprep.subr.bf16.mxu0 %v575
    %784 = vmatpush1.bf16.msra.mxu0 %v574
    %785 = vmatprep.subr.bf16.mxu0 %v577
    %786 = vmatpush1.bf16.msra.mxu0 %v576
    %787 = vmatprep.subr.bf16.mxu0 %v579
    %788 = vmatpush1.bf16.msra.mxu0 %v578
    %789 = vmatprep.subr.bf16.mxu0 %v581
    %790 = vmatpush1.bf16.msra.mxu0 %v580
    %791 = vmatprep.subr.bf16.mxu0 %v583
    %792 = vmatpush1.bf16.msra.mxu0 %v582
    %793 = vmatprep.subr.bf16.mxu0 %v585
    %794 = vmatpush1.bf16.msra.mxu0 %v584
    %795 = vmatprep.mubr.bf16.mxu0 %v269
    %796 = vmatmul.mubr.bf16.gmra.mrb[0].mxu0 %v268
    %v797 = vpop.f32.mrb[0].mxu0
    %v798 = vadd.f32 %v685, %v797
    %v799 = vpop.f32.mrb[0].mxu0
    %v800 = vadd.f32 %v687, %v799
    %v801 = vpop.f32.mrb[0].mxu0
    %v802 = vadd.f32 %v689, %v801
    %v803 = vpop.f32.mrb[0].mxu0
    %v804 = vadd.f32 %v691, %v803
    %805 = vmatprep.mubr.bf16.mxu0 %v273
    %806 = vmatmul.mubr.bf16.gmra.mrb[0].mxu0 %v272
    %v807 = vpop.f32.mrb[0].mxu0
    %v808 = vadd.f32 %v695, %v807
    %v809 = vpop.f32.mrb[0].mxu0
    %v810 = vadd.f32 %v697, %v809
    %v811 = vpop.f32.mrb[0].mxu0
    %v812 = vadd.f32 %v699, %v811
    %v813 = vpop.f32.mrb[0].mxu0
    %v814 = vadd.f32 %v701, %v813
    %815 = vmatprep.mubr.bf16.mxu0 %v277
    %816 = vmatmul.mubr.bf16.gmra.mrb[0].mxu0 %v276
    %v817 = vpop.f32.mrb[0].mxu0
    %v818 = vadd.f32 %v705, %v817
    %v819 = vpop.f32.mrb[0].mxu0
    %v820 = vadd.f32 %v707, %v819
    %v821 = vpop.f32.mrb[0].mxu0
    %v822 = vadd.f32 %v709, %v821
    %v823 = vpop.f32.mrb[0].mxu0
    %v824 = vadd.f32 %v711, %v823
    %825 = vmatprep.mubr.bf16.mxu0 %v281
    %826 = vmatmul.mubr.bf16.gmra.mrb[0].mxu0 %v280
    %v827 = vpop.f32.mrb[0].mxu0
    %v828 = vadd.f32 %v715, %v827
    %v829 = vpop.f32.mrb[0].mxu0
    %v830 = vadd.f32 %v717, %v829
    %v831 = vpop.f32.mrb[0].mxu0
    %v832 = vadd.f32 %v719, %v831
    %v833 = vpop.f32.mrb[0].mxu0
    %v834 = vadd.f32 %v721, %v833
    %835 = vmatprep.mubr.bf16.mxu0 %v285
    %836 = vmatmul.mubr.bf16.gmra.mrb[0].mxu0 %v284
    %v837 = vpop.f32.mrb[0].mxu0
    %v838 = vadd.f32 %v725, %v837
    %v839 = vpop.f32.mrb[0].mxu0
    %v840 = vadd.f32 %v727, %v839
    %v841 = vpop.f32.mrb[0].mxu0
    %v842 = vadd.f32 %v729, %v841
    %v843 = vpop.f32.mrb[0].mxu0
    %v844 = vadd.f32 %v731, %v843
    %845 = vmatprep.mubr.bf16.mxu0 %v289
    %846 = vmatmul.mubr.bf16.gmra.mrb[0].mxu0 %v288
    %v847 = vpop.f32.mrb[0].mxu0
    %v848 = vadd.f32 %v735, %v847
    %v849 = vpop.f32.mrb[0].mxu0
    %v850 = vadd.f32 %v737, %v849
    %v851 = vpop.f32.mrb[0].mxu0
    %v852 = vadd.f32 %v739, %v851
    %v853 = vpop.f32.mrb[0].mxu0
    %v854 = vadd.f32 %v741, %v853
    %855 = vmatprep.mubr.bf16.mxu0 %v293
    %856 = vmatmul.mubr.bf16.gmra.mrb[0].mxu0 %v292
    %v857 = vpop.f32.mrb[0].mxu0
    %v858 = vadd.f32 %v745, %v857
    %v859 = vpop.f32.mrb[0].mxu0
    %v860 = vadd.f32 %v747, %v859
    %v861 = vpop.f32.mrb[0].mxu0
    %v862 = vadd.f32 %v749, %v861
    %v863 = vpop.f32.mrb[0].mxu0
    %v864 = vadd.f32 %v751, %v863
    %865 = vmatprep.mubr.bf16.mxu0 %v297
    %866 = vmatmul.mubr.bf16.gmra.mrb[0].mxu0 %v296
    %v867 = vpop.f32.mrb[0].mxu0
    %v868 = vadd.f32 %v755, %v867
    %v869 = vpop.f32.mrb[0].mxu0
    %v870 = vadd.f32 %v757, %v869
    %v871 = vpop.f32.mrb[0].mxu0
    %v872 = vadd.f32 %v759, %v871
    %v873 = vpop.f32.mrb[0].mxu0
    %v874 = vadd.f32 %v761, %v873
    %875 = vdwg.mxu0
    %v876 = vmax.f32 %v798, 0.0
    %v877 = vmax.f32 %v800, 0.0
    %v878 = vmax.f32 %v802, 0.0
    %v879 = vmax.f32 %v804, 0.0
    %v880 = vmax.f32 %v808, 0.0
    %v881 = vmax.f32 %v810, 0.0
    %v882 = vmax.f32 %v812, 0.0
    %v883 = vmax.f32 %v814, 0.0
    %v884 = vmax.f32 %v818, 0.0
    %v885 = vmax.f32 %v820, 0.0
    %v886 = vmax.f32 %v822, 0.0
    %v887 = vmax.f32 %v824, 0.0
    %v888 = vmax.f32 %v828, 0.0
    %v889 = vmax.f32 %v830, 0.0
    %v890 = vmax.f32 %v832, 0.0
    %v891 = vmax.f32 %v834, 0.0
    %v892 = vmax.f32 %v838, 0.0
    %v893 = vmax.f32 %v840, 0.0
    %v894 = vmax.f32 %v842, 0.0
    %v895 = vmax.f32 %v844, 0.0
    %v896 = vmax.f32 %v848, 0.0
    %v897 = vmax.f32 %v850, 0.0
    %v898 = vmax.f32 %v852, 0.0
    %v899 = vmax.f32 %v854, 0.0
    %v900 = vmax.f32 %v858, 0.0
    %v901 = vmax.f32 %v860, 0.0
    %v902 = vmax.f32 %v862, 0.0
    %v903 = vmax.f32 %v864, 0.0
    %v904 = vmax.f32 %v868, 0.0
    %v905 = vmax.f32 %v870, 0.0
    %v906 = vmax.f32 %v872, 0.0
    %v907 = vmax.f32 %v874, 0.0
    %v908 = vpack.c.bf16 %v878, %v876
    %v909 = vpack.c.bf16 %v879, %v877
    %v910 = vpack.c.bf16 %v882, %v880
    %v911 = vpack.c.bf16 %v883, %v881
    %v912 = vpack.c.bf16 %v886, %v884
    %v913 = vpack.c.bf16 %v887, %v885
    %v914 = vpack.c.bf16 %v890, %v888
    %v915 = vpack.c.bf16 %v891, %v889
    %v916 = vpack.c.bf16 %v894, %v892
    %v917 = vpack.c.bf16 %v895, %v893
    %v918 = vpack.c.bf16 %v898, %v896
    %v919 = vpack.c.bf16 %v899, %v897
    %v920 = vpack.c.bf16 %v902, %v900
    %v921 = vpack.c.bf16 %v903, %v901
    %v922 = vpack.c.bf16 %v906, %v904
    %v923 = vpack.c.bf16 %v907, %v905
    %v924 = vld [vmem:[#allocation7] sm:$0xff]
    %v925 = vld [vmem:[#allocation7 + $0x8] sm:$0xff]
    %v926 = vld [vmem:[#allocation7 + $0x10] sm:$0xff]
    %v927 = vld [vmem:[#allocation7 + $0x18] sm:$0xff]
    %v928 = vld [vmem:[#allocation7 + $0x20] sm:$0xff]
    %v929 = vld [vmem:[#allocation7 + $0x28] sm:$0xff]
    %v930 = vld [vmem:[#allocation7 + $0x30] sm:$0xff]
    %v931 = vld [vmem:[#allocation7 + $0x38] sm:$0xff]
    %v932 = vld [vmem:[#allocation7 + $0x40] sm:$0xff]
    %v933 = vld [vmem:[#allocation7 + $0x48] sm:$0xff]
    %v934 = vld [vmem:[#allocation7 + $0x50] sm:$0xff]
    %v935 = vld [vmem:[#allocation7 + $0x58] sm:$0xff]
    %v936 = vld [vmem:[#allocation7 + $0x60] sm:$0xff]
    %v937 = vld [vmem:[#allocation7 + $0x68] sm:$0xff]
    %v938 = vld [vmem:[#allocation7 + $0x70] sm:$0xff]
    %v939 = vld [vmem:[#allocation7 + $0x78] sm:$0xff]
    %v940 = vld [vmem:[#allocation7 + $0x80] sm:$0xff]
    %v941 = vld [vmem:[#allocation7 + $0x88] sm:$0xff]
    %v942 = vld [vmem:[#allocation7 + $0x90] sm:$0xff]
    %v943 = vld [vmem:[#allocation7 + $0x98] sm:$0xff]
    %v944 = vld [vmem:[#allocation7 + $0xa0] sm:$0xff]
    %v945 = vld [vmem:[#allocation7 + $0xa8] sm:$0xff]
    %v946 = vld [vmem:[#allocation7 + $0xb0] sm:$0xff]
    %v947 = vld [vmem:[#allocation7 + $0xb8] sm:$0xff]
    %v948 = vld [vmem:[#allocation7 + $0xc0] sm:$0xff]
    %v949 = vld [vmem:[#allocation7 + $0xc8] sm:$0xff]
    %v950 = vld [vmem:[#allocation7 + $0xd0] sm:$0xff]
    %v951 = vld [vmem:[#allocation7 + $0xd8] sm:$0xff]
    %v952 = vld [vmem:[#allocation7 + $0xe0] sm:$0xff]
    %v953 = vld [vmem:[#allocation7 + $0xe8] sm:$0xff]
    %v954 = vld [vmem:[#allocation7 + $0xf0] sm:$0xff]
    %v955 = vld [vmem:[#allocation7 + $0xf8] sm:$0xff]
    %v956 = vld [vmem:[#allocation7 + $0x100] sm:$0xff]
    %v957 = vld [vmem:[#allocation7 + $0x108] sm:$0xff]
    %v958 = vld [vmem:[#allocation7 + $0x110] sm:$0xff]
    %v959 = vld [vmem:[#allocation7 + $0x118] sm:$0xff]
    %v960 = vld [vmem:[#allocation7 + $0x120] sm:$0xff]
    %v961 = vld [vmem:[#allocation7 + $0x128] sm:$0xff]
    %v962 = vld [vmem:[#allocation7 + $0x130] sm:$0xff]
    %v963 = vld [vmem:[#allocation7 + $0x138] sm:$0xff]
    %v964 = vld [vmem:[#allocation7 + $0x140] sm:$0xff]
    %v965 = vld [vmem:[#allocation7 + $0x148] sm:$0xff]
    %v966 = vld [vmem:[#allocation7 + $0x150] sm:$0xff]
    %v967 = vld [vmem:[#allocation7 + $0x158] sm:$0xff]
    %v968 = vld [vmem:[#allocation7 + $0x160] sm:$0xff]
    %v969 = vld [vmem:[#allocation7 + $0x168] sm:$0xff]
    %v970 = vld [vmem:[#allocation7 + $0x170] sm:$0xff]
    %v971 = vld [vmem:[#allocation7 + $0x178] sm:$0xff]
    %v972 = vld [vmem:[#allocation7 + $0x180] sm:$0xff]
    %v973 = vld [vmem:[#allocation7 + $0x188] sm:$0xff]
    %v974 = vld [vmem:[#allocation7 + $0x190] sm:$0xff]
    %v975 = vld [vmem:[#allocation7 + $0x198] sm:$0xff]
    %v976 = vld [vmem:[#allocation7 + $0x1a0] sm:$0xff]
    %v977 = vld [vmem:[#allocation7 + $0x1a8] sm:$0xff]
    %v978 = vld [vmem:[#allocation7 + $0x1b0] sm:$0xff]
    %v979 = vld [vmem:[#allocation7 + $0x1b8] sm:$0xff]
    %v980 = vld [vmem:[#allocation7 + $0x1c0] sm:$0xff]
    %v981 = vld [vmem:[#allocation7 + $0x1c8] sm:$0xff]
    %v982 = vld [vmem:[#allocation7 + $0x1d0] sm:$0xff]
    %v983 = vld [vmem:[#allocation7 + $0x1d8] sm:$0xff]
    %v984 = vld [vmem:[#allocation7 + $0x1e0] sm:$0xff]
    %v985 = vld [vmem:[#allocation7 + $0x1e8] sm:$0xff]
    %v986 = vld [vmem:[#allocation7 + $0x1f0] sm:$0xff]
    %v987 = vld [vmem:[#allocation7 + $0x1f8] sm:$0xff]
    %v988 = vld [vmem:[%s4] sm:$0xf]
    %v990 = vlaneseq
    %v991 = vshrl.u32 %v990, 7
    %v992 = vsub.s32 0, %v991
    %v993 = vrot.slane %v988, %v992
    %v994 = vlaneseq
    %v995 = vshrl.u32 %v994, 7
    %v996 = vsub.s32 1, %v995
    %v997 = vrot.slane %v988, %v996
    %v998 = vlaneseq
    %v999 = vshrl.u32 %v998, 7
    %v1000 = vsub.s32 2, %v999
    %v1001 = vrot.slane %v988, %v1000
    %v1002 = vlaneseq
    %v1003 = vshrl.u32 %v1002, 7
    %v1004 = vsub.s32 3, %v1003
    %v1005 = vrot.slane %v988, %v1004
    %v1074 = vunpack.c.l.b16 %v924
    %v1075 = vunpack.c.h.b16 %v924
    %v1076 = vunpack.c.l.b16 %v925
    %v1077 = vunpack.c.h.b16 %v925
    %v1078 = vunpack.c.l.b16 %v926
    %v1079 = vunpack.c.h.b16 %v926
    %v1080 = vunpack.c.l.b16 %v927
    %v1081 = vunpack.c.h.b16 %v927
    %v1082 = vunpack.c.l.b16 %v928
    %v1083 = vunpack.c.h.b16 %v928
    %v1084 = vunpack.c.l.b16 %v929
    %v1085 = vunpack.c.h.b16 %v929
    %v1086 = vunpack.c.l.b16 %v930
    %v1087 = vunpack.c.h.b16 %v930
    %v1088 = vunpack.c.l.b16 %v931
    %v1089 = vunpack.c.h.b16 %v931
    %v1090 = vunpack.c.l.b16 %v932
    %v1091 = vunpack.c.h.b16 %v932
    %v1092 = vunpack.c.l.b16 %v933
    %v1093 = vunpack.c.h.b16 %v933
    %v1094 = vunpack.c.l.b16 %v934
    %v1095 = vunpack.c.h.b16 %v934
    %v1096 = vunpack.c.l.b16 %v935
    %v1097 = vunpack.c.h.b16 %v935
    %v1098 = vunpack.c.l.b16 %v936
    %v1099 = vunpack.c.h.b16 %v936
    %v1100 = vunpack.c.l.b16 %v937
    %v1101 = vunpack.c.h.b16 %v937
    %v1102 = vunpack.c.l.b16 %v938
    %v1103 = vunpack.c.h.b16 %v938
    %v1104 = vunpack.c.l.b16 %v939
    %v1105 = vunpack.c.h.b16 %v939
    %v1106 = vunpack.c.l.b16 %v940
    %v1107 = vunpack.c.h.b16 %v940
    %v1108 = vunpack.c.l.b16 %v941
    %v1109 = vunpack.c.h.b16 %v941
    %v1110 = vunpack.c.l.b16 %v942
    %v1111 = vunpack.c.h.b16 %v942
    %v1112 = vunpack.c.l.b16 %v943
    %v1113 = vunpack.c.h.b16 %v943
    %v1114 = vunpack.c.l.b16 %v944
    %v1115 = vunpack.c.h.b16 %v944
    %v1116 = vunpack.c.l.b16 %v945
    %v1117 = vunpack.c.h.b16 %v945
    %v1118 = vunpack.c.l.b16 %v946
    %v1119 = vunpack.c.h.b16 %v946
    %v1120 = vunpack.c.l.b16 %v947
    %v1121 = vunpack.c.h.b16 %v947
    %v1122 = vunpack.c.l.b16 %v948
    %v1123 = vunpack.c.h.b16 %v948
    %v1124 = vunpack.c.l.b16 %v949
    %v1125 = vunpack.c.h.b16 %v949
    %v1126 = vunpack.c.l.b16 %v950
    %v1127 = vunpack.c.h.b16 %v950
    %v1128 = vunpack.c.l.b16 %v951
    %v1129 = vunpack.c.h.b16 %v951
    %v1130 = vunpack.c.l.b16 %v952
    %v1131 = vunpack.c.h.b16 %v952
    %v1132 = vunpack.c.l.b16 %v953
    %v1133 = vunpack.c.h.b16 %v953
    %v1134 = vunpack.c.l.b16 %v954
    %v1135 = vunpack.c.h.b16 %v954
    %v1136 = vunpack.c.l.b16 %v955
    %v1137 = vunpack.c.h.b16 %v955
    %v1138 = vunpack.c.l.b16 %v956
    %v1139 = vunpack.c.h.b16 %v956
    %v1140 = vunpack.c.l.b16 %v957
    %v1141 = vunpack.c.h.b16 %v957
    %v1142 = vunpack.c.l.b16 %v958
    %v1143 = vunpack.c.h.b16 %v958
    %v1144 = vunpack.c.l.b16 %v959
    %v1145 = vunpack.c.h.b16 %v959
    %v1146 = vunpack.c.l.b16 %v960
    %v1147 = vunpack.c.h.b16 %v960
    %v1148 = vunpack.c.l.b16 %v961
    %v1149 = vunpack.c.h.b16 %v961
    %v1150 = vunpack.c.l.b16 %v962
    %v1151 = vunpack.c.h.b16 %v962
    %v1152 = vunpack.c.l.b16 %v963
    %v1153 = vunpack.c.h.b16 %v963
    %v1154 = vunpack.c.l.b16 %v964
    %v1155 = vunpack.c.h.b16 %v964
    %v1156 = vunpack.c.l.b16 %v965
    %v1157 = vunpack.c.h.b16 %v965
    %v1158 = vunpack.c.l.b16 %v966
    %v1159 = vunpack.c.h.b16 %v966
    %v1160 = vunpack.c.l.b16 %v967
    %v1161 = vunpack.c.h.b16 %v967
    %v1162 = vunpack.c.l.b16 %v968
    %v1163 = vunpack.c.h.b16 %v968
    %v1164 = vunpack.c.l.b16 %v969
    %v1165 = vunpack.c.h.b16 %v969
    %v1166 = vunpack.c.l.b16 %v970
    %v1167 = vunpack.c.h.b16 %v970
    %v1168 = vunpack.c.l.b16 %v971
    %v1169 = vunpack.c.h.b16 %v971
    %v1170 = vunpack.c.l.b16 %v972
    %v1171 = vunpack.c.h.b16 %v972
    %v1172 = vunpack.c.l.b16 %v973
    %v1173 = vunpack.c.h.b16 %v973
    %v1174 = vunpack.c.l.b16 %v974
    %v1175 = vunpack.c.h.b16 %v974
    %v1176 = vunpack.c.l.b16 %v975
    %v1177 = vunpack.c.h.b16 %v975
    %v1178 = vunpack.c.l.b16 %v976
    %v1179 = vunpack.c.h.b16 %v976
    %v1180 = vunpack.c.l.b16 %v977
    %v1181 = vunpack.c.h.b16 %v977
    %v1182 = vunpack.c.l.b16 %v978
    %v1183 = vunpack.c.h.b16 %v978
    %v1184 = vunpack.c.l.b16 %v979
    %v1185 = vunpack.c.h.b16 %v979
    %v1186 = vunpack.c.l.b16 %v980
    %v1187 = vunpack.c.h.b16 %v980
    %v1188 = vunpack.c.l.b16 %v981
    %v1189 = vunpack.c.h.b16 %v981
    %v1190 = vunpack.c.l.b16 %v982
    %v1191 = vunpack.c.h.b16 %v982
    %v1192 = vunpack.c.l.b16 %v983
    %v1193 = vunpack.c.h.b16 %v983
    %v1194 = vunpack.c.l.b16 %v984
    %v1195 = vunpack.c.h.b16 %v984
    %v1196 = vunpack.c.l.b16 %v985
    %v1197 = vunpack.c.h.b16 %v985
    %v1198 = vunpack.c.l.b16 %v986
    %v1199 = vunpack.c.h.b16 %v986
    %v1200 = vunpack.c.l.b16 %v987
    %v1201 = vunpack.c.h.b16 %v987
    %v1202 = vpack.c.b16 %v1078, %v1074
    %v1203 = vpack.c.b16 %v1079, %v1075
    %v1204 = vpack.c.b16 %v1080, %v1076
    %v1205 = vpack.c.b16 %v1081, %v1077
    %v1206 = vpack.c.b16 %v1086, %v1082
    %v1207 = vpack.c.b16 %v1087, %v1083
    %v1208 = vpack.c.b16 %v1088, %v1084
    %v1209 = vpack.c.b16 %v1089, %v1085
    %v1210 = vpack.c.b16 %v1094, %v1090
    %v1211 = vpack.c.b16 %v1095, %v1091
    %v1212 = vpack.c.b16 %v1096, %v1092
    %v1213 = vpack.c.b16 %v1097, %v1093
    %v1214 = vpack.c.b16 %v1102, %v1098
    %v1215 = vpack.c.b16 %v1103, %v1099
    %v1216 = vpack.c.b16 %v1104, %v1100
    %v1217 = vpack.c.b16 %v1105, %v1101
    %v1218 = vpack.c.b16 %v1110, %v1106
    %v1219 = vpack.c.b16 %v1111, %v1107
    %v1220 = vpack.c.b16 %v1112, %v1108
    %v1221 = vpack.c.b16 %v1113, %v1109
    %v1222 = vpack.c.b16 %v1118, %v1114
    %v1223 = vpack.c.b16 %v1119, %v1115
    %v1224 = vpack.c.b16 %v1120, %v1116
    %v1225 = vpack.c.b16 %v1121, %v1117
    %v1226 = vpack.c.b16 %v1126, %v1122
    %v1227 = vpack.c.b16 %v1127, %v1123
    %v1228 = vpack.c.b16 %v1128, %v1124
    %v1229 = vpack.c.b16 %v1129, %v1125
    %v1230 = vpack.c.b16 %v1134, %v1130
    %v1231 = vpack.c.b16 %v1135, %v1131
    %v1232 = vpack.c.b16 %v1136, %v1132
    %v1233 = vpack.c.b16 %v1137, %v1133
    %v1234 = vpack.c.b16 %v1142, %v1138
    %v1235 = vpack.c.b16 %v1143, %v1139
    %v1236 = vpack.c.b16 %v1144, %v1140
    %v1237 = vpack.c.b16 %v1145, %v1141
    %v1238 = vpack.c.b16 %v1150, %v1146
    %v1239 = vpack.c.b16 %v1151, %v1147
    %v1240 = vpack.c.b16 %v1152, %v1148
    %v1241 = vpack.c.b16 %v1153, %v1149
    %v1242 = vpack.c.b16 %v1158, %v1154
    %v1243 = vpack.c.b16 %v1159, %v1155
    %v1244 = vpack.c.b16 %v1160, %v1156
    %v1245 = vpack.c.b16 %v1161, %v1157
    %v1246 = vpack.c.b16 %v1166, %v1162
    %v1247 = vpack.c.b16 %v1167, %v1163
    %v1248 = vpack.c.b16 %v1168, %v1164
    %v1249 = vpack.c.b16 %v1169, %v1165
    %v1250 = vpack.c.b16 %v1174, %v1170
    %v1251 = vpack.c.b16 %v1175, %v1171
    %v1252 = vpack.c.b16 %v1176, %v1172
    %v1253 = vpack.c.b16 %v1177, %v1173
    %v1254 = vpack.c.b16 %v1182, %v1178
    %v1255 = vpack.c.b16 %v1183, %v1179
    %v1256 = vpack.c.b16 %v1184, %v1180
    %v1257 = vpack.c.b16 %v1185, %v1181
    %v1258 = vpack.c.b16 %v1190, %v1186
    %v1259 = vpack.c.b16 %v1191, %v1187
    %v1260 = vpack.c.b16 %v1192, %v1188
    %v1261 = vpack.c.b16 %v1193, %v1189
    %v1262 = vpack.c.b16 %v1198, %v1194
    %v1263 = vpack.c.b16 %v1199, %v1195
    %v1264 = vpack.c.b16 %v1200, %v1196
    %v1265 = vpack.c.b16 %v1201, %v1197
    %1330 = vmatprep.subr.bf16.mxu0 %v1203
    %1331 = vmatpush1.bf16.msra.mxu0 %v1202
    %1332 = vmatprep.subr.bf16.mxu0 %v1207
    %1333 = vmatpush1.bf16.msra.mxu0 %v1206
    %1334 = vmatprep.subr.bf16.mxu0 %v1211
    %1335 = vmatpush1.bf16.msra.mxu0 %v1210
    %1336 = vmatprep.subr.bf16.mxu0 %v1215
    %1337 = vmatpush1.bf16.msra.mxu0 %v1214
    %1338 = vmatprep.subr.bf16.mxu0 %v1219
    %1339 = vmatpush1.bf16.msra.mxu0 %v1218
    %1340 = vmatprep.subr.bf16.mxu0 %v1223
    %1341 = vmatpush1.bf16.msra.mxu0 %v1222
    %1342 = vmatprep.subr.bf16.mxu0 %v1227
    %1343 = vmatpush1.bf16.msra.mxu0 %v1226
    %1344 = vmatprep.subr.bf16.mxu0 %v1231
    %1345 = vmatpush1.bf16.msra.mxu0 %v1230
    %1346 = vmatprep.subr.bf16.mxu0 %v1235
    %1347 = vmatpush1.bf16.msra.mxu0 %v1234
    %1348 = vmatprep.subr.bf16.mxu0 %v1239
    %1349 = vmatpush1.bf16.msra.mxu0 %v1238
    %1350 = vmatprep.subr.bf16.mxu0 %v1243
    %1351 = vmatpush1.bf16.msra.mxu0 %v1242
    %1352 = vmatprep.subr.bf16.mxu0 %v1247
    %1353 = vmatpush1.bf16.msra.mxu0 %v1246
    %1354 = vmatprep.subr.bf16.mxu0 %v1251
    %1355 = vmatpush1.bf16.msra.mxu0 %v1250
    %1356 = vmatprep.subr.bf16.mxu0 %v1255
    %1357 = vmatpush1.bf16.msra.mxu0 %v1254
    %1358 = vmatprep.subr.bf16.mxu0 %v1259
    %1359 = vmatpush1.bf16.msra.mxu0 %v1258
    %1360 = vmatprep.subr.bf16.mxu0 %v1263
    %1361 = vmatpush1.bf16.msra.mxu0 %v1262
    %1362 = vmatprep.mubr.bf16.mxu0 %v909
    %1363 = vmatmul.mubr.bf16.gmra.mrb[0].mxu0 %v908
    %v1364 = vpop.f32.mrb[0].mxu0
    %v1365 = vadd.f32 %v993, %v1364
    %v1366 = vpop.f32.mrb[0].mxu0
    %v1367 = vadd.f32 %v997, %v1366
    %v1368 = vpop.f32.mrb[0].mxu0
    %v1369 = vadd.f32 %v993, %v1368
    %v1370 = vpop.f32.mrb[0].mxu0
    %v1371 = vadd.f32 %v997, %v1370
    %1372 = vmatprep.mubr.bf16.mxu0 %v911
    %1373 = vmatmul.mubr.bf16.gmra.mrb[0].mxu0 %v910
    %v1374 = vpop.f32.mrb[0].mxu0
    %v1375 = vadd.f32 %v993, %v1374
    %v1376 = vpop.f32.mrb[0].mxu0
    %v1377 = vadd.f32 %v997, %v1376
    %v1378 = vpop.f32.mrb[0].mxu0
    %v1379 = vadd.f32 %v993, %v1378
    %v1380 = vpop.f32.mrb[0].mxu0
    %v1381 = vadd.f32 %v997, %v1380
    %1382 = vmatprep.mubr.bf16.mxu0 %v913
    %1383 = vmatmul.mubr.bf16.gmra.mrb[0].mxu0 %v912
    %v1384 = vpop.f32.mrb[0].mxu0
    %v1385 = vadd.f32 %v993, %v1384
    %v1386 = vpop.f32.mrb[0].mxu0
    %v1387 = vadd.f32 %v997, %v1386
    %v1388 = vpop.f32.mrb[0].mxu0
    %v1389 = vadd.f32 %v993, %v1388
    %v1390 = vpop.f32.mrb[0].mxu0
    %v1391 = vadd.f32 %v997, %v1390
    %1392 = vmatprep.mubr.bf16.mxu0 %v915
    %1393 = vmatmul.mubr.bf16.gmra.mrb[0].mxu0 %v914
    %v1394 = vpop.f32.mrb[0].mxu0
    %v1395 = vadd.f32 %v993, %v1394
    %v1396 = vpop.f32.mrb[0].mxu0
    %v1397 = vadd.f32 %v997, %v1396
    %v1398 = vpop.f32.mrb[0].mxu0
    %v1399 = vadd.f32 %v993, %v1398
    %v1400 = vpop.f32.mrb[0].mxu0
    %v1401 = vadd.f32 %v997, %v1400
    %1402 = vmatprep.mubr.bf16.mxu0 %v917
    %1403 = vmatmul.mubr.bf16.gmra.mrb[0].mxu0 %v916
    %v1404 = vpop.f32.mrb[0].mxu0
    %v1405 = vadd.f32 %v993, %v1404
    %v1406 = vpop.f32.mrb[0].mxu0
    %v1407 = vadd.f32 %v997, %v1406
    %v1408 = vpop.f32.mrb[0].mxu0
    %v1409 = vadd.f32 %v993, %v1408
    %v1410 = vpop.f32.mrb[0].mxu0
    %v1411 = vadd.f32 %v997, %v1410
    %1412 = vmatprep.mubr.bf16.mxu0 %v919
    %1413 = vmatmul.mubr.bf16.gmra.mrb[0].mxu0 %v918
    %v1414 = vpop.f32.mrb[0].mxu0
    %v1415 = vadd.f32 %v993, %v1414
    %v1416 = vpop.f32.mrb[0].mxu0
    %v1417 = vadd.f32 %v997, %v1416
    %v1418 = vpop.f32.mrb[0].mxu0
    %v1419 = vadd.f32 %v993, %v1418
    %v1420 = vpop.f32.mrb[0].mxu0
    %v1421 = vadd.f32 %v997, %v1420
    %1422 = vmatprep.mubr.bf16.mxu0 %v921
    %1423 = vmatmul.mubr.bf16.gmra.mrb[0].mxu0 %v920
    %v1424 = vpop.f32.mrb[0].mxu0
    %v1425 = vadd.f32 %v993, %v1424
    %v1426 = vpop.f32.mrb[0].mxu0
    %v1427 = vadd.f32 %v997, %v1426
    %v1428 = vpop.f32.mrb[0].mxu0
    %v1429 = vadd.f32 %v993, %v1428
    %v1430 = vpop.f32.mrb[0].mxu0
    %v1431 = vadd.f32 %v997, %v1430
    %1432 = vmatprep.mubr.bf16.mxu0 %v923
    %1433 = vmatmul.mubr.bf16.gmra.mrb[0].mxu0 %v922
    %v1434 = vpop.f32.mrb[0].mxu0
    %v1435 = vadd.f32 %v993, %v1434
    %v1436 = vpop.f32.mrb[0].mxu0
    %v1437 = vadd.f32 %v997, %v1436
    %v1438 = vpop.f32.mrb[0].mxu0
    %v1439 = vadd.f32 %v993, %v1438
    %v1440 = vpop.f32.mrb[0].mxu0
    %v1441 = vadd.f32 %v997, %v1440
    %1442 = vdwg.mxu0
    %1443 = vmatprep.subr.bf16.mxu0 %v1205
    %1444 = vmatpush1.bf16.msra.mxu0 %v1204
    %1445 = vmatprep.subr.bf16.mxu0 %v1209
    %1446 = vmatpush1.bf16.msra.mxu0 %v1208
    %1447 = vmatprep.subr.bf16.mxu0 %v1213
    %1448 = vmatpush1.bf16.msra.mxu0 %v1212
    %1449 = vmatprep.subr.bf16.mxu0 %v1217
    %1450 = vmatpush1.bf16.msra.mxu0 %v1216
    %1451 = vmatprep.subr.bf16.mxu0 %v1221
    %1452 = vmatpush1.bf16.msra.mxu0 %v1220
    %1453 = vmatprep.subr.bf16.mxu0 %v1225
    %1454 = vmatpush1.bf16.msra.mxu0 %v1224
    %1455 = vmatprep.subr.bf16.mxu0 %v1229
    %1456 = vmatpush1.bf16.msra.mxu0 %v1228
    %1457 = vmatprep.subr.bf16.mxu0 %v1233
    %1458 = vmatpush1.bf16.msra.mxu0 %v1232
    %1459 = vmatprep.subr.bf16.mxu0 %v1237
    %1460 = vmatpush1.bf16.msra.mxu0 %v1236
    %1461 = vmatprep.subr.bf16.mxu0 %v1241
    %1462 = vmatpush1.bf16.msra.mxu0 %v1240
    %1463 = vmatprep.subr.bf16.mxu0 %v1245
    %1464 = vmatpush1.bf16.msra.mxu0 %v1244
    %1465 = vmatprep.subr.bf16.mxu0 %v1249
    %1466 = vmatpush1.bf16.msra.mxu0 %v1248
    %1467 = vmatprep.subr.bf16.mxu0 %v1253
    %1468 = vmatpush1.bf16.msra.mxu0 %v1252
    %1469 = vmatprep.subr.bf16.mxu0 %v1257
    %1470 = vmatpush1.bf16.msra.mxu0 %v1256
    %1471 = vmatprep.subr.bf16.mxu0 %v1261
    %1472 = vmatpush1.bf16.msra.mxu0 %v1260
    %1473 = vmatprep.subr.bf16.mxu0 %v1265
    %1474 = vmatpush1.bf16.msra.mxu0 %v1264
    %1475 = vmatprep.mubr.bf16.mxu0 %v909
    %1476 = vmatmul.mubr.bf16.gmra.mrb[0].mxu0 %v908
    %v1477 = vpop.f32.mrb[0].mxu0
    %v1478 = vadd.f32 %v1001, %v1477
    %v1479 = vpop.f32.mrb[0].mxu0
    %v1480 = vadd.f32 %v1005, %v1479
    %v1481 = vpop.f32.mrb[0].mxu0
    %v1482 = vadd.f32 %v1001, %v1481
    %v1483 = vpop.f32.mrb[0].mxu0
    %v1484 = vadd.f32 %v1005, %v1483
    %1485 = vmatprep.mubr.bf16.mxu0 %v911
    %1486 = vmatmul.mubr.bf16.gmra.mrb[0].mxu0 %v910
    %v1487 = vpop.f32.mrb[0].mxu0
    %v1488 = vadd.f32 %v1001, %v1487
    %v1489 = vpop.f32.mrb[0].mxu0
    %v1490 = vadd.f32 %v1005, %v1489
    %v1491 = vpop.f32.mrb[0].mxu0
    %v1492 = vadd.f32 %v1001, %v1491
    %v1493 = vpop.f32.mrb[0].mxu0
    %v1494 = vadd.f32 %v1005, %v1493
    %1495 = vmatprep.mubr.bf16.mxu0 %v913
    %1496 = vmatmul.mubr.bf16.gmra.mrb[0].mxu0 %v912
    %v1497 = vpop.f32.mrb[0].mxu0
    %v1498 = vadd.f32 %v1001, %v1497
    %v1499 = vpop.f32.mrb[0].mxu0
    %v1500 = vadd.f32 %v1005, %v1499
    %v1501 = vpop.f32.mrb[0].mxu0
    %v1502 = vadd.f32 %v1001, %v1501
    %v1503 = vpop.f32.mrb[0].mxu0
    %v1504 = vadd.f32 %v1005, %v1503
    %1505 = vmatprep.mubr.bf16.mxu0 %v915
    %1506 = vmatmul.mubr.bf16.gmra.mrb[0].mxu0 %v914
    %v1507 = vpop.f32.mrb[0].mxu0
    %v1508 = vadd.f32 %v1001, %v1507
    %v1509 = vpop.f32.mrb[0].mxu0
    %v1510 = vadd.f32 %v1005, %v1509
    %v1511 = vpop.f32.mrb[0].mxu0
    %v1512 = vadd.f32 %v1001, %v1511
    %v1513 = vpop.f32.mrb[0].mxu0
    %v1514 = vadd.f32 %v1005, %v1513
    %1515 = vmatprep.mubr.bf16.mxu0 %v917
    %1516 = vmatmul.mubr.bf16.gmra.mrb[0].mxu0 %v916
    %v1517 = vpop.f32.mrb[0].mxu0
    %v1518 = vadd.f32 %v1001, %v1517
    %v1519 = vpop.f32.mrb[0].mxu0
    %v1520 = vadd.f32 %v1005, %v1519
    %v1521 = vpop.f32.mrb[0].mxu0
    %v1522 = vadd.f32 %v1001, %v1521
    %v1523 = vpop.f32.mrb[0].mxu0
    %v1524 = vadd.f32 %v1005, %v1523
    %1525 = vmatprep.mubr.bf16.mxu0 %v919
    %1526 = vmatmul.mubr.bf16.gmra.mrb[0].mxu0 %v918
    %v1527 = vpop.f32.mrb[0].mxu0
    %v1528 = vadd.f32 %v1001, %v1527
    %v1529 = vpop.f32.mrb[0].mxu0
    %v1530 = vadd.f32 %v1005, %v1529
    %v1531 = vpop.f32.mrb[0].mxu0
    %v1532 = vadd.f32 %v1001, %v1531
    %v1533 = vpop.f32.mrb[0].mxu0
    %v1534 = vadd.f32 %v1005, %v1533
    %1535 = vmatprep.mubr.bf16.mxu0 %v921
    %1536 = vmatmul.mubr.bf16.gmra.mrb[0].mxu0 %v920
    %v1537 = vpop.f32.mrb[0].mxu0
    %v1538 = vadd.f32 %v1001, %v1537
    %v1539 = vpop.f32.mrb[0].mxu0
    %v1540 = vadd.f32 %v1005, %v1539
    %v1541 = vpop.f32.mrb[0].mxu0
    %v1542 = vadd.f32 %v1001, %v1541
    %v1543 = vpop.f32.mrb[0].mxu0
    %v1544 = vadd.f32 %v1005, %v1543
    %1545 = vmatprep.mubr.bf16.mxu0 %v923
    %1546 = vmatmul.mubr.bf16.gmra.mrb[0].mxu0 %v922
    %v1547 = vpop.f32.mrb[0].mxu0
    %v1548 = vadd.f32 %v1001, %v1547
    %v1549 = vpop.f32.mrb[0].mxu0
    %v1550 = vadd.f32 %v1005, %v1549
    %v1551 = vpop.f32.mrb[0].mxu0
    %v1552 = vadd.f32 %v1001, %v1551
    %v1553 = vpop.f32.mrb[0].mxu0
    %v1554 = vadd.f32 %v1005, %v1553
    %1555 = vdwg.mxu0
    %v1556 = vmax.f32 %v1365, 0.0
    %v1557 = vmax.f32 %v1367, 0.0
    %v1558 = vmax.f32 %v1478, 0.0
    %v1559 = vmax.f32 %v1480, 0.0
    %v1560 = vmax.f32 %v1369, 0.0
    %v1561 = vmax.f32 %v1371, 0.0
    %v1562 = vmax.f32 %v1482, 0.0
    %v1563 = vmax.f32 %v1484, 0.0
    %v1564 = vmax.f32 %v1375, 0.0
    %v1565 = vmax.f32 %v1377, 0.0
    %v1566 = vmax.f32 %v1488, 0.0
    %v1567 = vmax.f32 %v1490, 0.0
    %v1568 = vmax.f32 %v1379, 0.0
    %v1569 = vmax.f32 %v1381, 0.0
    %v1570 = vmax.f32 %v1492, 0.0
    %v1571 = vmax.f32 %v1494, 0.0
    %v1572 = vmax.f32 %v1385, 0.0
    %v1573 = vmax.f32 %v1387, 0.0
    %v1574 = vmax.f32 %v1498, 0.0
    %v1575 = vmax.f32 %v1500, 0.0
    %v1576 = vmax.f32 %v1389, 0.0
    %v1577 = vmax.f32 %v1391, 0.0
    %v1578 = vmax.f32 %v1502, 0.0
    %v1579 = vmax.f32 %v1504, 0.0
    %v1580 = vmax.f32 %v1395, 0.0
    %v1581 = vmax.f32 %v1397, 0.0
    %v1582 = vmax.f32 %v1508, 0.0
    %v1583 = vmax.f32 %v1510, 0.0
    %v1584 = vmax.f32 %v1399, 0.0
    %v1585 = vmax.f32 %v1401, 0.0
    %v1586 = vmax.f32 %v1512, 0.0
    %v1587 = vmax.f32 %v1514, 0.0
    %v1588 = vmax.f32 %v1405, 0.0
    %v1589 = vmax.f32 %v1407, 0.0
    %v1590 = vmax.f32 %v1518, 0.0
    %v1591 = vmax.f32 %v1520, 0.0
    %v1592 = vmax.f32 %v1409, 0.0
    %v1593 = vmax.f32 %v1411, 0.0
    %v1594 = vmax.f32 %v1522, 0.0
    %v1595 = vmax.f32 %v1524, 0.0
    %v1596 = vmax.f32 %v1415, 0.0
    %v1597 = vmax.f32 %v1417, 0.0
    %v1598 = vmax.f32 %v1528, 0.0
    %v1599 = vmax.f32 %v1530, 0.0
    %v1600 = vmax.f32 %v1419, 0.0
    %v1601 = vmax.f32 %v1421, 0.0
    %v1602 = vmax.f32 %v1532, 0.0
    %v1603 = vmax.f32 %v1534, 0.0
    %v1604 = vmax.f32 %v1425, 0.0
    %v1605 = vmax.f32 %v1427, 0.0
    %v1606 = vmax.f32 %v1538, 0.0
    %v1607 = vmax.f32 %v1540, 0.0
    %v1608 = vmax.f32 %v1429, 0.0
    %v1609 = vmax.f32 %v1431, 0.0
    %v1610 = vmax.f32 %v1542, 0.0
    %v1611 = vmax.f32 %v1544, 0.0
    %v1612 = vmax.f32 %v1435, 0.0
    %v1613 = vmax.f32 %v1437, 0.0
    %v1614 = vmax.f32 %v1548, 0.0
    %v1615 = vmax.f32 %v1550, 0.0
    %v1616 = vmax.f32 %v1439, 0.0
    %v1617 = vmax.f32 %v1441, 0.0
    %v1618 = vmax.f32 %v1552, 0.0
    %v1619 = vmax.f32 %v1554, 0.0
    %v1620 = vpack.c.bf16 %v1560, %v1556
    %v1621 = vpack.c.bf16 %v1561, %v1557
    %v1622 = vpack.c.bf16 %v1562, %v1558
    %v1623 = vpack.c.bf16 %v1563, %v1559
    %v1624 = vpack.c.bf16 %v1568, %v1564
    %v1625 = vpack.c.bf16 %v1569, %v1565
    %v1626 = vpack.c.bf16 %v1570, %v1566
    %v1627 = vpack.c.bf16 %v1571, %v1567
    %v1628 = vpack.c.bf16 %v1576, %v1572
    %v1629 = vpack.c.bf16 %v1577, %v1573
    %v1630 = vpack.c.bf16 %v1578, %v1574
    %v1631 = vpack.c.bf16 %v1579, %v1575
    %v1632 = vpack.c.bf16 %v1584, %v1580
    %v1633 = vpack.c.bf16 %v1585, %v1581
    %v1634 = vpack.c.bf16 %v1586, %v1582
    %v1635 = vpack.c.bf16 %v1587, %v1583
    %v1636 = vpack.c.bf16 %v1592, %v1588
    %v1637 = vpack.c.bf16 %v1593, %v1589
    %v1638 = vpack.c.bf16 %v1594, %v1590
    %v1639 = vpack.c.bf16 %v1595, %v1591
    %v1640 = vpack.c.bf16 %v1600, %v1596
    %v1641 = vpack.c.bf16 %v1601, %v1597
    %v1642 = vpack.c.bf16 %v1602, %v1598
    %v1643 = vpack.c.bf16 %v1603, %v1599
    %v1644 = vpack.c.bf16 %v1608, %v1604
    %v1645 = vpack.c.bf16 %v1609, %v1605
    %v1646 = vpack.c.bf16 %v1610, %v1606
    %v1647 = vpack.c.bf16 %v1611, %v1607
    %v1648 = vpack.c.bf16 %v1616, %v1612
    %v1649 = vpack.c.bf16 %v1617, %v1613
    %v1650 = vpack.c.bf16 %v1618, %v1614
    %v1651 = vpack.c.bf16 %v1619, %v1615
    %v1684 = vunpack.c.l.b16 %v1620
    %v1685 = vunpack.c.l.b16 %v1621
    %v1686 = vunpack.c.l.b16 %v1622
    %v1687 = vunpack.c.l.b16 %v1623
    %v1688 = vunpack.c.h.b16 %v1620
    %v1689 = vunpack.c.h.b16 %v1621
    %v1690 = vunpack.c.h.b16 %v1622
    %v1691 = vunpack.c.h.b16 %v1623
    %v1692 = vunpack.c.l.b16 %v1624
    %v1693 = vunpack.c.l.b16 %v1625
    %v1694 = vunpack.c.l.b16 %v1626
    %v1695 = vunpack.c.l.b16 %v1627
    %v1696 = vunpack.c.h.b16 %v1624
    %v1697 = vunpack.c.h.b16 %v1625
    %v1698 = vunpack.c.h.b16 %v1626
    %v1699 = vunpack.c.h.b16 %v1627
    %v1700 = vunpack.c.l.b16 %v1628
    %v1701 = vunpack.c.l.b16 %v1629
    %v1702 = vunpack.c.l.b16 %v1630
    %v1703 = vunpack.c.l.b16 %v1631
    %v1704 = vunpack.c.h.b16 %v1628
    %v1705 = vunpack.c.h.b16 %v1629
    %v1706 = vunpack.c.h.b16 %v1630
    %v1707 = vunpack.c.h.b16 %v1631
    %v1708 = vunpack.c.l.b16 %v1632
    %v1709 = vunpack.c.l.b16 %v1633
    %v1710 = vunpack.c.l.b16 %v1634
    %v1711 = vunpack.c.l.b16 %v1635
    %v1712 = vunpack.c.h.b16 %v1632
    %v1713 = vunpack.c.h.b16 %v1633
    %v1714 = vunpack.c.h.b16 %v1634
    %v1715 = vunpack.c.h.b16 %v1635
    %v1716 = vunpack.c.l.b16 %v1636
    %v1717 = vunpack.c.l.b16 %v1637
    %v1718 = vunpack.c.l.b16 %v1638
    %v1719 = vunpack.c.l.b16 %v1639
    %v1720 = vunpack.c.h.b16 %v1636
    %v1721 = vunpack.c.h.b16 %v1637
    %v1722 = vunpack.c.h.b16 %v1638
    %v1723 = vunpack.c.h.b16 %v1639
    %v1724 = vunpack.c.l.b16 %v1640
    %v1725 = vunpack.c.l.b16 %v1641
    %v1726 = vunpack.c.l.b16 %v1642
    %v1727 = vunpack.c.l.b16 %v1643
    %v1728 = vunpack.c.h.b16 %v1640
    %v1729 = vunpack.c.h.b16 %v1641
    %v1730 = vunpack.c.h.b16 %v1642
    %v1731 = vunpack.c.h.b16 %v1643
    %v1732 = vunpack.c.l.b16 %v1644
    %v1733 = vunpack.c.l.b16 %v1645
    %v1734 = vunpack.c.l.b16 %v1646
    %v1735 = vunpack.c.l.b16 %v1647
    %v1736 = vunpack.c.h.b16 %v1644
    %v1737 = vunpack.c.h.b16 %v1645
    %v1738 = vunpack.c.h.b16 %v1646
    %v1739 = vunpack.c.h.b16 %v1647
    %v1740 = vunpack.c.l.b16 %v1648
    %v1741 = vunpack.c.l.b16 %v1649
    %v1742 = vunpack.c.l.b16 %v1650
    %v1743 = vunpack.c.l.b16 %v1651
    %v1744 = vunpack.c.h.b16 %v1648
    %v1745 = vunpack.c.h.b16 %v1649
    %v1746 = vunpack.c.h.b16 %v1650
    %v1747 = vunpack.c.h.b16 %v1651
    %v1748 = vpack.c.b16 %v1685, %v1684
    %v1749 = vpack.c.b16 %v1687, %v1686
    %v1750 = vpack.c.b16 %v1689, %v1688
    %v1751 = vpack.c.b16 %v1691, %v1690
    %v1752 = vpack.c.b16 %v1693, %v1692
    %v1753 = vpack.c.b16 %v1695, %v1694
    %v1754 = vpack.c.b16 %v1697, %v1696
    %v1755 = vpack.c.b16 %v1699, %v1698
    %v1756 = vpack.c.b16 %v1701, %v1700
    %v1757 = vpack.c.b16 %v1703, %v1702
    %v1758 = vpack.c.b16 %v1705, %v1704
    %v1759 = vpack.c.b16 %v1707, %v1706
    %v1760 = vpack.c.b16 %v1709, %v1708
    %v1761 = vpack.c.b16 %v1711, %v1710
    %v1762 = vpack.c.b16 %v1713, %v1712
    %v1763 = vpack.c.b16 %v1715, %v1714
    %v1764 = vpack.c.b16 %v1717, %v1716
    %v1765 = vpack.c.b16 %v1719, %v1718
    %v1766 = vpack.c.b16 %v1721, %v1720
    %v1767 = vpack.c.b16 %v1723, %v1722
    %v1768 = vpack.c.b16 %v1725, %v1724
    %v1769 = vpack.c.b16 %v1727, %v1726
    %v1770 = vpack.c.b16 %v1729, %v1728
    %v1771 = vpack.c.b16 %v1731, %v1730
    %v1772 = vpack.c.b16 %v1733, %v1732
    %v1773 = vpack.c.b16 %v1735, %v1734
    %v1774 = vpack.c.b16 %v1737, %v1736
    %v1775 = vpack.c.b16 %v1739, %v1738
    %v1776 = vpack.c.b16 %v1741, %v1740
    %v1777 = vpack.c.b16 %v1743, %v1742
    %v1778 = vpack.c.b16 %v1745, %v1744
    %v1779 = vpack.c.b16 %v1747, %v1746
    %1812 = vst [vmem:[#allocation8] sm:$0xff] %v1748
    %1813 = vst [vmem:[#allocation8 + $0x8] sm:$0xff] %v1749
    %1814 = vst [vmem:[#allocation8 + $0x10] sm:$0xff] %v1750
    %1815 = vst [vmem:[#allocation8 + $0x18] sm:$0xff] %v1751
    %1816 = vst [vmem:[#allocation8 + $0x20] sm:$0xff] %v1752
    %1817 = vst [vmem:[#allocation8 + $0x28] sm:$0xff] %v1753
    %1818 = vst [vmem:[#allocation8 + $0x30] sm:$0xff] %v1754
    %1819 = vst [vmem:[#allocation8 + $0x38] sm:$0xff] %v1755
    %1820 = vst [vmem:[#allocation8 + $0x40] sm:$0xff] %v1756
    %1821 = vst [vmem:[#allocation8 + $0x48] sm:$0xff] %v1757
    %1822 = vst [vmem:[#allocation8 + $0x50] sm:$0xff] %v1758
    %1823 = vst [vmem:[#allocation8 + $0x58] sm:$0xff] %v1759
    %1824 = vst [vmem:[#allocation8 + $0x60] sm:$0xff] %v1760
    %1825 = vst [vmem:[#allocation8 + $0x68] sm:$0xff] %v1761
    %1826 = vst [vmem:[#allocation8 + $0x70] sm:$0xff] %v1762
    %1827 = vst [vmem:[#allocation8 + $0x78] sm:$0xff] %v1763
    %1828 = vst [vmem:[#allocation8 + $0x80] sm:$0xff] %v1764
    %1829 = vst [vmem:[#allocation8 + $0x88] sm:$0xff] %v1765
    %1830 = vst [vmem:[#allocation8 + $0x90] sm:$0xff] %v1766
    %1831 = vst [vmem:[#allocation8 + $0x98] sm:$0xff] %v1767
    %1832 = vst [vmem:[#allocation8 + $0xa0] sm:$0xff] %v1768
    %1833 = vst [vmem:[#allocation8 + $0xa8] sm:$0xff] %v1769
    %1834 = vst [vmem:[#allocation8 + $0xb0] sm:$0xff] %v1770
    %1835 = vst [vmem:[#allocation8 + $0xb8] sm:$0xff] %v1771
    %1836 = vst [vmem:[#allocation8 + $0xc0] sm:$0xff] %v1772
    %1837 = vst [vmem:[#allocation8 + $0xc8] sm:$0xff] %v1773
    %1838 = vst [vmem:[#allocation8 + $0xd0] sm:$0xff] %v1774
    %1839 = vst [vmem:[#allocation8 + $0xd8] sm:$0xff] %v1775
    %1840 = vst [vmem:[#allocation8 + $0xe0] sm:$0xff] %v1776
    %1841 = vst [vmem:[#allocation8 + $0xe8] sm:$0xff] %v1777
    %1842 = vst [vmem:[#allocation8 + $0xf0] sm:$0xff] %v1778
    %1843 = vst [vmem:[#allocation8 + $0xf8] sm:$0xff] %v1779
    // Predicated region
    $region34: #{tpu_custom_call.1} parent=1 // pred_check
      _
    $region35: #{tpu_custom_call.1} parent=1 // pred_check_branch
      %1845 = sbr.rel (0) target = $region37
    $region36: #{tpu_custom_call.1} parent=1 // pred_region
      %s1847 = ssub.s32 4096, 4096
      %1848 = vsyncadd [#allocation4], %s1847
      %s1849 = sshll.u32 [#allocation8], 4
      %s1850 = int_to_ptr.vmem [resolvable:$true] %s1849
      %1855 = dma.vmem_to_hbm [thread:$0]  %s1850, 4096, %s5, [#allocation4], 256, 256, 16
    $region37: #{tpu_custom_call.1} parent=1 // pred_fallthru
      _
    // Predicated region
    $region38: #{tpu_custom_call.1} parent=1 // pred_check
      _
    $region39: #{tpu_custom_call.1} parent=1 // pred_check_branch
      %1857 = sbr.rel (0) target = $region41
    $region40: #{tpu_custom_call.1} parent=1 // pred_region
      %1858 = dma.done [#allocation4], 4096
    $region41: #{tpu_custom_call.1} parent=1 // pred_fallthru
      _
    %1859 = vsyncpa [#allocation3], 1
    %1860 = vsyncpa [#allocation6], 1
    %1861 = vsyncpa [#allocation4], 1

</llo_original>
